<compile_context>
chip_gen: v7x
topology: tpu7x:2x2x1
jax: 0.10.0
libtpu: 0.0.40
codegen_flags: <defaults>
</compile_context>

<pallas_src>
import numpy as np

import jax
import jax.numpy as jnp
from jax import lax
from jax.experimental import pallas as pl
from jax.experimental.pallas import tpu as pltpu

TB = 8  # images per grid step (batch block); sweepable 8-32


# ----------------------------------------------------------------------------
# Fused Pallas kernel: one grid step == TB images.
# ----------------------------------------------------------------------------
def _lenet_kernel(patches_ref, w1_ref, b1_ref, s1_ref, g2_ref, w2_ref, b2_ref,
                  s2_ref, wfc1_ref, bfc1_ref, wfc2_ref, bfc2_ref,
                  wfc3_ref, bfc3_ref, out_ref, im_ref, feat_ref):
    f32 = jnp.float32
    bf16 = jnp.bfloat16
    tb = feat_ref.shape[0]

    # im2col scratch pad rows (6..7 of every 8-row tap group) must be zero:
    # they multiply zero weight columns, but stale VMEM could hold NaN.
    im_ref[...] = jnp.zeros_like(im_ref)

    # ---- conv / pool stages: one image at a time (bounded live ranges) ------
    def per_image(b, carry):
        patches = patches_ref[b]                                   # (25,576) bf16

        # conv1 + ReLU: (6,25)@(25,576) -> (6,576)
        y1 = jnp.dot(w1_ref[...], patches, preferred_element_type=f32)
        y1 = jnp.maximum(y1 + b1_ref[...], 0.0)

        # maxpool 2x2 -> (6,144): one wide gather matmul, then max of 4 corners
        y1c = jnp.dot(y1.astype(bf16), s1_ref[...], preferred_element_type=f32)
        p1 = jnp.maximum(jnp.maximum(y1c[:, 0:144], y1c[:, 144:288]),
                         jnp.maximum(y1c[:, 288:432], y1c[:, 432:576]))
        p1 = p1.astype(bf16)                                       # (6,144)

        # conv2 im2col: tap k -> scratch rows [8k, 8k+6)
        for k in range(25):
            g = jnp.dot(p1, g2_ref[k], preferred_element_type=f32)  # (6,64)
            im_ref[8 * k:8 * k + 6, :] = g

        # conv2 + ReLU: ONE GEMM (16,200)@(200,64)
        y2 = jnp.dot(w2_ref[...], im_ref[...].astype(bf16),
                     preferred_element_type=f32)
        y2 = jnp.maximum(y2 + b2_ref[...], 0.0)                    # (16,64)

        # maxpool 2x2 -> (16,16): rows = channel, cols = h*4+w
        y2c = jnp.dot(y2.astype(bf16), s2_ref[...], preferred_element_type=f32)
        p2 = jnp.maximum(jnp.maximum(y2c[:, 0:16], y2c[:, 16:32]),
                         jnp.maximum(y2c[:, 32:48], y2c[:, 48:64]))
        feat_ref[b] = p2                                           # (16,16) f32
        return carry

    lax.fori_loop(0, tb, per_image, 0)

    # ---- fully-connected stages on the whole (TB, .) batch block ------------
    # Row-major reshape of (c, h*4+w) gives exactly torch's NCHW flatten order.
    feats = feat_ref[...].reshape(tb, 256).astype(bf16)            # (TB,256)
    h = jnp.dot(feats, wfc1_ref[...], preferred_element_type=f32) + bfc1_ref[...]
    h = jnp.maximum(h, 0.0)                                        # (TB,120)
    h = jnp.dot(h.astype(bf16), wfc2_ref[...],
                preferred_element_type=f32) + bfc2_ref[...]
    h = jnp.maximum(h, 0.0)                                        # (TB,84)
    h = jnp.dot(h.astype(bf16), wfc3_ref[...],
                preferred_element_type=f32) + bfc3_ref[...]
    h = jnp.maximum(h, 0.0)           # reference module has ReLU after fc3

    # log_softmax over classes
    m = jnp.max(h, axis=-1, keepdims=True)
    z = h - m
    lse = jnp.log(jnp.sum(jnp.exp(z), axis=-1, keepdims=True))
    out_ref[...] = z - lse                                         # (TB,10)


# ----------------------------------------------------------------------------
# Constant 0/1 gather matrices (built once with numpy).
# ----------------------------------------------------------------------------
def _pool_gather_cat(hw_in, hw_out):
    """(hw_in^2, 4*hw_out^2): right-multiplying a (C, hw_in^2) activation gives
    the 4 corners of every 2x2 stride-2 window, concatenated along lanes."""
    n_out = hw_out * hw_out
    sel = np.zeros((hw_in * hw_in, 4 * n_out), np.float32)
    d = 0
    for di in range(2):
        for dj in range(2):
            for oh in range(hw_out):
                for ow in range(hw_out):
                    sel[(2 * oh + di) * hw_in + (2 * ow + dj),
                        d * n_out + oh * hw_out + ow] = 1.0
            d += 1
    return sel


def _conv_gather_rhs(hw_in, hw_out, ksize):
    """(k^2, hw_in^2, hw_out^2): tap (i,j) right-multiplied into a (C, hw_in^2)
    activation yields the (i,j)-shifted valid window, flattened (C, hw_out^2)."""
    g = np.zeros((ksize * ksize, hw_in * hw_in, hw_out * hw_out), np.float32)
    for i in range(ksize):
        for j in range(ksize):
            for oh in range(hw_out):
                for ow in range(hw_out):
                    g[i * ksize + j, (oh + i) * hw_in + (ow + j),
                      oh * hw_out + ow] = 1.0
    return g


# ----------------------------------------------------------------------------
# One-time parameter packing (weights/gathers in bf16, biases in f32).
# ----------------------------------------------------------------------------
def pack_params(params):
    bf16 = jnp.bfloat16
    f32 = jnp.float32
    w1 = params["conv1_w"]                                   # (6,1,5,5)
    w2 = params["conv2_w"]                                   # (16,6,5,5)
    # conv2 weight laid out as (16, 200): column = tap*8 + cin (cin padded 6->8
    # with zeros) to match the im2col scratch rows.
    w2r = jnp.transpose(w2.reshape(16, 6, 25), (0, 2, 1))    # (16,25,6)
    w2p = jnp.pad(w2r, ((0, 0), (0, 0), (0, 2))).reshape(16, 200)
    return {
        "w1": w1[:, 0].reshape(6, 25).astype(bf16),           # [cout, i*5+j]
        "b1": params["conv1_b"].reshape(6, 1).astype(f32),
        "w2": w2p.astype(bf16),                               # (16,200)
        "b2": params["conv2_b"].reshape(16, 1).astype(f32),
        "wfc1": params["fc1_w"].T.astype(bf16),               # (256,120), torch order
        "bfc1": params["fc1_b"].reshape(1, 120).astype(f32),
        "wfc2": params["fc2_w"].T.astype(bf16),               # (120,84)
        "bfc2": params["fc2_b"].reshape(1, 84).astype(f32),
        "wfc3": params["fc3_w"].T.astype(bf16),               # (84,10)
        "bfc3": params["fc3_b"].reshape(1, 10).astype(f32),
        # constant gather / pooling selection matrices (exact in bf16)
        "s1": jnp.asarray(_pool_gather_cat(24, 12), dtype=bf16),   # (576,576)
        "g2": jnp.asarray(_conv_gather_rhs(12, 8, 5), dtype=bf16),  # (25,144,64)
        "s2": jnp.asarray(_pool_gather_cat(8, 4), dtype=bf16),      # (64,64)
    }


# ----------------------------------------------------------------------------
# Wrapper: conv1 im2col of the raw input (bf16, lane-dense) + pallas_call
# ----------------------------------------------------------------------------
def _input_patches(x):
    """(B,1,28,28) -> (B,25,576): [b, i*5+j, oh*24+ow] = x[b,0,oh+i,ow+j]."""
    B = x.shape[0]
    xs = x[:, 0]
    rows = []
    for i in range(5):
        for j in range(5):
            rows.append(xs[:, i:i + 24, j:j + 24].reshape(B, 576))
    return jnp.stack(rows, axis=1)


def _fixed_spec(shape):
    zeros = (0,) * len(shape)
    return pl.BlockSpec(shape, lambda i, _z=zeros: _z)


@jax.jit
def net_forward(x_nchw, packed):
    B = x_nchw.shape[0]
    patches = _input_patches(x_nchw.astype(jnp.float32)).astype(jnp.bfloat16)
    b_pad = -(-B // TB) * TB
    if b_pad != B:
        patches = jnp.pad(patches, ((0, b_pad - B), (0, 0), (0, 0)))

    args = (patches, packed["w1"], packed["b1"], packed["s1"], packed["g2"],
            packed["w2"], packed["b2"], packed["s2"], packed["wfc1"],
            packed["bfc1"], packed["wfc2"], packed["bfc2"], packed["wfc3"],
            packed["bfc3"])

    in_specs = [pl.BlockSpec((TB, 25, 576), lambda i: (i, 0, 0))]
    in_specs += [_fixed_spec(a.shape) for a in args[1:]]

    out = pl.pallas_call(
        _lenet_kernel,
        out_shape=jax.ShapeDtypeStruct((b_pad, 10), jnp.float32),
        grid=(b_pad // TB,),
        in_specs=in_specs,
        out_specs=pl.BlockSpec((TB, 10), lambda i: (i, 0)),
        scratch_shapes=[pltpu.VMEM((200, 64), jnp.float32),    # conv2 im2col
                        pltpu.VMEM((TB, 16, 16), jnp.float32)],  # flat features
        compiler_params=pltpu.CompilerParams(
            dimension_semantics=("parallel",),
            vmem_limit_bytes=32 * 1024 * 1024),
    )(*args)
    return out[:B]


# ----------------------------------------------------------------------------
# Deterministic parameter init (PyTorch-default-style uniform) + XLA reference
# ----------------------------------------------------------------------------
def init_params(key):
    def uniform(k, shape, fan_in):
        bound = 1.0 / jnp.sqrt(jnp.float32(fan_in))
        return jax.random.uniform(k, shape, jnp.float32, -bound, bound)

    ks = jax.random.split(key, 10)
    return {
        "conv1_w": uniform(ks[0], (6, 1, 5, 5), 25),
        "conv1_b": uniform(ks[1], (6,), 25),
        "conv2_w": uniform(ks[2], (16, 6, 5, 5), 150),
        "conv2_b": uniform(ks[3], (16,), 150),
        "fc1_w": uniform(ks[4], (120, 256), 256),   # torch Linear: (out, in)
        "fc1_b": uniform(ks[5], (120,), 256),
        "fc2_w": uniform(ks[6], (84, 120), 120),
        "fc2_b": uniform(ks[7], (84,), 120),
        "fc3_w": uniform(ks[8], (10, 84), 84),
        "fc3_b": uniform(ks[9], (10,), 84),
    }


def _reference_forward(x, params):
    """Plain-XLA f32 re-implementation of the PyTorch module, for sanity check."""
    y = jax.lax.conv(x, params["conv1_w"], (1, 1), "VALID")
    y = jnp.maximum(y + params["conv1_b"][None, :, None, None], 0.0)
    y = jax.lax.reduce_window(y, -jnp.inf, jax.lax.max,
                              (1, 1, 2, 2), (1, 1, 2, 2), "VALID")
    y = jax.lax.conv(y, params["conv2_w"], (1, 1), "VALID")
    y = jnp.maximum(y + params["conv2_b"][None, :, None, None], 0.0)
    y = jax.lax.reduce_window(y, -jnp.inf, jax.lax.max,
                              (1, 1, 2, 2), (1, 1, 2, 2), "VALID")
    flat = y.reshape(x.shape[0], -1)
    h = jnp.maximum(flat @ params["fc1_w"].T + params["fc1_b"], 0.0)
    h = jnp.maximum(h @ params["fc2_w"].T + params["fc2_b"], 0.0)
    h = jnp.maximum(h @ params["fc3_w"].T + params["fc3_b"], 0.0)
    return jax.nn.log_softmax(h, axis=-1)


# ----------------------------------------------------------------------------
if __name__ == "__main__":
    key = jax.random.PRNGKey(0)
    k_param, k_x = jax.random.split(key)

    params = init_params(k_param)
    packed = pack_params(params)            # packed once, outside the forward

    # LeNet-5 input: batch=2, 1 channel, 28x28 (so the flatten is exactly 256)
    x = jax.random.normal(k_x, (2, 1, 28, 28), dtype=jnp.float32)

    out = net_forward(x, packed)
    out = jax.block_until_ready(out)

    assert out.shape == (2, 10), out.shape
    assert out.dtype == jnp.float32

    # sanity check vs. a plain-XLA f32 reference of the same module
    # (kernel uses bf16 matmul operands with f32 accumulation)
    ref = jax.block_until_ready(_reference_forward(x, params))
    max_err = float(jnp.max(jnp.abs(out - ref)))
    assert max_err < 5e-2, f"kernel/reference mismatch: {max_err}"

    print("KERNEL_OK")
</pallas_src>

<mosaic_0001>
module attributes {stable_mosaic.version = 11 : i64} {
  func.func @_lenet_kernel(%arg0: i32, %arg1: memref<8x25x576xbf16, #tpu.memory_space<vmem>>, %arg2: memref<6x25xbf16, #tpu.memory_space<vmem>>, %arg3: memref<6x1xf32, #tpu.memory_space<vmem>>, %arg4: memref<576x576xbf16, #tpu.memory_space<vmem>>, %arg5: memref<25x144x64xbf16, #tpu.memory_space<vmem>>, %arg6: memref<16x200xbf16, #tpu.memory_space<vmem>>, %arg7: memref<16x1xf32, #tpu.memory_space<vmem>>, %arg8: memref<64x64xbf16, #tpu.memory_space<vmem>>, %arg9: memref<256x120xbf16, #tpu.memory_space<vmem>>, %arg10: memref<1x120xf32, #tpu.memory_space<vmem>>, %arg11: memref<120x84xbf16, #tpu.memory_space<vmem>>, %arg12: memref<1x84xf32, #tpu.memory_space<vmem>>, %arg13: memref<84x10xbf16, #tpu.memory_space<vmem>>, %arg14: memref<1x10xf32, #tpu.memory_space<vmem>>, %arg15: memref<8x10xf32, #tpu.memory_space<vmem>>, %arg16: memref<200x64xf32, #tpu.memory_space<vmem>>, %arg17: memref<8x16x16xf32, #tpu.memory_space<vmem>>) attributes {dimension_semantics = [#tpu.dimension_semantics<parallel>], iteration_bounds = array<i64: 1>, scalar_prefetch = 0 : i64, scratch_operands = 2 : i64, tpu.core_type = #tpu.core_type<tc>, window_params = [{transform_indices = @transform_0, window_bounds = array<i64: 8, 25, 576>}, {pipeline_mode = #tpu.pipeline_mode<synchronous>, transform_indices = @transform_1, window_bounds = array<i64: 6, 25>}, {pipeline_mode = #tpu.pipeline_mode<synchronous>, transform_indices = @transform_2, window_bounds = array<i64: 6, 1>}, {pipeline_mode = #tpu.pipeline_mode<synchronous>, transform_indices = @transform_3, window_bounds = array<i64: 576, 576>}, {pipeline_mode = #tpu.pipeline_mode<synchronous>, transform_indices = @transform_4, window_bounds = array<i64: 25, 144, 64>}, {pipeline_mode = #tpu.pipeline_mode<synchronous>, transform_indices = @transform_5, window_bounds = array<i64: 16, 200>}, {pipeline_mode = #tpu.pipeline_mode<synchronous>, transform_indices = @transform_6, window_bounds = array<i64: 16, 1>}, {pipeline_mode = #tpu.pipeline_mode<synchronous>, transform_indices = @transform_7, window_bounds = array<i64: 64, 64>}, {pipeline_mode = #tpu.pipeline_mode<synchronous>, transform_indices = @transform_8, window_bounds = array<i64: 256, 120>}, {pipeline_mode = #tpu.pipeline_mode<synchronous>, transform_indices = @transform_9, window_bounds = array<i64: 1, 120>}, {pipeline_mode = #tpu.pipeline_mode<synchronous>, transform_indices = @transform_10, window_bounds = array<i64: 120, 84>}, {pipeline_mode = #tpu.pipeline_mode<synchronous>, transform_indices = @transform_11, window_bounds = array<i64: 1, 84>}, {pipeline_mode = #tpu.pipeline_mode<synchronous>, transform_indices = @transform_12, window_bounds = array<i64: 84, 10>}, {pipeline_mode = #tpu.pipeline_mode<synchronous>, transform_indices = @transform_13, window_bounds = array<i64: 1, 10>}, {transform_indices = @transform_14, window_bounds = array<i64: 8, 10>}]} {
    %cst = arith.constant 0.000000e+00 : f32
    %0 = vector.broadcast %cst : f32 to vector<200x64xf32>
    %c0 = arith.constant 0 : index
    %c0_0 = arith.constant 0 : index
    %1 = vector.load %arg16[%c0, %c0_0] : memref<200x64xf32, #tpu.memory_space<vmem>>, vector<200x64xf32>
    tpu.vector_store %arg16[%c0, %c0_0], %0 {strides = array<i32>} : memref<200x64xf32, #tpu.memory_space<vmem>>, vector<200x64xf32>,
    %c0_i32 = arith.constant 0 : i32
    %c8_i32 = arith.constant 8 : i32
    %2 = arith.addi %c0_i32, %c8_i32 : i32
    %c1_i32 = arith.constant 1 : i32
    scf.for %arg18 = %c0_i32 to %2 step %c1_i32  : i32 {
      %40 = arith.index_cast %arg18 : i32 to index
      %c0_27 = arith.constant 0 : index
      %c0_28 = arith.constant 0 : index
      %41 = vector.load %arg1[%40, %c0_27, %c0_28] : memref<8x25x576xbf16, #tpu.memory_space<vmem>>, vector<1x25x576xbf16>
      %42 = vector.shape_cast %41 : vector<1x25x576xbf16> to vector<25x576xbf16>
      %c0_29 = arith.constant 0 : index
      %c0_30 = arith.constant 0 : index
      %43 = vector.load %arg2[%c0_29, %c0_30] : memref<6x25xbf16, #tpu.memory_space<vmem>>, vector<6x25xbf16>
      %cst_31 = arith.constant dense<0.000000e+00> : vector<6x576xf32>
      %44 = tpu.matmul %43, %42, %cst_31 {dimension_numbers = #tpu.dot_dimension_numbers<[1], [0], [0], [1], [0, 0, 1, 1], [], []>} : vector<6x25xbf16>, vector<25x576xbf16>, vector<6x576xf32> -> vector<6x576xf32>
      %c0_32 = arith.constant 0 : index
      %c0_33 = arith.constant 0 : index
      %45 = vector.load %arg3[%c0_32, %c0_33] : memref<6x1xf32, #tpu.memory_space<vmem>>, vector<6x1xf32>
      %46 = vector.broadcast %45 : vector<6x1xf32> to vector<6x576xf32>
      %47 = arith.addf %44, %46 : vector<6x576xf32>
      %cst_34 = arith.constant 0.000000e+00 : f32
      %48 = vector.broadcast %cst_34 : f32 to vector<6x576xf32>
      %49 = arith.maximumf %47, %48 : vector<6x576xf32>
      %50 = arith.truncf %49 : vector<6x576xf32> to vector<6x576xbf16>
      %c0_35 = arith.constant 0 : index
      %c0_36 = arith.constant 0 : index
      %51 = vector.load %arg4[%c0_35, %c0_36] : memref<576x576xbf16, #tpu.memory_space<vmem>>, vector<576x576xbf16>
      %cst_37 = arith.constant dense<0.000000e+00> : vector<6x576xf32>
      %52 = tpu.matmul %50, %51, %cst_37 {dimension_numbers = #tpu.dot_dimension_numbers<[1], [0], [0], [1], [0, 0, 1, 1], [], []>} : vector<6x576xbf16>, vector<576x576xbf16>, vector<6x576xf32> -> vector<6x576xf32>
      %53 = vector.extract_strided_slice %52 {offsets = [0, 0], sizes = [6, 144], strides = [1, 1]} : vector<6x576xf32> to vector<6x144xf32>
      %54 = vector.extract_strided_slice %52 {offsets = [0, 144], sizes = [6, 144], strides = [1, 1]} : vector<6x576xf32> to vector<6x144xf32>
      %55 = arith.maximumf %53, %54 : vector<6x144xf32>
      %56 = vector.extract_strided_slice %52 {offsets = [0, 288], sizes = [6, 144], strides = [1, 1]} : vector<6x576xf32> to vector<6x144xf32>
      %57 = vector.extract_strided_slice %52 {offsets = [0, 432], sizes = [6, 144], strides = [1, 1]} : vector<6x576xf32> to vector<6x144xf32>
      %58 = arith.maximumf %56, %57 : vector<6x144xf32>
      %59 = arith.maximumf %55, %58 : vector<6x144xf32>
      %60 = arith.truncf %59 : vector<6x144xf32> to vector<6x144xbf16>
      %c0_38 = arith.constant 0 : index
      %c0_39 = arith.constant 0 : index
      %c0_40 = arith.constant 0 : index
      %61 = vector.load %arg5[%c0_38, %c0_39, %c0_40] : memref<25x144x64xbf16, #tpu.memory_space<vmem>>, vector<1x144x64xbf16>
      %62 = vector.shape_cast %61 : vector<1x144x64xbf16> to vector<144x64xbf16>
      %cst_41 = arith.constant dense<0.000000e+00> : vector<6x64xf32>
      %63 = tpu.matmul %60, %62, %cst_41 {dimension_numbers = #tpu.dot_dimension_numbers<[1], [0], [0], [1], [0, 0, 1, 1], [], []>} : vector<6x144xbf16>, vector<144x64xbf16>, vector<6x64xf32> -> vector<6x64xf32>
      %c0_42 = arith.constant 0 : index
      %c0_43 = arith.constant 0 : index
      %64 = vector.load %arg16[%c0_42, %c0_43] : memref<200x64xf32, #tpu.memory_space<vmem>>, vector<6x64xf32>
      tpu.vector_store %arg16[%c0_42, %c0_43], %63 {strides = array<i32>} : memref<200x64xf32, #tpu.memory_space<vmem>>, vector<6x64xf32>,
      %c1 = arith.constant 1 : index
      %c0_44 = arith.constant 0 : index
      %c0_45 = arith.constant 0 : index
      %65 = vector.load %arg5[%c1, %c0_44, %c0_45] : memref<25x144x64xbf16, #tpu.memory_space<vmem>>, vector<1x144x64xbf16>
      %66 = vector.shape_cast %65 : vector<1x144x64xbf16> to vector<144x64xbf16>
      %cst_46 = arith.constant dense<0.000000e+00> : vector<6x64xf32>
      %67 = tpu.matmul %60, %66, %cst_46 {dimension_numbers = #tpu.dot_dimension_numbers<[1], [0], [0], [1], [0, 0, 1, 1], [], []>} : vector<6x144xbf16>, vector<144x64xbf16>, vector<6x64xf32> -> vector<6x64xf32>
      %c8 = arith.constant 8 : index
      %c0_47 = arith.constant 0 : index
      %68 = vector.load %arg16[%c8, %c0_47] : memref<200x64xf32, #tpu.memory_space<vmem>>, vector<6x64xf32>
      tpu.vector_store %arg16[%c8, %c0_47], %67 {strides = array<i32>} : memref<200x64xf32, #tpu.memory_space<vmem>>, vector<6x64xf32>,
      %c2 = arith.constant 2 : index
      %c0_48 = arith.constant 0 : index
      %c0_49 = arith.constant 0 : index
      %69 = vector.load %arg5[%c2, %c0_48, %c0_49] : memref<25x144x64xbf16, #tpu.memory_space<vmem>>, vector<1x144x64xbf16>
      %70 = vector.shape_cast %69 : vector<1x144x64xbf16> to vector<144x64xbf16>
      %cst_50 = arith.constant dense<0.000000e+00> : vector<6x64xf32>
      %71 = tpu.matmul %60, %70, %cst_50 {dimension_numbers = #tpu.dot_dimension_numbers<[1], [0], [0], [1], [0, 0, 1, 1], [], []>} : vector<6x144xbf16>, vector<144x64xbf16>, vector<6x64xf32> -> vector<6x64xf32>
      %c16 = arith.constant 16 : index
      %c0_51 = arith.constant 0 : index
      %72 = vector.load %arg16[%c16, %c0_51] : memref<200x64xf32, #tpu.memory_space<vmem>>, vector<6x64xf32>
      tpu.vector_store %arg16[%c16, %c0_51], %71 {strides = array<i32>} : memref<200x64xf32, #tpu.memory_space<vmem>>, vector<6x64xf32>,
      %c3 = arith.constant 3 : index
      %c0_52 = arith.constant 0 : index
      %c0_53 = arith.constant 0 : index
      %73 = vector.load %arg5[%c3, %c0_52, %c0_53] : memref<25x144x64xbf16, #tpu.memory_space<vmem>>, vector<1x144x64xbf16>
      %74 = vector.shape_cast %73 : vector<1x144x64xbf16> to vector<144x64xbf16>
      %cst_54 = arith.constant dense<0.000000e+00> : vector<6x64xf32>
      %75 = tpu.matmul %60, %74, %cst_54 {dimension_numbers = #tpu.dot_dimension_numbers<[1], [0], [0], [1], [0, 0, 1, 1], [], []>} : vector<6x144xbf16>, vector<144x64xbf16>, vector<6x64xf32> -> vector<6x64xf32>
      %c24 = arith.constant 24 : index
      %c0_55 = arith.constant 0 : index
      %76 = vector.load %arg16[%c24, %c0_55] : memref<200x64xf32, #tpu.memory_space<vmem>>, vector<6x64xf32>
      tpu.vector_store %arg16[%c24, %c0_55], %75 {strides = array<i32>} : memref<200x64xf32, #tpu.memory_space<vmem>>, vector<6x64xf32>,
      %c4 = arith.constant 4 : index
      %c0_56 = arith.constant 0 : index
      %c0_57 = arith.constant 0 : index
      %77 = vector.load %arg5[%c4, %c0_56, %c0_57] : memref<25x144x64xbf16, #tpu.memory_space<vmem>>, vector<1x144x64xbf16>
      %78 = vector.shape_cast %77 : vector<1x144x64xbf16> to vector<144x64xbf16>
      %cst_58 = arith.constant dense<0.000000e+00> : vector<6x64xf32>
      %79 = tpu.matmul %60, %78, %cst_58 {dimension_numbers = #tpu.dot_dimension_numbers<[1], [0], [0], [1], [0, 0, 1, 1], [], []>} : vector<6x144xbf16>, vector<144x64xbf16>, vector<6x64xf32> -> vector<6x64xf32>
      %c32 = arith.constant 32 : index
      %c0_59 = arith.constant 0 : index
      %80 = vector.load %arg16[%c32, %c0_59] : memref<200x64xf32, #tpu.memory_space<vmem>>, vector<6x64xf32>
      tpu.vector_store %arg16[%c32, %c0_59], %79 {strides = array<i32>} : memref<200x64xf32, #tpu.memory_space<vmem>>, vector<6x64xf32>,
      %c5 = arith.constant 5 : index
      %c0_60 = arith.constant 0 : index
      %c0_61 = arith.constant 0 : index
      %81 = vector.load %arg5[%c5, %c0_60, %c0_61] : memref<25x144x64xbf16, #tpu.memory_space<vmem>>, vector<1x144x64xbf16>
      %82 = vector.shape_cast %81 : vector<1x144x64xbf16> to vector<144x64xbf16>
      %cst_62 = arith.constant dense<0.000000e+00> : vector<6x64xf32>
      %83 = tpu.matmul %60, %82, %cst_62 {dimension_numbers = #tpu.dot_dimension_numbers<[1], [0], [0], [1], [0, 0, 1, 1], [], []>} : vector<6x144xbf16>, vector<144x64xbf16>, vector<6x64xf32> -> vector<6x64xf32>
      %c40 = arith.constant 40 : index
      %c0_63 = arith.constant 0 : index
      %84 = vector.load %arg16[%c40, %c0_63] : memref<200x64xf32, #tpu.memory_space<vmem>>, vector<6x64xf32>
      tpu.vector_store %arg16[%c40, %c0_63], %83 {strides = array<i32>} : memref<200x64xf32, #tpu.memory_space<vmem>>, vector<6x64xf32>,
      %c6 = arith.constant 6 : index
      %c0_64 = arith.constant 0 : index
      %c0_65 = arith.constant 0 : index
      %85 = vector.load %arg5[%c6, %c0_64, %c0_65] : memref<25x144x64xbf16, #tpu.memory_space<vmem>>, vector<1x144x64xbf16>
      %86 = vector.shape_cast %85 : vector<1x144x64xbf16> to vector<144x64xbf16>
      %cst_66 = arith.constant dense<0.000000e+00> : vector<6x64xf32>
      %87 = tpu.matmul %60, %86, %cst_66 {dimension_numbers = #tpu.dot_dimension_numbers<[1], [0], [0], [1], [0, 0, 1, 1], [], []>} : vector<6x144xbf16>, vector<144x64xbf16>, vector<6x64xf32> -> vector<6x64xf32>
      %c48 = arith.constant 48 : index
      %c0_67 = arith.constant 0 : index
      %88 = vector.load %arg16[%c48, %c0_67] : memref<200x64xf32, #tpu.memory_space<vmem>>, vector<6x64xf32>
      tpu.vector_store %arg16[%c48, %c0_67], %87 {strides = array<i32>} : memref<200x64xf32, #tpu.memory_space<vmem>>, vector<6x64xf32>,
      %c7 = arith.constant 7 : index
      %c0_68 = arith.constant 0 : index
      %c0_69 = arith.constant 0 : index
      %89 = vector.load %arg5[%c7, %c0_68, %c0_69] : memref<25x144x64xbf16, #tpu.memory_space<vmem>>, vector<1x144x64xbf16>
      %90 = vector.shape_cast %89 : vector<1x144x64xbf16> to vector<144x64xbf16>
      %cst_70 = arith.constant dense<0.000000e+00> : vector<6x64xf32>
      %91 = tpu.matmul %60, %90, %cst_70 {dimension_numbers = #tpu.dot_dimension_numbers<[1], [0], [0], [1], [0, 0, 1, 1], [], []>} : vector<6x144xbf16>, vector<144x64xbf16>, vector<6x64xf32> -> vector<6x64xf32>
      %c56 = arith.constant 56 : index
      %c0_71 = arith.constant 0 : index
      %92 = vector.load %arg16[%c56, %c0_71] : memref<200x64xf32, #tpu.memory_space<vmem>>, vector<6x64xf32>
      tpu.vector_store %arg16[%c56, %c0_71], %91 {strides = array<i32>} : memref<200x64xf32, #tpu.memory_space<vmem>>, vector<6x64xf32>,
      %c8_72 = arith.constant 8 : index
      %c0_73 = arith.constant 0 : index
      %c0_74 = arith.constant 0 : index
      %93 = vector.load %arg5[%c8_72, %c0_73, %c0_74] : memref<25x144x64xbf16, #tpu.memory_space<vmem>>, vector<1x144x64xbf16>
      %94 = vector.shape_cast %93 : vector<1x144x64xbf16> to vector<144x64xbf16>
      %cst_75 = arith.constant dense<0.000000e+00> : vector<6x64xf32>
      %95 = tpu.matmul %60, %94, %cst_75 {dimension_numbers = #tpu.dot_dimension_numbers<[1], [0], [0], [1], [0, 0, 1, 1], [], []>} : vector<6x144xbf16>, vector<144x64xbf16>, vector<6x64xf32> -> vector<6x64xf32>
      %c64 = arith.constant 64 : index
      %c0_76 = arith.constant 0 : index
      %96 = vector.load %arg16[%c64, %c0_76] : memref<200x64xf32, #tpu.memory_space<vmem>>, vector<6x64xf32>
      tpu.vector_store %arg16[%c64, %c0_76], %95 {strides = array<i32>} : memref<200x64xf32, #tpu.memory_space<vmem>>, vector<6x64xf32>,
      %c9 = arith.constant 9 : index
      %c0_77 = arith.constant 0 : index
      %c0_78 = arith.constant 0 : index
      %97 = vector.load %arg5[%c9, %c0_77, %c0_78] : memref<25x144x64xbf16, #tpu.memory_space<vmem>>, vector<1x144x64xbf16>
      %98 = vector.shape_cast %97 : vector<1x144x64xbf16> to vector<144x64xbf16>
      %cst_79 = arith.constant dense<0.000000e+00> : vector<6x64xf32>
      %99 = tpu.matmul %60, %98, %cst_79 {dimension_numbers = #tpu.dot_dimension_numbers<[1], [0], [0], [1], [0, 0, 1, 1], [], []>} : vector<6x144xbf16>, vector<144x64xbf16>, vector<6x64xf32> -> vector<6x64xf32>
      %c72 = arith.constant 72 : index
      %c0_80 = arith.constant 0 : index
      %100 = vector.load %arg16[%c72, %c0_80] : memref<200x64xf32, #tpu.memory_space<vmem>>, vector<6x64xf32>
      tpu.vector_store %arg16[%c72, %c0_80], %99 {strides = array<i32>} : memref<200x64xf32, #tpu.memory_space<vmem>>, vector<6x64xf32>,
      %c10 = arith.constant 10 : index
      %c0_81 = arith.constant 0 : index
      %c0_82 = arith.constant 0 : index
      %101 = vector.load %arg5[%c10, %c0_81, %c0_82] : memref<25x144x64xbf16, #tpu.memory_space<vmem>>, vector<1x144x64xbf16>
      %102 = vector.shape_cast %101 : vector<1x144x64xbf16> to vector<144x64xbf16>
      %cst_83 = arith.constant dense<0.000000e+00> : vector<6x64xf32>
      %103 = tpu.matmul %60, %102, %cst_83 {dimension_numbers = #tpu.dot_dimension_numbers<[1], [0], [0], [1], [0, 0, 1, 1], [], []>} : vector<6x144xbf16>, vector<144x64xbf16>, vector<6x64xf32> -> vector<6x64xf32>
      %c80 = arith.constant 80 : index
      %c0_84 = arith.constant 0 : index
      %104 = vector.load %arg16[%c80, %c0_84] : memref<200x64xf32, #tpu.memory_space<vmem>>, vector<6x64xf32>
      tpu.vector_store %arg16[%c80, %c0_84], %103 {strides = array<i32>} : memref<200x64xf32, #tpu.memory_space<vmem>>, vector<6x64xf32>,
      %c11 = arith.constant 11 : index
      %c0_85 = arith.constant 0 : index
      %c0_86 = arith.constant 0 : index
      %105 = vector.load %arg5[%c11, %c0_85, %c0_86] : memref<25x144x64xbf16, #tpu.memory_space<vmem>>, vector<1x144x64xbf16>
      %106 = vector.shape_cast %105 : vector<1x144x64xbf16> to vector<144x64xbf16>
      %cst_87 = arith.constant dense<0.000000e+00> : vector<6x64xf32>
      %107 = tpu.matmul %60, %106, %cst_87 {dimension_numbers = #tpu.dot_dimension_numbers<[1], [0], [0], [1], [0, 0, 1, 1], [], []>} : vector<6x144xbf16>, vector<144x64xbf16>, vector<6x64xf32> -> vector<6x64xf32>
      %c88 = arith.constant 88 : index
      %c0_88 = arith.constant 0 : index
      %108 = vector.load %arg16[%c88, %c0_88] : memref<200x64xf32, #tpu.memory_space<vmem>>, vector<6x64xf32>
      tpu.vector_store %arg16[%c88, %c0_88], %107 {strides = array<i32>} : memref<200x64xf32, #tpu.memory_space<vmem>>, vector<6x64xf32>,
      %c12 = arith.constant 12 : index
      %c0_89 = arith.constant 0 : index
      %c0_90 = arith.constant 0 : index
      %109 = vector.load %arg5[%c12, %c0_89, %c0_90] : memref<25x144x64xbf16, #tpu.memory_space<vmem>>, vector<1x144x64xbf16>
      %110 = vector.shape_cast %109 : vector<1x144x64xbf16> to vector<144x64xbf16>
      %cst_91 = arith.constant dense<0.000000e+00> : vector<6x64xf32>
      %111 = tpu.matmul %60, %110, %cst_91 {dimension_numbers = #tpu.dot_dimension_numbers<[1], [0], [0], [1], [0, 0, 1, 1], [], []>} : vector<6x144xbf16>, vector<144x64xbf16>, vector<6x64xf32> -> vector<6x64xf32>
      %c96 = arith.constant 96 : index
      %c0_92 = arith.constant 0 : index
      %112 = vector.load %arg16[%c96, %c0_92] : memref<200x64xf32, #tpu.memory_space<vmem>>, vector<6x64xf32>
      tpu.vector_store %arg16[%c96, %c0_92], %111 {strides = array<i32>} : memref<200x64xf32, #tpu.memory_space<vmem>>, vector<6x64xf32>,
      %c13 = arith.constant 13 : index
      %c0_93 = arith.constant 0 : index
      %c0_94 = arith.constant 0 : index
      %113 = vector.load %arg5[%c13, %c0_93, %c0_94] : memref<25x144x64xbf16, #tpu.memory_space<vmem>>, vector<1x144x64xbf16>
      %114 = vector.shape_cast %113 : vector<1x144x64xbf16> to vector<144x64xbf16>
      %cst_95 = arith.constant dense<0.000000e+00> : vector<6x64xf32>
      %115 = tpu.matmul %60, %114, %cst_95 {dimension_numbers = #tpu.dot_dimension_numbers<[1], [0], [0], [1], [0, 0, 1, 1], [], []>} : vector<6x144xbf16>, vector<144x64xbf16>, vector<6x64xf32> -> vector<6x64xf32>
      %c104 = arith.constant 104 : index
      %c0_96 = arith.constant 0 : index
      %116 = vector.load %arg16[%c104, %c0_96] : memref<200x64xf32, #tpu.memory_space<vmem>>, vector<6x64xf32>
      tpu.vector_store %arg16[%c104, %c0_96], %115 {strides = array<i32>} : memref<200x64xf32, #tpu.memory_space<vmem>>, vector<6x64xf32>,
      %c14 = arith.constant 14 : index
      %c0_97 = arith.constant 0 : index
      %c0_98 = arith.constant 0 : index
      %117 = vector.load %arg5[%c14, %c0_97, %c0_98] : memref<25x144x64xbf16, #tpu.memory_space<vmem>>, vector<1x144x64xbf16>
      %118 = vector.shape_cast %117 : vector<1x144x64xbf16> to vector<144x64xbf16>
      %cst_99 = arith.constant dense<0.000000e+00> : vector<6x64xf32>
      %119 = tpu.matmul %60, %118, %cst_99 {dimension_numbers = #tpu.dot_dimension_numbers<[1], [0], [0], [1], [0, 0, 1, 1], [], []>} : vector<6x144xbf16>, vector<144x64xbf16>, vector<6x64xf32> -> vector<6x64xf32>
      %c112 = arith.constant 112 : index
      %c0_100 = arith.constant 0 : index
      %120 = vector.load %arg16[%c112, %c0_100] : memref<200x64xf32, #tpu.memory_space<vmem>>, vector<6x64xf32>
      tpu.vector_store %arg16[%c112, %c0_100], %119 {strides = array<i32>} : memref<200x64xf32, #tpu.memory_space<vmem>>, vector<6x64xf32>,
      %c15 = arith.constant 15 : index
      %c0_101 = arith.constant 0 : index
      %c0_102 = arith.constant 0 : index
      %121 = vector.load %arg5[%c15, %c0_101, %c0_102] : memref<25x144x64xbf16, #tpu.memory_space<vmem>>, vector<1x144x64xbf16>
      %122 = vector.shape_cast %121 : vector<1x144x64xbf16> to vector<144x64xbf16>
      %cst_103 = arith.constant dense<0.000000e+00> : vector<6x64xf32>
      %123 = tpu.matmul %60, %122, %cst_103 {dimension_numbers = #tpu.dot_dimension_numbers<[1], [0], [0], [1], [0, 0, 1, 1], [], []>} : vector<6x144xbf16>, vector<144x64xbf16>, vector<6x64xf32> -> vector<6x64xf32>
      %c120 = arith.constant 120 : index
      %c0_104 = arith.constant 0 : index
      %124 = vector.load %arg16[%c120, %c0_104] : memref<200x64xf32, #tpu.memory_space<vmem>>, vector<6x64xf32>
      tpu.vector_store %arg16[%c120, %c0_104], %123 {strides = array<i32>} : memref<200x64xf32, #tpu.memory_space<vmem>>, vector<6x64xf32>,
      %c16_105 = arith.constant 16 : index
      %c0_106 = arith.constant 0 : index
      %c0_107 = arith.constant 0 : index
      %125 = vector.load %arg5[%c16_105, %c0_106, %c0_107] : memref<25x144x64xbf16, #tpu.memory_space<vmem>>, vector<1x144x64xbf16>
      %126 = vector.shape_cast %125 : vector<1x144x64xbf16> to vector<144x64xbf16>
      %cst_108 = arith.constant dense<0.000000e+00> : vector<6x64xf32>
      %127 = tpu.matmul %60, %126, %cst_108 {dimension_numbers = #tpu.dot_dimension_numbers<[1], [0], [0], [1], [0, 0, 1, 1], [], []>} : vector<6x144xbf16>, vector<144x64xbf16>, vector<6x64xf32> -> vector<6x64xf32>
      %c128 = arith.constant 128 : index
      %c0_109 = arith.constant 0 : index
      %128 = vector.load %arg16[%c128, %c0_109] : memref<200x64xf32, #tpu.memory_space<vmem>>, vector<6x64xf32>
      tpu.vector_store %arg16[%c128, %c0_109], %127 {strides = array<i32>} : memref<200x64xf32, #tpu.memory_space<vmem>>, vector<6x64xf32>,
      %c17 = arith.constant 17 : index
      %c0_110 = arith.constant 0 : index
      %c0_111 = arith.constant 0 : index
      %129 = vector.load %arg5[%c17, %c0_110, %c0_111] : memref<25x144x64xbf16, #tpu.memory_space<vmem>>, vector<1x144x64xbf16>
      %130 = vector.shape_cast %129 : vector<1x144x64xbf16> to vector<144x64xbf16>
      %cst_112 = arith.constant dense<0.000000e+00> : vector<6x64xf32>
      %131 = tpu.matmul %60, %130, %cst_112 {dimension_numbers = #tpu.dot_dimension_numbers<[1], [0], [0], [1], [0, 0, 1, 1], [], []>} : vector<6x144xbf16>, vector<144x64xbf16>, vector<6x64xf32> -> vector<6x64xf32>
      %c136 = arith.constant 136 : index
      %c0_113 = arith.constant 0 : index
      %132 = vector.load %arg16[%c136, %c0_113] : memref<200x64xf32, #tpu.memory_space<vmem>>, vector<6x64xf32>
      tpu.vector_store %arg16[%c136, %c0_113], %131 {strides = array<i32>} : memref<200x64xf32, #tpu.memory_space<vmem>>, vector<6x64xf32>,
      %c18 = arith.constant 18 : index
      %c0_114 = arith.constant 0 : index
      %c0_115 = arith.constant 0 : index
      %133 = vector.load %arg5[%c18, %c0_114, %c0_115] : memref<25x144x64xbf16, #tpu.memory_space<vmem>>, vector<1x144x64xbf16>
      %134 = vector.shape_cast %133 : vector<1x144x64xbf16> to vector<144x64xbf16>
      %cst_116 = arith.constant dense<0.000000e+00> : vector<6x64xf32>
      %135 = tpu.matmul %60, %134, %cst_116 {dimension_numbers = #tpu.dot_dimension_numbers<[1], [0], [0], [1], [0, 0, 1, 1], [], []>} : vector<6x144xbf16>, vector<144x64xbf16>, vector<6x64xf32> -> vector<6x64xf32>
      %c144 = arith.constant 144 : index
      %c0_117 = arith.constant 0 : index
      %136 = vector.load %arg16[%c144, %c0_117] : memref<200x64xf32, #tpu.memory_space<vmem>>, vector<6x64xf32>
      tpu.vector_store %arg16[%c144, %c0_117], %135 {strides = array<i32>} : memref<200x64xf32, #tpu.memory_space<vmem>>, vector<6x64xf32>,
      %c19 = arith.constant 19 : index
      %c0_118 = arith.constant 0 : index
      %c0_119 = arith.constant 0 : index
      %137 = vector.load %arg5[%c19, %c0_118, %c0_119] : memref<25x144x64xbf16, #tpu.memory_space<vmem>>, vector<1x144x64xbf16>
      %138 = vector.shape_cast %137 : vector<1x144x64xbf16> to vector<144x64xbf16>
      %cst_120 = arith.constant dense<0.000000e+00> : vector<6x64xf32>
      %139 = tpu.matmul %60, %138, %cst_120 {dimension_numbers = #tpu.dot_dimension_numbers<[1], [0], [0], [1], [0, 0, 1, 1], [], []>} : vector<6x144xbf16>, vector<144x64xbf16>, vector<6x64xf32> -> vector<6x64xf32>
      %c152 = arith.constant 152 : index
      %c0_121 = arith.constant 0 : index
      %140 = vector.load %arg16[%c152, %c0_121] : memref<200x64xf32, #tpu.memory_space<vmem>>, vector<6x64xf32>
      tpu.vector_store %arg16[%c152, %c0_121], %139 {strides = array<i32>} : memref<200x64xf32, #tpu.memory_space<vmem>>, vector<6x64xf32>,
      %c20 = arith.constant 20 : index
      %c0_122 = arith.constant 0 : index
      %c0_123 = arith.constant 0 : index
      %141 = vector.load %arg5[%c20, %c0_122, %c0_123] : memref<25x144x64xbf16, #tpu.memory_space<vmem>>, vector<1x144x64xbf16>
      %142 = vector.shape_cast %141 : vector<1x144x64xbf16> to vector<144x64xbf16>
      %cst_124 = arith.constant dense<0.000000e+00> : vector<6x64xf32>
      %143 = tpu.matmul %60, %142, %cst_124 {dimension_numbers = #tpu.dot_dimension_numbers<[1], [0], [0], [1], [0, 0, 1, 1], [], []>} : vector<6x144xbf16>, vector<144x64xbf16>, vector<6x64xf32> -> vector<6x64xf32>
      %c160 = arith.constant 160 : index
      %c0_125 = arith.constant 0 : index
      %144 = vector.load %arg16[%c160, %c0_125] : memref<200x64xf32, #tpu.memory_space<vmem>>, vector<6x64xf32>
      tpu.vector_store %arg16[%c160, %c0_125], %143 {strides = array<i32>} : memref<200x64xf32, #tpu.memory_space<vmem>>, vector<6x64xf32>,
      %c21 = arith.constant 21 : index
      %c0_126 = arith.constant 0 : index
      %c0_127 = arith.constant 0 : index
      %145 = vector.load %arg5[%c21, %c0_126, %c0_127] : memref<25x144x64xbf16, #tpu.memory_space<vmem>>, vector<1x144x64xbf16>
      %146 = vector.shape_cast %145 : vector<1x144x64xbf16> to vector<144x64xbf16>
      %cst_128 = arith.constant dense<0.000000e+00> : vector<6x64xf32>
      %147 = tpu.matmul %60, %146, %cst_128 {dimension_numbers = #tpu.dot_dimension_numbers<[1], [0], [0], [1], [0, 0, 1, 1], [], []>} : vector<6x144xbf16>, vector<144x64xbf16>, vector<6x64xf32> -> vector<6x64xf32>
      %c168 = arith.constant 168 : index
      %c0_129 = arith.constant 0 : index
      %148 = vector.load %arg16[%c168, %c0_129] : memref<200x64xf32, #tpu.memory_space<vmem>>, vector<6x64xf32>
      tpu.vector_store %arg16[%c168, %c0_129], %147 {strides = array<i32>} : memref<200x64xf32, #tpu.memory_space<vmem>>, vector<6x64xf32>,
      %c22 = arith.constant 22 : index
      %c0_130 = arith.constant 0 : index
      %c0_131 = arith.constant 0 : index
      %149 = vector.load %arg5[%c22, %c0_130, %c0_131] : memref<25x144x64xbf16, #tpu.memory_space<vmem>>, vector<1x144x64xbf16>
      %150 = vector.shape_cast %149 : vector<1x144x64xbf16> to vector<144x64xbf16>
      %cst_132 = arith.constant dense<0.000000e+00> : vector<6x64xf32>
      %151 = tpu.matmul %60, %150, %cst_132 {dimension_numbers = #tpu.dot_dimension_numbers<[1], [0], [0], [1], [0, 0, 1, 1], [], []>} : vector<6x144xbf16>, vector<144x64xbf16>, vector<6x64xf32> -> vector<6x64xf32>
      %c176 = arith.constant 176 : index
      %c0_133 = arith.constant 0 : index
      %152 = vector.load %arg16[%c176, %c0_133] : memref<200x64xf32, #tpu.memory_space<vmem>>, vector<6x64xf32>
      tpu.vector_store %arg16[%c176, %c0_133], %151 {strides = array<i32>} : memref<200x64xf32, #tpu.memory_space<vmem>>, vector<6x64xf32>,
      %c23 = arith.constant 23 : index
      %c0_134 = arith.constant 0 : index
      %c0_135 = arith.constant 0 : index
      %153 = vector.load %arg5[%c23, %c0_134, %c0_135] : memref<25x144x64xbf16, #tpu.memory_space<vmem>>, vector<1x144x64xbf16>
      %154 = vector.shape_cast %153 : vector<1x144x64xbf16> to vector<144x64xbf16>
      %cst_136 = arith.constant dense<0.000000e+00> : vector<6x64xf32>
      %155 = tpu.matmul %60, %154, %cst_136 {dimension_numbers = #tpu.dot_dimension_numbers<[1], [0], [0], [1], [0, 0, 1, 1], [], []>} : vector<6x144xbf16>, vector<144x64xbf16>, vector<6x64xf32> -> vector<6x64xf32>
      %c184 = arith.constant 184 : index
      %c0_137 = arith.constant 0 : index
      %156 = vector.load %arg16[%c184, %c0_137] : memref<200x64xf32, #tpu.memory_space<vmem>>, vector<6x64xf32>
      tpu.vector_store %arg16[%c184, %c0_137], %155 {strides = array<i32>} : memref<200x64xf32, #tpu.memory_space<vmem>>, vector<6x64xf32>,
      %c24_138 = arith.constant 24 : index
      %c0_139 = arith.constant 0 : index
      %c0_140 = arith.constant 0 : index
      %157 = vector.load %arg5[%c24_138, %c0_139, %c0_140] : memref<25x144x64xbf16, #tpu.memory_space<vmem>>, vector<1x144x64xbf16>
      %158 = vector.shape_cast %157 : vector<1x144x64xbf16> to vector<144x64xbf16>
      %cst_141 = arith.constant dense<0.000000e+00> : vector<6x64xf32>
      %159 = tpu.matmul %60, %158, %cst_141 {dimension_numbers = #tpu.dot_dimension_numbers<[1], [0], [0], [1], [0, 0, 1, 1], [], []>} : vector<6x144xbf16>, vector<144x64xbf16>, vector<6x64xf32> -> vector<6x64xf32>
      %c192 = arith.constant 192 : index
      %c0_142 = arith.constant 0 : index
      %160 = vector.load %arg16[%c192, %c0_142] : memref<200x64xf32, #tpu.memory_space<vmem>>, vector<6x64xf32>
      tpu.vector_store %arg16[%c192, %c0_142], %159 {strides = array<i32>} : memref<200x64xf32, #tpu.memory_space<vmem>>, vector<6x64xf32>,
      %c0_143 = arith.constant 0 : index
      %c0_144 = arith.constant 0 : index
      %161 = vector.load %arg6[%c0_143, %c0_144] : memref<16x200xbf16, #tpu.memory_space<vmem>>, vector<16x200xbf16>
      %c0_145 = arith.constant 0 : index
      %c0_146 = arith.constant 0 : index
      %162 = vector.load %arg16[%c0_145, %c0_146] : memref<200x64xf32, #tpu.memory_space<vmem>>, vector<200x64xf32>
      %163 = arith.truncf %162 : vector<200x64xf32> to vector<200x64xbf16>
      %cst_147 = arith.constant dense<0.000000e+00> : vector<16x64xf32>
      %164 = tpu.matmul %161, %163, %cst_147 {dimension_numbers = #tpu.dot_dimension_numbers<[1], [0], [0], [1], [0, 0, 1, 1], [], []>} : vector<16x200xbf16>, vector<200x64xbf16>, vector<16x64xf32> -> vector<16x64xf32>
      %c0_148 = arith.constant 0 : index
      %c0_149 = arith.constant 0 : index
      %165 = vector.load %arg7[%c0_148, %c0_149] : memref<16x1xf32, #tpu.memory_space<vmem>>, vector<16x1xf32>
      %166 = vector.broadcast %165 : vector<16x1xf32> to vector<16x64xf32>
      %167 = arith.addf %164, %166 : vector<16x64xf32>
      %cst_150 = arith.constant 0.000000e+00 : f32
      %168 = vector.broadcast %cst_150 : f32 to vector<16x64xf32>
      %169 = arith.maximumf %167, %168 : vector<16x64xf32>
      %170 = arith.truncf %169 : vector<16x64xf32> to vector<16x64xbf16>
      %c0_151 = arith.constant 0 : index
      %c0_152 = arith.constant 0 : index
      %171 = vector.load %arg8[%c0_151, %c0_152] : memref<64x64xbf16, #tpu.memory_space<vmem>>, vector<64x64xbf16>
      %cst_153 = arith.constant dense<0.000000e+00> : vector<16x64xf32>
      %172 = tpu.matmul %170, %171, %cst_153 {dimension_numbers = #tpu.dot_dimension_numbers<[1], [0], [0], [1], [0, 0, 1, 1], [], []>} : vector<16x64xbf16>, vector<64x64xbf16>, vector<16x64xf32> -> vector<16x64xf32>
      %173 = vector.extract_strided_slice %172 {offsets = [0, 0], sizes = [16, 16], strides = [1, 1]} : vector<16x64xf32> to vector<16x16xf32>
      %174 = vector.extract_strided_slice %172 {offsets = [0, 16], sizes = [16, 16], strides = [1, 1]} : vector<16x64xf32> to vector<16x16xf32>
      %175 = arith.maximumf %173, %174 : vector<16x16xf32>
      %176 = vector.extract_strided_slice %172 {offsets = [0, 32], sizes = [16, 16], strides = [1, 1]} : vector<16x64xf32> to vector<16x16xf32>
      %177 = vector.extract_strided_slice %172 {offsets = [0, 48], sizes = [16, 16], strides = [1, 1]} : vector<16x64xf32> to vector<16x16xf32>
      %178 = arith.maximumf %176, %177 : vector<16x16xf32>
      %179 = arith.maximumf %175, %178 : vector<16x16xf32>
      %180 = arith.index_cast %arg18 : i32 to index
      %c0_154 = arith.constant 0 : index
      %c0_155 = arith.constant 0 : index
      %181 = vector.load %arg17[%180, %c0_154, %c0_155] : memref<8x16x16xf32, #tpu.memory_space<vmem>>, vector<1x16x16xf32>
      %182 = vector.shape_cast %181 : vector<1x16x16xf32> to vector<16x16xf32>
      %183 = vector.shape_cast %179 : vector<16x16xf32> to vector<1x16x16xf32>
      tpu.vector_store %arg17[%180, %c0_154, %c0_155], %183 {strides = array<i32>} : memref<8x16x16xf32, #tpu.memory_space<vmem>>, vector<1x16x16xf32>,
    }
    %c8_i32_1 = arith.constant 8 : i32
    %c0_2 = arith.constant 0 : index
    %c0_3 = arith.constant 0 : index
    %c0_4 = arith.constant 0 : index
    %3 = vector.load %arg17[%c0_2, %c0_3, %c0_4] : memref<8x16x16xf32, #tpu.memory_space<vmem>>, vector<8x16x16xf32>
    %4 = vector.shape_cast %3 : vector<8x16x16xf32> to vector<8x256xf32>
    %5 = arith.truncf %4 : vector<8x256xf32> to vector<8x256xbf16>
    %c0_5 = arith.constant 0 : index
    %c0_6 = arith.constant 0 : index
    %6 = vector.load %arg9[%c0_5, %c0_6] : memref<256x120xbf16, #tpu.memory_space<vmem>>, vector<256x120xbf16>
    %cst_7 = arith.constant dense<0.000000e+00> : vector<8x120xf32>
    %7 = tpu.matmul %5, %6, %cst_7 {dimension_numbers = #tpu.dot_dimension_numbers<[1], [0], [0], [1], [0, 0, 1, 1], [], []>} : vector<8x256xbf16>, vector<256x120xbf16>, vector<8x120xf32> -> vector<8x120xf32>
    %c0_8 = arith.constant 0 : index
    %c0_9 = arith.constant 0 : index
    %8 = vector.load %arg10[%c0_8, %c0_9] : memref<1x120xf32, #tpu.memory_space<vmem>>, vector<1x120xf32>
    %9 = vector.broadcast %8 : vector<1x120xf32> to vector<8x120xf32>
    %10 = arith.addf %7, %9 : vector<8x120xf32>
    %cst_10 = arith.constant 0.000000e+00 : f32
    %11 = vector.broadcast %cst_10 : f32 to vector<8x120xf32>
    %12 = arith.maximumf %10, %11 : vector<8x120xf32>
    %13 = arith.truncf %12 : vector<8x120xf32> to vector<8x120xbf16>
    %c0_11 = arith.constant 0 : index
    %c0_12 = arith.constant 0 : index
    %14 = vector.load %arg11[%c0_11, %c0_12] : memref<120x84xbf16, #tpu.memory_space<vmem>>, vector<120x84xbf16>
    %cst_13 = arith.constant dense<0.000000e+00> : vector<8x84xf32>
    %15 = tpu.matmul %13, %14, %cst_13 {dimension_numbers = #tpu.dot_dimension_numbers<[1], [0], [0], [1], [0, 0, 1, 1], [], []>} : vector<8x120xbf16>, vector<120x84xbf16>, vector<8x84xf32> -> vector<8x84xf32>
    %c0_14 = arith.constant 0 : index
    %c0_15 = arith.constant 0 : index
    %16 = vector.load %arg12[%c0_14, %c0_15] : memref<1x84xf32, #tpu.memory_space<vmem>>, vector<1x84xf32>
    %17 = vector.broadcast %16 : vector<1x84xf32> to vector<8x84xf32>
    %18 = arith.addf %15, %17 : vector<8x84xf32>
    %cst_16 = arith.constant 0.000000e+00 : f32
    %19 = vector.broadcast %cst_16 : f32 to vector<8x84xf32>
    %20 = arith.maximumf %18, %19 : vector<8x84xf32>
    %21 = arith.truncf %20 : vector<8x84xf32> to vector<8x84xbf16>
    %c0_17 = arith.constant 0 : index
    %c0_18 = arith.constant 0 : index
    %22 = vector.load %arg13[%c0_17, %c0_18] : memref<84x10xbf16, #tpu.memory_space<vmem>>, vector<84x10xbf16>
    %cst_19 = arith.constant dense<0.000000e+00> : vector<8x10xf32>
    %23 = tpu.matmul %21, %22, %cst_19 {dimension_numbers = #tpu.dot_dimension_numbers<[1], [0], [0], [1], [0, 0, 1, 1], [], []>} : vector<8x84xbf16>, vector<84x10xbf16>, vector<8x10xf32> -> vector<8x10xf32>
    %c0_20 = arith.constant 0 : index
    %c0_21 = arith.constant 0 : index
    %24 = vector.load %arg14[%c0_20, %c0_21] : memref<1x10xf32, #tpu.memory_space<vmem>>, vector<1x10xf32>
    %25 = vector.broadcast %24 : vector<1x10xf32> to vector<8x10xf32>
    %26 = arith.addf %23, %25 : vector<8x10xf32>
    %cst_22 = arith.constant 0.000000e+00 : f32
    %27 = vector.broadcast %cst_22 : f32 to vector<8x10xf32>
    %28 = arith.maximumf %26, %27 : vector<8x10xf32>
    %cst_23 = arith.constant dense<0xFF800000> : vector<8xf32>
    %29 = vector.multi_reduction <maximumf>, %28, %cst_23 [1] : vector<8x10xf32> to vector<8xf32>
    %30 = vector.shape_cast %29 : vector<8xf32> to vector<8x1xf32>
    %31 = vector.broadcast %30 : vector<8x1xf32> to vector<8x10xf32>
    %32 = arith.subf %28, %31 : vector<8x10xf32>
    %33 = math.exp %32 : vector<8x10xf32>
    %cst_24 = arith.constant dense<0.000000e+00> : vector<8xf32>
    %34 = vector.multi_reduction <add>, %33, %cst_24 [1] : vector<8x10xf32> to vector<8xf32>
    %35 = vector.shape_cast %34 : vector<8xf32> to vector<8x1xf32>
    %36 = math.log %35 : vector<8x1xf32>
    %37 = vector.broadcast %36 : vector<8x1xf32> to vector<8x10xf32>
    %38 = arith.subf %32, %37 : vector<8x10xf32>
    %c0_25 = arith.constant 0 : index
    %c0_26 = arith.constant 0 : index
    %39 = vector.load %arg15[%c0_25, %c0_26] : memref<8x10xf32, #tpu.memory_space<vmem>>, vector<8x10xf32>
    tpu.vector_store %arg15[%c0_25, %c0_26], %38 {strides = array<i32>} : memref<8x10xf32, #tpu.memory_space<vmem>>, vector<8x10xf32>,
    return
  }
  func.func @transform_0(%arg0: i32) -> (i32, i32, i32) {
    %c0_i32 = arith.constant 0 : i32
    %c0_i32_0 = arith.constant 0 : i32
    %c0_i32_1 = arith.constant 0 : i32
    return %arg0, %c0_i32, %c0_i32_0 : i32, i32, i32
  }
  func.func @transform_1(%arg0: i32) -> (i32, i32) {
    %c0_i32 = arith.constant 0 : i32
    %c0_i32_0 = arith.constant 0 : i32
    %c0_i32_1 = arith.constant 0 : i32
    return %c0_i32, %c0_i32_0 : i32, i32
  }
  func.func @transform_2(%arg0: i32) -> (i32, i32) {
    %c0_i32 = arith.constant 0 : i32
    %c0_i32_0 = arith.constant 0 : i32
    %c0_i32_1 = arith.constant 0 : i32
    return %c0_i32, %c0_i32_0 : i32, i32
  }
  func.func @transform_3(%arg0: i32) -> (i32, i32) {
    %c0_i32 = arith.constant 0 : i32
    %c0_i32_0 = arith.constant 0 : i32
    %c0_i32_1 = arith.constant 0 : i32
    return %c0_i32, %c0_i32_0 : i32, i32
  }
  func.func @transform_4(%arg0: i32) -> (i32, i32, i32) {
    %c0_i32 = arith.constant 0 : i32
    %c0_i32_0 = arith.constant 0 : i32
    %c0_i32_1 = arith.constant 0 : i32
    %c0_i32_2 = arith.constant 0 : i32
    return %c0_i32, %c0_i32_0, %c0_i32_1 : i32, i32, i32
  }
  func.func @transform_5(%arg0: i32) -> (i32, i32) {
    %c0_i32 = arith.constant 0 : i32
    %c0_i32_0 = arith.constant 0 : i32
    %c0_i32_1 = arith.constant 0 : i32
    return %c0_i32, %c0_i32_0 : i32, i32
  }
  func.func @transform_6(%arg0: i32) -> (i32, i32) {
    %c0_i32 = arith.constant 0 : i32
    %c0_i32_0 = arith.constant 0 : i32
    %c0_i32_1 = arith.constant 0 : i32
    return %c0_i32, %c0_i32_0 : i32, i32
  }
  func.func @transform_7(%arg0: i32) -> (i32, i32) {
    %c0_i32 = arith.constant 0 : i32
    %c0_i32_0 = arith.constant 0 : i32
    %c0_i32_1 = arith.constant 0 : i32
    return %c0_i32, %c0_i32_0 : i32, i32
  }
  func.func @transform_8(%arg0: i32) -> (i32, i32) {
    %c0_i32 = arith.constant 0 : i32
    %c0_i32_0 = arith.constant 0 : i32
    %c0_i32_1 = arith.constant 0 : i32
    return %c0_i32, %c0_i32_0 : i32, i32
  }
  func.func @transform_9(%arg0: i32) -> (i32, i32) {
    %c0_i32 = arith.constant 0 : i32
    %c0_i32_0 = arith.constant 0 : i32
    %c0_i32_1 = arith.constant 0 : i32
    return %c0_i32, %c0_i32_0 : i32, i32
  }
  func.func @transform_10(%arg0: i32) -> (i32, i32) {
    %c0_i32 = arith.constant 0 : i32
    %c0_i32_0 = arith.constant 0 : i32
    %c0_i32_1 = arith.constant 0 : i32
    return %c0_i32, %c0_i32_0 : i32, i32
  }
  func.func @transform_11(%arg0: i32) -> (i32, i32) {
    %c0_i32 = arith.constant 0 : i32
    %c0_i32_0 = arith.constant 0 : i32
    %c0_i32_1 = arith.constant 0 : i32
    return %c0_i32, %c0_i32_0 : i32, i32
  }
  func.func @transform_12(%arg0: i32) -> (i32, i32) {
    %c0_i32 = arith.constant 0 : i32
    %c0_i32_0 = arith.constant 0 : i32
    %c0_i32_1 = arith.constant 0 : i32
    return %c0_i32, %c0_i32_0 : i32, i32
  }
  func.func @transform_13(%arg0: i32) -> (i32, i32) {
    %c0_i32 = arith.constant 0 : i32
    %c0_i32_0 = arith.constant 0 : i32
    %c0_i32_1 = arith.constant 0 : i32
    return %c0_i32, %c0_i32_0 : i32, i32
  }
  func.func @transform_14(%arg0: i32) -> (i32, i32) {
    %c0_i32 = arith.constant 0 : i32
    %c0_i32_0 = arith.constant 0 : i32
    return %arg0, %c0_i32 : i32, i32
  }
}

</mosaic_0001>

<llo_original>
// kernel: net_forward.1
$region0: #{net_forward.1}
  #allocation0 [shape = 'u32[]', space=smem, size = 0x4, offset = 0x4, fixed_abs, tag = 'smem constant byte address 0x4 - core index']
  #allocation1 [shape = 'u32[144,128]{1,0:T(1,128)}', space=vmem, size = 0x12000, scoped, tag = 'internal scratch']
  #allocation2 [shape = 'f32[200,64]{1,0:T(8,128)}', space=vmem, size = 0x19000, scoped, tag = 'scratch operand']
  #allocation3 [shape = 'f32[8,16,16]{2,1,0:T(8,128)}', space=vmem, size = 0x10000, scoped, tag = 'scratch operand']
  %s0 = inlined_call_operand.vmem [shape: bf16[8,25,576], index: 0, kind: input, shape index: {}]
  %s1 = inlined_call_operand.vmem [shape: bf16[6,25], index: 1, kind: input, shape index: {}]
  %s2 = inlined_call_operand.vmem [shape: f32[6,1], index: 2, kind: input, shape index: {}]
  %s3 = inlined_call_operand.vmem [shape: bf16[576,576], index: 3, kind: input, shape index: {}]
  %s4 = inlined_call_operand.vmem [shape: bf16[25,144,64], index: 4, kind: input, shape index: {}]
  %s5 = inlined_call_operand.vmem [shape: bf16[16,200], index: 5, kind: input, shape index: {}]
  %s6 = inlined_call_operand.vmem [shape: f32[16,1], index: 6, kind: input, shape index: {}]
  %s7 = inlined_call_operand.vmem [shape: bf16[64,64], index: 7, kind: input, shape index: {}]
  %s8 = inlined_call_operand.vmem [shape: bf16[256,120], index: 8, kind: input, shape index: {}]
  %s9 = inlined_call_operand.vmem [shape: f32[1,120], index: 9, kind: input, shape index: {}]
  %s10 = inlined_call_operand.vmem [shape: bf16[120,84], index: 10, kind: input, shape index: {}]
  %s11 = inlined_call_operand.vmem [shape: f32[1,84], index: 11, kind: input, shape index: {}]
  %s12 = inlined_call_operand.vmem [shape: bf16[84,10], index: 12, kind: input, shape index: {}]
  %s13 = inlined_call_operand.vmem [shape: f32[1,10], index: 13, kind: input, shape index: {}]
  %s14 = inlined_call_operand.vmem [shape: f32[8,10], index: 14, kind: output, shape index: {}]
  %s15 = sld [smem:[#allocation0]]
  $region73: #{net_forward.1} parent=0
    _
  %s17 = ssub.s32 1, %s15
  %s18 = scalar_select 0, %s17, %s15
  // Predicated region
  $region2: #{net_forward.1} parent=0 // pred_check
    _
  $region3: #{net_forward.1} parent=0 // pred_check_branch
    %20 = sbr.rel (0) target = $region5
  $region4: #{net_forward.1} parent=0 // pred_region
    _
  $region5: #{net_forward.1} parent=0 // pred_fallthru
    _
  // Predicated region
  $region6: #{net_forward.1} parent=0 // pred_check
    _
  $region7: #{net_forward.1} parent=0 // pred_check_branch
    %22 = sbr.rel (0) target = $region9
  $region8: #{net_forward.1} parent=0 // pred_region
    _
  $region9: #{net_forward.1} parent=0 // pred_fallthru
    _
  // Predicated region
  $region10: #{net_forward.1} parent=0 // pred_check
    _
  $region11: #{net_forward.1} parent=0 // pred_check_branch
    %24 = sbr.rel (0) target = $region13
  $region12: #{net_forward.1} parent=0 // pred_region
    _
  $region13: #{net_forward.1} parent=0 // pred_fallthru
    _
  // Predicated region
  $region14: #{net_forward.1} parent=0 // pred_check
    _
  $region15: #{net_forward.1} parent=0 // pred_check_branch
    %26 = sbr.rel (0) target = $region17
  $region16: #{net_forward.1} parent=0 // pred_region
    _
  $region17: #{net_forward.1} parent=0 // pred_fallthru
    _
  // Predicated region
  $region18: #{net_forward.1} parent=0 // pred_check
    _
  $region19: #{net_forward.1} parent=0 // pred_check_branch
    %28 = sbr.rel (0) target = $region21
  $region20: #{net_forward.1} parent=0 // pred_region
    _
  $region21: #{net_forward.1} parent=0 // pred_fallthru
    _
  // Predicated region
  $region22: #{net_forward.1} parent=0 // pred_check
    _
  $region23: #{net_forward.1} parent=0 // pred_check_branch
    %30 = sbr.rel (0) target = $region25
  $region24: #{net_forward.1} parent=0 // pred_region
    _
  $region25: #{net_forward.1} parent=0 // pred_fallthru
    _
  // Predicated region
  $region26: #{net_forward.1} parent=0 // pred_check
    _
  $region27: #{net_forward.1} parent=0 // pred_check_branch
    %32 = sbr.rel (0) target = $region29
  $region28: #{net_forward.1} parent=0 // pred_region
    _
  $region29: #{net_forward.1} parent=0 // pred_fallthru
    _
  // Predicated region
  $region30: #{net_forward.1} parent=0 // pred_check
    _
  $region31: #{net_forward.1} parent=0 // pred_check_branch
    %34 = sbr.rel (0) target = $region33
  $region32: #{net_forward.1} parent=0 // pred_region
    _
  $region33: #{net_forward.1} parent=0 // pred_fallthru
    _
  // Predicated region
  $region34: #{net_forward.1} parent=0 // pred_check
    _
  $region35: #{net_forward.1} parent=0 // pred_check_branch
    %36 = sbr.rel (0) target = $region37
  $region36: #{net_forward.1} parent=0 // pred_region
    _
  $region37: #{net_forward.1} parent=0 // pred_fallthru
    _
  // Predicated region
  $region38: #{net_forward.1} parent=0 // pred_check
    _
  $region39: #{net_forward.1} parent=0 // pred_check_branch
    %38 = sbr.rel (0) target = $region41
  $region40: #{net_forward.1} parent=0 // pred_region
    _
  $region41: #{net_forward.1} parent=0 // pred_fallthru
    _
  // Predicated region
  $region42: #{net_forward.1} parent=0 // pred_check
    _
  $region43: #{net_forward.1} parent=0 // pred_check_branch
    %40 = sbr.rel (0) target = $region45
  $region44: #{net_forward.1} parent=0 // pred_region
    _
  $region45: #{net_forward.1} parent=0 // pred_fallthru
    _
  // Predicated region
  $region46: #{net_forward.1} parent=0 // pred_check
    _
  $region47: #{net_forward.1} parent=0 // pred_check_branch
    %42 = sbr.rel (0) target = $region49
  $region48: #{net_forward.1} parent=0 // pred_region
    _
  $region49: #{net_forward.1} parent=0 // pred_fallthru
    _
  // Predicated region
  $region50: #{net_forward.1} parent=0 // pred_check
    _
  $region51: #{net_forward.1} parent=0 // pred_check_branch
    %44 = sbr.rel (0) target = $region53
  $region52: #{net_forward.1} parent=0 // pred_region
    _
  $region53: #{net_forward.1} parent=0 // pred_fallthru
    _
  // Predicated region
  $region54: #{net_forward.1} parent=0 // pred_check
    _
  $region55: #{net_forward.1} parent=0 // pred_check_branch
    %46 = sbr.rel (0) target = $region57
  $region56: #{net_forward.1} parent=0 // pred_region
    _
  $region57: #{net_forward.1} parent=0 // pred_fallthru
    _
  %vm48 = vcmask 523264
  %49 = vst.msk [vmem:[#allocation2] sm:$0xff] %vm48, 0.0
  %50 = vst.msk [vmem:[#allocation2 + $0x8] sm:$0xff] %vm48, 0.0
  %51 = vst.msk [vmem:[#allocation2 + $0x10] sm:$0xff] %vm48, 0.0
  %52 = vst.msk [vmem:[#allocation2 + $0x18] sm:$0xff] %vm48, 0.0
  %53 = vst.msk [vmem:[#allocation2 + $0x20] sm:$0xff] %vm48, 0.0
  %54 = vst.msk [vmem:[#allocation2 + $0x28] sm:$0xff] %vm48, 0.0
  %55 = vst.msk [vmem:[#allocation2 + $0x30] sm:$0xff] %vm48, 0.0
  %56 = vst.msk [vmem:[#allocation2 + $0x38] sm:$0xff] %vm48, 0.0
  %57 = vst.msk [vmem:[#allocation2 + $0x40] sm:$0xff] %vm48, 0.0
  %58 = vst.msk [vmem:[#allocation2 + $0x48] sm:$0xff] %vm48, 0.0
  %59 = vst.msk [vmem:[#allocation2 + $0x50] sm:$0xff] %vm48, 0.0
  %60 = vst.msk [vmem:[#allocation2 + $0x58] sm:$0xff] %vm48, 0.0
  %61 = vst.msk [vmem:[#allocation2 + $0x60] sm:$0xff] %vm48, 0.0
  %62 = vst.msk [vmem:[#allocation2 + $0x68] sm:$0xff] %vm48, 0.0
  %63 = vst.msk [vmem:[#allocation2 + $0x70] sm:$0xff] %vm48, 0.0
  %64 = vst.msk [vmem:[#allocation2 + $0x78] sm:$0xff] %vm48, 0.0
  %65 = vst.msk [vmem:[#allocation2 + $0x80] sm:$0xff] %vm48, 0.0
  %66 = vst.msk [vmem:[#allocation2 + $0x88] sm:$0xff] %vm48, 0.0
  %67 = vst.msk [vmem:[#allocation2 + $0x90] sm:$0xff] %vm48, 0.0
  %68 = vst.msk [vmem:[#allocation2 + $0x98] sm:$0xff] %vm48, 0.0
  %69 = vst.msk [vmem:[#allocation2 + $0xa0] sm:$0xff] %vm48, 0.0
  %70 = vst.msk [vmem:[#allocation2 + $0xa8] sm:$0xff] %vm48, 0.0
  %71 = vst.msk [vmem:[#allocation2 + $0xb0] sm:$0xff] %vm48, 0.0
  %72 = vst.msk [vmem:[#allocation2 + $0xb8] sm:$0xff] %vm48, 0.0
  %73 = vst.msk [vmem:[#allocation2 + $0xc0] sm:$0xff] %vm48, 0.0
  loop: start=0, step=1, limit=8
  $region58: #{net_forward.1} parent=0 // loop_pre_header
    _
  $region59: #{net_forward.1} parent=0 // loop_header
    %s75 = sphi 0, %s79
    %p76 = scmp.ge.s32.totalorder %s75, 8
  $region60: #{net_forward.1} parent=0 // loop_header_branch
    %78 = sbr.rel (%p76) target = $region64
  $region61: #{net_forward.1} parent=0 // loop_body
    %s80 = smul.u32 %s75, 20
    %s81 = smul.addr %s80, 4
    %s82 = scalar_lea.vmem %s0, %s81
    %v83 = vld [vmem:[%s82] sm:$0xff]
    %v84 = vld [vmem:[%s82 + $0x8] sm:$0xff]
    %v85 = vld [vmem:[%s82 + $0x10] sm:$0xf]
    %v86 = vld [vmem:[%s82 + $0x14] sm:$0xff]
    %v87 = vld [vmem:[%s82 + $0x1c] sm:$0xff]
    %v88 = vld [vmem:[%s82 + $0x24] sm:$0xf]
    %v89 = vld [vmem:[%s82 + $0x28] sm:$0xff]
    %v90 = vld [vmem:[%s82 + $0x30] sm:$0xff]
    %v91 = vld [vmem:[%s82 + $0x38] sm:$0xf]
    %v92 = vld [vmem:[%s82 + $0x3c] sm:$0x11]
    %v93 = vld [vmem:[%s82 + $0x44] sm:$0x11]
    %v94 = vld [vmem:[%s82 + $0x4c] sm:$0x1]
    %v95 = vld [vmem:[%s1] sm:$0x7]
    %v96 = vld [vmem:[%s2] sm:$0x3f]
    %98 = vset.pattern.permute.xlu0 0
    %99 = vperm.xlu0 %98, %v96
    %v100 = vpop.permute.xlu0 %99
    %v114 = vunpack.c.l.b16 %v83
    %v115 = vunpack.c.h.b16 %v83
    %v116 = vunpack.c.l.b16 %v84
    %v117 = vunpack.c.h.b16 %v84
    %v118 = vunpack.c.l.b16 %v85
    %v119 = vunpack.c.l.b16 %v86
    %v120 = vunpack.c.h.b16 %v86
    %v121 = vunpack.c.l.b16 %v87
    %v122 = vunpack.c.h.b16 %v87
    %v123 = vunpack.c.l.b16 %v88
    %v124 = vunpack.c.l.b16 %v89
    %v125 = vunpack.c.h.b16 %v89
    %v126 = vunpack.c.l.b16 %v90
    %v127 = vunpack.c.h.b16 %v90
    %v128 = vunpack.c.l.b16 %v91
    %v129 = vunpack.c.l.b16 %v92
    %v130 = vunpack.c.h.b16 %v92
    %v131 = vunpack.c.l.b16 %v93
    %v132 = vunpack.c.h.b16 %v93
    %v133 = vunpack.c.l.b16 %v94
    %v134 = vpack.c.b16 %v119, %v114
    %v135 = vpack.c.b16 %v120, %v115
    %v136 = vpack.c.b16 %v121, %v116
    %v137 = vpack.c.b16 %v122, %v117
    %v138 = vpack.c.b16 %v123, %v118
    %v139 = vpack.c.b16 %v129, %v124
    %v140 = vpack.c.b16 %v130, %v125
    %v141 = vpack.c.b16 %v131, %v126
    %v142 = vpack.c.b16 %v132, %v127
    %v143 = vpack.c.b16 %v133, %v128
    %vm149 = vcmask 203776
    %v151 = vsel %vm149, %v95, 0
    %vm153 = vcmask 1043456
    %vm154 = vcmask 1044480
    %v155 = vsel %vm153, 4294967295, 65535
    %v156 = vsel %vm154, %v155, 0
    %v158 = vand.u32 %v139, %v156
    %v161 = vand.u32 %v140, %v156
    %v164 = vand.u32 %v141, %v156
    %v167 = vand.u32 %v142, %v156
    %v170 = vand.u32 %v143, %v156
    %172 = vmatprep.subr.bf16.mxu0 %v135
    %173 = vmatpush1.bf16.msra.mxu0 %v134
    %174 = vmatprep.subr.bf16.mxu0 %v161
    %175 = vmatpush1.bf16.msra.mxu0 %v158
    %176 = vmatprep.subr.bf16.mxu0 0
    %177 = vmatpush1.bf16.msra.mxu0 0
    %178 = vmatprep.subr.bf16.mxu0 0
    %179 = vmatpush1.bf16.msra.mxu0 0
    %180 = vmatprep.subr.bf16.mxu0 0
    %181 = vmatpush1.bf16.msra.mxu0 0
    %182 = vmatprep.subr.bf16.mxu0 0
    %183 = vmatpush1.bf16.msra.mxu0 0
    %184 = vmatprep.subr.bf16.mxu0 0
    %185 = vmatpush1.bf16.msra.mxu0 0
    %186 = vmatprep.subr.bf16.mxu0 0
    %187 = vmatpush1.bf16.msra.mxu0 0
    %188 = vmatprep.subr.bf16.mxu0 0
    %189 = vmatpush1.bf16.msra.mxu0 0
    %190 = vmatprep.subr.bf16.mxu0 0
    %191 = vmatpush1.bf16.msra.mxu0 0
    %192 = vmatprep.subr.bf16.mxu0 0
    %193 = vmatpush1.bf16.msra.mxu0 0
    %194 = vmatprep.subr.bf16.mxu0 0
    %195 = vmatpush1.bf16.msra.mxu0 0
    %196 = vmatprep.subr.bf16.mxu0 0
    %197 = vmatpush1.bf16.msra.mxu0 0
    %198 = vmatprep.subr.bf16.mxu0 0
    %199 = vmatpush1.bf16.msra.mxu0 0
    %200 = vmatprep.subr.bf16.mxu0 0
    %201 = vmatpush1.bf16.msra.mxu0 0
    %202 = vmatprep.subr.bf16.mxu0 0
    %203 = vmatpush1.bf16.msra.mxu0 0
    %204 = vmatprep.mubr.bf16.mxu0 0
    %205 = vmatmul.mubr.bf16.gmra.mrb[0].mxu0 %v151
    %v206 = vpop.f32.mrb[0].mxu0
    %v207 = vadd.f32 %v100, %v206
    %v208 = vpop.f32.mrb[0].mxu0
    %v209 = vadd.f32 %v100, %v208
    %v210 = vpop.f32.mrb[0].mxu0
    %v211 = vpop.f32.mrb[0].mxu0
    %212 = vdwg.mxu0
    %213 = vmatprep.subr.bf16.mxu0 %v137
    %214 = vmatpush1.bf16.msra.mxu0 %v136
    %215 = vmatprep.subr.bf16.mxu0 %v167
    %216 = vmatpush1.bf16.msra.mxu0 %v164
    %217 = vmatprep.subr.bf16.mxu0 0
    %218 = vmatpush1.bf16.msra.mxu0 0
    %219 = vmatprep.subr.bf16.mxu0 0
    %220 = vmatpush1.bf16.msra.mxu0 0
    %221 = vmatprep.subr.bf16.mxu0 0
    %222 = vmatpush1.bf16.msra.mxu0 0
    %223 = vmatprep.subr.bf16.mxu0 0
    %224 = vmatpush1.bf16.msra.mxu0 0
    %225 = vmatprep.subr.bf16.mxu0 0
    %226 = vmatpush1.bf16.msra.mxu0 0
    %227 = vmatprep.subr.bf16.mxu0 0
    %228 = vmatpush1.bf16.msra.mxu0 0
    %229 = vmatprep.subr.bf16.mxu0 0
    %230 = vmatpush1.bf16.msra.mxu0 0
    %231 = vmatprep.subr.bf16.mxu0 0
    %232 = vmatpush1.bf16.msra.mxu0 0
    %233 = vmatprep.subr.bf16.mxu0 0
    %234 = vmatpush1.bf16.msra.mxu0 0
    %235 = vmatprep.subr.bf16.mxu0 0
    %236 = vmatpush1.bf16.msra.mxu0 0
    %237 = vmatprep.subr.bf16.mxu0 0
    %238 = vmatpush1.bf16.msra.mxu0 0
    %239 = vmatprep.subr.bf16.mxu0 0
    %240 = vmatpush1.bf16.msra.mxu0 0
    %241 = vmatprep.subr.bf16.mxu0 0
    %242 = vmatpush1.bf16.msra.mxu0 0
    %243 = vmatprep.subr.bf16.mxu0 0
    %244 = vmatpush1.bf16.msra.mxu0 0
    %245 = vmatprep.mubr.bf16.mxu0 0
    %246 = vmatmul.mubr.bf16.gmra.mrb[0].mxu0 %v151
    %v247 = vpop.f32.mrb[0].mxu0
    %v248 = vadd.f32 %v100, %v247
    %v249 = vpop.f32.mrb[0].mxu0
    %v250 = vadd.f32 %v100, %v249
    %v251 = vpop.f32.mrb[0].mxu0
    %v252 = vpop.f32.mrb[0].mxu0
    %253 = vdwg.mxu0
    %254 = vmatprep.subr.bf16.mxu0 0
    %255 = vmatpush1.bf16.msra.mxu0 %v138
    %256 = vmatprep.subr.bf16.mxu0 0
    %257 = vmatpush1.bf16.msra.mxu0 %v170
    %258 = vmatprep.subr.bf16.mxu0 0
    %259 = vmatpush1.bf16.msra.mxu0 0
    %260 = vmatprep.subr.bf16.mxu0 0
    %261 = vmatpush1.bf16.msra.mxu0 0
    %262 = vmatprep.subr.bf16.mxu0 0
    %263 = vmatpush1.bf16.msra.mxu0 0
    %264 = vmatprep.subr.bf16.mxu0 0
    %265 = vmatpush1.bf16.msra.mxu0 0
    %266 = vmatprep.subr.bf16.mxu0 0
    %267 = vmatpush1.bf16.msra.mxu0 0
    %268 = vmatprep.subr.bf16.mxu0 0
    %269 = vmatpush1.bf16.msra.mxu0 0
    %270 = vmatprep.subr.bf16.mxu0 0
    %271 = vmatpush1.bf16.msra.mxu0 0
    %272 = vmatprep.subr.bf16.mxu0 0
    %273 = vmatpush1.bf16.msra.mxu0 0
    %274 = vmatprep.subr.bf16.mxu0 0
    %275 = vmatpush1.bf16.msra.mxu0 0
    %276 = vmatprep.subr.bf16.mxu0 0
    %277 = vmatpush1.bf16.msra.mxu0 0
    %278 = vmatprep.subr.bf16.mxu0 0
    %279 = vmatpush1.bf16.msra.mxu0 0
    %280 = vmatprep.subr.bf16.mxu0 0
    %281 = vmatpush1.bf16.msra.mxu0 0
    %282 = vmatprep.subr.bf16.mxu0 0
    %283 = vmatpush1.bf16.msra.mxu0 0
    %284 = vmatprep.subr.bf16.mxu0 0
    %285 = vmatpush1.bf16.msra.mxu0 0
    %286 = vmatprep.mubr.bf16.mxu0 0
    %287 = vmatmul.mubr.bf16.gmra.mrb[0].mxu0 %v151
    %v288 = vpop.f32.mrb[0].mxu0
    %v289 = vadd.f32 %v100, %v288
    %v290 = vpop.f32.mrb[0].mxu0
    %v291 = vpop.f32.mrb[0].mxu0
    %v292 = vpop.f32.mrb[0].mxu0
    %293 = vdwg.mxu0
    %v294 = vmax.f32 %v207, 0.0
    %v295 = vmax.f32 %v209, 0.0
    %v296 = vmax.f32 %v248, 0.0
    %v297 = vmax.f32 %v250, 0.0
    %v298 = vmax.f32 %v289, 0.0
    %v299 = vpack.c.bf16 %v294, %v294
    %v300 = vpack.c.bf16 %v295, %v295
    %v301 = vpack.c.bf16 %v296, %v296
    %v302 = vpack.c.bf16 %v297, %v297
    %v303 = vpack.c.bf16 %v298, %v298
    %v304 = vld [vmem:[%s3] sm:$0xff]
    %v305 = vld [vmem:[%s3 + $0x8] sm:$0xff]
    %v306 = vld [vmem:[%s3 + $0x10] sm:$0xf]
    %v307 = vld [vmem:[%s3 + $0x14] sm:$0xff]
    %v308 = vld [vmem:[%s3 + $0x1c] sm:$0xff]
    %v309 = vld [vmem:[%s3 + $0x24] sm:$0xf]
    %v310 = vld [vmem:[%s3 + $0x28] sm:$0xff]
    %v311 = vld [vmem:[%s3 + $0x30] sm:$0xff]
    %v312 = vld [vmem:[%s3 + $0x38] sm:$0xf]
    %v313 = vld [vmem:[%s3 + $0x3c] sm:$0xff]
    %v314 = vld [vmem:[%s3 + $0x44] sm:$0xff]
    %v315 = vld [vmem:[%s3 + $0x4c] sm:$0xf]
    %v316 = vld [vmem:[%s3 + $0x50] sm:$0xff]
    %v317 = vld [vmem:[%s3 + $0x58] sm:$0xff]
    %v318 = vld [vmem:[%s3 + $0x60] sm:$0xf]
    %v319 = vld [vmem:[%s3 + $0x64] sm:$0xff]
    %v320 = vld [vmem:[%s3 + $0x6c] sm:$0xff]
    %v321 = vld [vmem:[%s3 + $0x74] sm:$0xf]
    %v322 = vld [vmem:[%s3 + $0x78] sm:$0xff]
    %v323 = vld [vmem:[%s3 + $0x80] sm:$0xff]
    %v324 = vld [vmem:[%s3 + $0x88] sm:$0xf]
    %v325 = vld [vmem:[%s3 + $0x8c] sm:$0xff]
    %v326 = vld [vmem:[%s3 + $0x94] sm:$0xff]
    %v327 = vld [vmem:[%s3 + $0x9c] sm:$0xf]
    %v328 = vld [vmem:[%s3 + $0xa0] sm:$0xff]
    %v329 = vld [vmem:[%s3 + $0xa8] sm:$0xff]
    %v330 = vld [vmem:[%s3 + $0xb0] sm:$0xf]
    %v331 = vld [vmem:[%s3 + $0xb4] sm:$0xff]
    %v332 = vld [vmem:[%s3 + $0xbc] sm:$0xff]
    %v333 = vld [vmem:[%s3 + $0xc4] sm:$0xf]
    %v334 = vld [vmem:[%s3 + $0xc8] sm:$0xff]
    %v335 = vld [vmem:[%s3 + $0xd0] sm:$0xff]
    %v336 = vld [vmem:[%s3 + $0xd8] sm:$0xf]
    %v337 = vld [vmem:[%s3 + $0xdc] sm:$0xff]
    %v338 = vld [vmem:[%s3 + $0xe4] sm:$0xff]
    %v339 = vld [vmem:[%s3 + $0xec] sm:$0xf]
    %v340 = vld [vmem:[%s3 + $0xf0] sm:$0xff]
    %v341 = vld [vmem:[%s3 + $0xf8] sm:$0xff]
    %v342 = vld [vmem:[%s3 + $0x100] sm:$0xf]
    %v343 = vld [vmem:[%s3 + $0x104] sm:$0xff]
    %v344 = vld [vmem:[%s3 + $0x10c] sm:$0xff]
    %v345 = vld [vmem:[%s3 + $0x114] sm:$0xf]
    %v346 = vld [vmem:[%s3 + $0x118] sm:$0xff]
    %v347 = vld [vmem:[%s3 + $0x120] sm:$0xff]
    %v348 = vld [vmem:[%s3 + $0x128] sm:$0xf]
    %v349 = vld [vmem:[%s3 + $0x12c] sm:$0xff]
    %v350 = vld [vmem:[%s3 + $0x134] sm:$0xff]
    %v351 = vld [vmem:[%s3 + $0x13c] sm:$0xf]
    %v352 = vld [vmem:[%s3 + $0x140] sm:$0xff]
    %v353 = vld [vmem:[%s3 + $0x148] sm:$0xff]
    %v354 = vld [vmem:[%s3 + $0x150] sm:$0xf]
    %v355 = vld [vmem:[%s3 + $0x154] sm:$0xff]
    %v356 = vld [vmem:[%s3 + $0x15c] sm:$0xff]
    %v357 = vld [vmem:[%s3 + $0x164] sm:$0xf]
    %v358 = vld [vmem:[%s3 + $0x168] sm:$0xff]
    %v359 = vld [vmem:[%s3 + $0x170] sm:$0xff]
    %v360 = vld [vmem:[%s3 + $0x178] sm:$0xf]
    %v361 = vld [vmem:[%s3 + $0x17c] sm:$0xff]
    %v362 = vld [vmem:[%s3 + $0x184] sm:$0xff]
    %v363 = vld [vmem:[%s3 + $0x18c] sm:$0xf]
    %v364 = vld [vmem:[%s3 + $0x190] sm:$0xff]
    %v365 = vld [vmem:[%s3 + $0x198] sm:$0xff]
    %v366 = vld [vmem:[%s3 + $0x1a0] sm:$0xf]
    %v367 = vld [vmem:[%s3 + $0x1a4] sm:$0xff]
    %v368 = vld [vmem:[%s3 + $0x1ac] sm:$0xff]
    %v369 = vld [vmem:[%s3 + $0x1b4] sm:$0xf]
    %v370 = vld [vmem:[%s3 + $0x1b8] sm:$0xff]
    %v371 = vld [vmem:[%s3 + $0x1c0] sm:$0xff]
    %v372 = vld [vmem:[%s3 + $0x1c8] sm:$0xf]
    %v373 = vld [vmem:[%s3 + $0x1cc] sm:$0xff]
    %v374 = vld [vmem:[%s3 + $0x1d4] sm:$0xff]
    %v375 = vld [vmem:[%s3 + $0x1dc] sm:$0xf]
    %v376 = vld [vmem:[%s3 + $0x1e0] sm:$0xff]
    %v377 = vld [vmem:[%s3 + $0x1e8] sm:$0xff]
    %v378 = vld [vmem:[%s3 + $0x1f0] sm:$0xf]
    %v379 = vld [vmem:[%s3 + $0x1f4] sm:$0xff]
    %v380 = vld [vmem:[%s3 + $0x1fc] sm:$0xff]
    %v381 = vld [vmem:[%s3 + $0x204] sm:$0xf]
    %v382 = vld [vmem:[%s3 + $0x208] sm:$0xff]
    %v383 = vld [vmem:[%s3 + $0x210] sm:$0xff]
    %v384 = vld [vmem:[%s3 + $0x218] sm:$0xf]
    %v385 = vld [vmem:[%s3 + $0x21c] sm:$0xff]
    %v386 = vld [vmem:[%s3 + $0x224] sm:$0xff]
    %v387 = vld [vmem:[%s3 + $0x22c] sm:$0xf]
    %v388 = vld [vmem:[%s3 + $0x230] sm:$0xff]
    %v389 = vld [vmem:[%s3 + $0x238] sm:$0xff]
    %v390 = vld [vmem:[%s3 + $0x240] sm:$0xf]
    %v391 = vld [vmem:[%s3 + $0x244] sm:$0xff]
    %v392 = vld [vmem:[%s3 + $0x24c] sm:$0xff]
    %v393 = vld [vmem:[%s3 + $0x254] sm:$0xf]
    %v394 = vld [vmem:[%s3 + $0x258] sm:$0xff]
    %v395 = vld [vmem:[%s3 + $0x260] sm:$0xff]
    %v396 = vld [vmem:[%s3 + $0x268] sm:$0xf]
    %v397 = vld [vmem:[%s3 + $0x26c] sm:$0xff]
    %v398 = vld [vmem:[%s3 + $0x274] sm:$0xff]
    %v399 = vld [vmem:[%s3 + $0x27c] sm:$0xf]
    %v400 = vld [vmem:[%s3 + $0x280] sm:$0xff]
    %v401 = vld [vmem:[%s3 + $0x288] sm:$0xff]
    %v402 = vld [vmem:[%s3 + $0x290] sm:$0xf]
    %v403 = vld [vmem:[%s3 + $0x294] sm:$0xff]
    %v404 = vld [vmem:[%s3 + $0x29c] sm:$0xff]
    %v405 = vld [vmem:[%s3 + $0x2a4] sm:$0xf]
    %v406 = vld [vmem:[%s3 + $0x2a8] sm:$0xff]
    %v407 = vld [vmem:[%s3 + $0x2b0] sm:$0xff]
    %v408 = vld [vmem:[%s3 + $0x2b8] sm:$0xf]
    %v409 = vld [vmem:[%s3 + $0x2bc] sm:$0xff]
    %v410 = vld [vmem:[%s3 + $0x2c4] sm:$0xff]
    %v411 = vld [vmem:[%s3 + $0x2cc] sm:$0xf]
    %v412 = vld [vmem:[%s3 + $0x2d0] sm:$0xff]
    %v413 = vld [vmem:[%s3 + $0x2d8] sm:$0xff]
    %v414 = vld [vmem:[%s3 + $0x2e0] sm:$0xf]
    %v415 = vld [vmem:[%s3 + $0x2e4] sm:$0xff]
    %v416 = vld [vmem:[%s3 + $0x2ec] sm:$0xff]
    %v417 = vld [vmem:[%s3 + $0x2f4] sm:$0xf]
    %v418 = vld [vmem:[%s3 + $0x2f8] sm:$0xff]
    %v419 = vld [vmem:[%s3 + $0x300] sm:$0xff]
    %v420 = vld [vmem:[%s3 + $0x308] sm:$0xf]
    %v421 = vld [vmem:[%s3 + $0x30c] sm:$0xff]
    %v422 = vld [vmem:[%s3 + $0x314] sm:$0xff]
    %v423 = vld [vmem:[%s3 + $0x31c] sm:$0xf]
    %v424 = vld [vmem:[%s3 + $0x320] sm:$0xff]
    %v425 = vld [vmem:[%s3 + $0x328] sm:$0xff]
    %v426 = vld [vmem:[%s3 + $0x330] sm:$0xf]
    %v427 = vld [vmem:[%s3 + $0x334] sm:$0xff]
    %v428 = vld [vmem:[%s3 + $0x33c] sm:$0xff]
    %v429 = vld [vmem:[%s3 + $0x344] sm:$0xf]
    %v430 = vld [vmem:[%s3 + $0x348] sm:$0xff]
    %v431 = vld [vmem:[%s3 + $0x350] sm:$0xff]
    %v432 = vld [vmem:[%s3 + $0x358] sm:$0xf]
    %v433 = vld [vmem:[%s3 + $0x35c] sm:$0xff]
    %v434 = vld [vmem:[%s3 + $0x364] sm:$0xff]
    %v435 = vld [vmem:[%s3 + $0x36c] sm:$0xf]
    %v436 = vld [vmem:[%s3 + $0x370] sm:$0xff]
    %v437 = vld [vmem:[%s3 + $0x378] sm:$0xff]
    %v438 = vld [vmem:[%s3 + $0x380] sm:$0xf]
    %v439 = vld [vmem:[%s3 + $0x384] sm:$0xff]
    %v440 = vld [vmem:[%s3 + $0x38c] sm:$0xff]
    %v441 = vld [vmem:[%s3 + $0x394] sm:$0xf]
    %v442 = vld [vmem:[%s3 + $0x398] sm:$0xff]
    %v443 = vld [vmem:[%s3 + $0x3a0] sm:$0xff]
    %v444 = vld [vmem:[%s3 + $0x3a8] sm:$0xf]
    %v445 = vld [vmem:[%s3 + $0x3ac] sm:$0xff]
    %v446 = vld [vmem:[%s3 + $0x3b4] sm:$0xff]
    %v447 = vld [vmem:[%s3 + $0x3bc] sm:$0xf]
    %v448 = vld [vmem:[%s3 + $0x3c0] sm:$0xff]
    %v449 = vld [vmem:[%s3 + $0x3c8] sm:$0xff]
    %v450 = vld [vmem:[%s3 + $0x3d0] sm:$0xf]
    %v451 = vld [vmem:[%s3 + $0x3d4] sm:$0xff]
    %v452 = vld [vmem:[%s3 + $0x3dc] sm:$0xff]
    %v453 = vld [vmem:[%s3 + $0x3e4] sm:$0xf]
    %v454 = vld [vmem:[%s3 + $0x3e8] sm:$0xff]
    %v455 = vld [vmem:[%s3 + $0x3f0] sm:$0xff]
    %v456 = vld [vmem:[%s3 + $0x3f8] sm:$0xf]
    %v457 = vld [vmem:[%s3 + $0x3fc] sm:$0xff]
    %v458 = vld [vmem:[%s3 + $0x404] sm:$0xff]
    %v459 = vld [vmem:[%s3 + $0x40c] sm:$0xf]
    %v460 = vld [vmem:[%s3 + $0x410] sm:$0xff]
    %v461 = vld [vmem:[%s3 + $0x418] sm:$0xff]
    %v462 = vld [vmem:[%s3 + $0x420] sm:$0xf]
    %v463 = vld [vmem:[%s3 + $0x424] sm:$0xff]
    %v464 = vld [vmem:[%s3 + $0x42c] sm:$0xff]
    %v465 = vld [vmem:[%s3 + $0x434] sm:$0xf]
    %v466 = vld [vmem:[%s3 + $0x438] sm:$0xff]
    %v467 = vld [vmem:[%s3 + $0x440] sm:$0xff]
    %v468 = vld [vmem:[%s3 + $0x448] sm:$0xf]
    %v469 = vld [vmem:[%s3 + $0x44c] sm:$0xff]
    %v470 = vld [vmem:[%s3 + $0x454] sm:$0xff]
    %v471 = vld [vmem:[%s3 + $0x45c] sm:$0xf]
    %v472 = vld [vmem:[%s3 + $0x460] sm:$0xff]
    %v473 = vld [vmem:[%s3 + $0x468] sm:$0xff]
    %v474 = vld [vmem:[%s3 + $0x470] sm:$0xf]
    %v475 = vld [vmem:[%s3 + $0x474] sm:$0xff]
    %v476 = vld [vmem:[%s3 + $0x47c] sm:$0xff]
    %v477 = vld [vmem:[%s3 + $0x484] sm:$0xf]
    %v478 = vld [vmem:[%s3 + $0x488] sm:$0xff]
    %v479 = vld [vmem:[%s3 + $0x490] sm:$0xff]
    %v480 = vld [vmem:[%s3 + $0x498] sm:$0xf]
    %v481 = vld [vmem:[%s3 + $0x49c] sm:$0xff]
    %v482 = vld [vmem:[%s3 + $0x4a4] sm:$0xff]
    %v483 = vld [vmem:[%s3 + $0x4ac] sm:$0xf]
    %v484 = vld [vmem:[%s3 + $0x4b0] sm:$0xff]
    %v485 = vld [vmem:[%s3 + $0x4b8] sm:$0xff]
    %v486 = vld [vmem:[%s3 + $0x4c0] sm:$0xf]
    %v487 = vld [vmem:[%s3 + $0x4c4] sm:$0xff]
    %v488 = vld [vmem:[%s3 + $0x4cc] sm:$0xff]
    %v489 = vld [vmem:[%s3 + $0x4d4] sm:$0xf]
    %v490 = vld [vmem:[%s3 + $0x4d8] sm:$0xff]
    %v491 = vld [vmem:[%s3 + $0x4e0] sm:$0xff]
    %v492 = vld [vmem:[%s3 + $0x4e8] sm:$0xf]
    %v493 = vld [vmem:[%s3 + $0x4ec] sm:$0xff]
    %v494 = vld [vmem:[%s3 + $0x4f4] sm:$0xff]
    %v495 = vld [vmem:[%s3 + $0x4fc] sm:$0xf]
    %v496 = vld [vmem:[%s3 + $0x500] sm:$0xff]
    %v497 = vld [vmem:[%s3 + $0x508] sm:$0xff]
    %v498 = vld [vmem:[%s3 + $0x510] sm:$0xf]
    %v499 = vld [vmem:[%s3 + $0x514] sm:$0xff]
    %v500 = vld [vmem:[%s3 + $0x51c] sm:$0xff]
    %v501 = vld [vmem:[%s3 + $0x524] sm:$0xf]
    %v502 = vld [vmem:[%s3 + $0x528] sm:$0xff]
    %v503 = vld [vmem:[%s3 + $0x530] sm:$0xff]
    %v504 = vld [vmem:[%s3 + $0x538] sm:$0xf]
    %v505 = vld [vmem:[%s3 + $0x53c] sm:$0xff]
    %v506 = vld [vmem:[%s3 + $0x544] sm:$0xff]
    %v507 = vld [vmem:[%s3 + $0x54c] sm:$0xf]
    %v508 = vld [vmem:[%s3 + $0x550] sm:$0xff]
    %v509 = vld [vmem:[%s3 + $0x558] sm:$0xff]
    %v510 = vld [vmem:[%s3 + $0x560] sm:$0xf]
    %v511 = vld [vmem:[%s3 + $0x564] sm:$0xff]
    %v512 = vld [vmem:[%s3 + $0x56c] sm:$0xff]
    %v513 = vld [vmem:[%s3 + $0x574] sm:$0xf]
    %v514 = vld [vmem:[%s3 + $0x578] sm:$0xff]
    %v515 = vld [vmem:[%s3 + $0x580] sm:$0xff]
    %v516 = vld [vmem:[%s3 + $0x588] sm:$0xf]
    %v517 = vld [vmem:[%s3 + $0x58c] sm:$0xff]
    %v518 = vld [vmem:[%s3 + $0x594] sm:$0xff]
    %v519 = vld [vmem:[%s3 + $0x59c] sm:$0xf]
    %v736 = vunpack.c.l.b16 %v304
    %v737 = vunpack.c.h.b16 %v304
    %v738 = vunpack.c.l.b16 %v305
    %v739 = vunpack.c.h.b16 %v305
    %v740 = vunpack.c.l.b16 %v306
    %v741 = vunpack.c.l.b16 %v307
    %v742 = vunpack.c.h.b16 %v307
    %v743 = vunpack.c.l.b16 %v308
    %v744 = vunpack.c.h.b16 %v308
    %v745 = vunpack.c.l.b16 %v309
    %v746 = vunpack.c.l.b16 %v310
    %v747 = vunpack.c.h.b16 %v310
    %v748 = vunpack.c.l.b16 %v311
    %v749 = vunpack.c.h.b16 %v311
    %v750 = vunpack.c.l.b16 %v312
    %v751 = vunpack.c.l.b16 %v313
    %v752 = vunpack.c.h.b16 %v313
    %v753 = vunpack.c.l.b16 %v314
    %v754 = vunpack.c.h.b16 %v314
    %v755 = vunpack.c.l.b16 %v315
    %v756 = vunpack.c.l.b16 %v316
    %v757 = vunpack.c.h.b16 %v316
    %v758 = vunpack.c.l.b16 %v317
    %v759 = vunpack.c.h.b16 %v317
    %v760 = vunpack.c.l.b16 %v318
    %v761 = vunpack.c.l.b16 %v319
    %v762 = vunpack.c.h.b16 %v319
    %v763 = vunpack.c.l.b16 %v320
    %v764 = vunpack.c.h.b16 %v320
    %v765 = vunpack.c.l.b16 %v321
    %v766 = vunpack.c.l.b16 %v322
    %v767 = vunpack.c.h.b16 %v322
    %v768 = vunpack.c.l.b16 %v323
    %v769 = vunpack.c.h.b16 %v323
    %v770 = vunpack.c.l.b16 %v324
    %v771 = vunpack.c.l.b16 %v325
    %v772 = vunpack.c.h.b16 %v325
    %v773 = vunpack.c.l.b16 %v326
    %v774 = vunpack.c.h.b16 %v326
    %v775 = vunpack.c.l.b16 %v327
    %v776 = vunpack.c.l.b16 %v328
    %v777 = vunpack.c.h.b16 %v328
    %v778 = vunpack.c.l.b16 %v329
    %v779 = vunpack.c.h.b16 %v329
    %v780 = vunpack.c.l.b16 %v330
    %v781 = vunpack.c.l.b16 %v331
    %v782 = vunpack.c.h.b16 %v331
    %v783 = vunpack.c.l.b16 %v332
    %v784 = vunpack.c.h.b16 %v332
    %v785 = vunpack.c.l.b16 %v333
    %v786 = vunpack.c.l.b16 %v334
    %v787 = vunpack.c.h.b16 %v334
    %v788 = vunpack.c.l.b16 %v335
    %v789 = vunpack.c.h.b16 %v335
    %v790 = vunpack.c.l.b16 %v336
    %v791 = vunpack.c.l.b16 %v337
    %v792 = vunpack.c.h.b16 %v337
    %v793 = vunpack.c.l.b16 %v338
    %v794 = vunpack.c.h.b16 %v338
    %v795 = vunpack.c.l.b16 %v339
    %v796 = vunpack.c.l.b16 %v340
    %v797 = vunpack.c.h.b16 %v340
    %v798 = vunpack.c.l.b16 %v341
    %v799 = vunpack.c.h.b16 %v341
    %v800 = vunpack.c.l.b16 %v342
    %v801 = vunpack.c.l.b16 %v343
    %v802 = vunpack.c.h.b16 %v343
    %v803 = vunpack.c.l.b16 %v344
    %v804 = vunpack.c.h.b16 %v344
    %v805 = vunpack.c.l.b16 %v345
    %v806 = vunpack.c.l.b16 %v346
    %v807 = vunpack.c.h.b16 %v346
    %v808 = vunpack.c.l.b16 %v347
    %v809 = vunpack.c.h.b16 %v347
    %v810 = vunpack.c.l.b16 %v348
    %v811 = vunpack.c.l.b16 %v349
    %v812 = vunpack.c.h.b16 %v349
    %v813 = vunpack.c.l.b16 %v350
    %v814 = vunpack.c.h.b16 %v350
    %v815 = vunpack.c.l.b16 %v351
    %v816 = vunpack.c.l.b16 %v352
    %v817 = vunpack.c.h.b16 %v352
    %v818 = vunpack.c.l.b16 %v353
    %v819 = vunpack.c.h.b16 %v353
    %v820 = vunpack.c.l.b16 %v354
    %v821 = vunpack.c.l.b16 %v355
    %v822 = vunpack.c.h.b16 %v355
    %v823 = vunpack.c.l.b16 %v356
    %v824 = vunpack.c.h.b16 %v356
    %v825 = vunpack.c.l.b16 %v357
    %v826 = vunpack.c.l.b16 %v358
    %v827 = vunpack.c.h.b16 %v358
    %v828 = vunpack.c.l.b16 %v359
    %v829 = vunpack.c.h.b16 %v359
    %v830 = vunpack.c.l.b16 %v360
    %v831 = vunpack.c.l.b16 %v361
    %v832 = vunpack.c.h.b16 %v361
    %v833 = vunpack.c.l.b16 %v362
    %v834 = vunpack.c.h.b16 %v362
    %v835 = vunpack.c.l.b16 %v363
    %v836 = vunpack.c.l.b16 %v364
    %v837 = vunpack.c.h.b16 %v364
    %v838 = vunpack.c.l.b16 %v365
    %v839 = vunpack.c.h.b16 %v365
    %v840 = vunpack.c.l.b16 %v366
    %v841 = vunpack.c.l.b16 %v367
    %v842 = vunpack.c.h.b16 %v367
    %v843 = vunpack.c.l.b16 %v368
    %v844 = vunpack.c.h.b16 %v368
    %v845 = vunpack.c.l.b16 %v369
    %v846 = vunpack.c.l.b16 %v370
    %v847 = vunpack.c.h.b16 %v370
    %v848 = vunpack.c.l.b16 %v371
    %v849 = vunpack.c.h.b16 %v371
    %v850 = vunpack.c.l.b16 %v372
    %v851 = vunpack.c.l.b16 %v373
    %v852 = vunpack.c.h.b16 %v373
    %v853 = vunpack.c.l.b16 %v374
    %v854 = vunpack.c.h.b16 %v374
    %v855 = vunpack.c.l.b16 %v375
    %v856 = vunpack.c.l.b16 %v376
    %v857 = vunpack.c.h.b16 %v376
    %v858 = vunpack.c.l.b16 %v377
    %v859 = vunpack.c.h.b16 %v377
    %v860 = vunpack.c.l.b16 %v378
    %v861 = vunpack.c.l.b16 %v379
    %v862 = vunpack.c.h.b16 %v379
    %v863 = vunpack.c.l.b16 %v380
    %v864 = vunpack.c.h.b16 %v380
    %v865 = vunpack.c.l.b16 %v381
    %v866 = vunpack.c.l.b16 %v382
    %v867 = vunpack.c.h.b16 %v382
    %v868 = vunpack.c.l.b16 %v383
    %v869 = vunpack.c.h.b16 %v383
    %v870 = vunpack.c.l.b16 %v384
    %v871 = vunpack.c.l.b16 %v385
    %v872 = vunpack.c.h.b16 %v385
    %v873 = vunpack.c.l.b16 %v386
    %v874 = vunpack.c.h.b16 %v386
    %v875 = vunpack.c.l.b16 %v387
    %v876 = vunpack.c.l.b16 %v388
    %v877 = vunpack.c.h.b16 %v388
    %v878 = vunpack.c.l.b16 %v389
    %v879 = vunpack.c.h.b16 %v389
    %v880 = vunpack.c.l.b16 %v390
    %v881 = vunpack.c.l.b16 %v391
    %v882 = vunpack.c.h.b16 %v391
    %v883 = vunpack.c.l.b16 %v392
    %v884 = vunpack.c.h.b16 %v392
    %v885 = vunpack.c.l.b16 %v393
    %v886 = vunpack.c.l.b16 %v394
    %v887 = vunpack.c.h.b16 %v394
    %v888 = vunpack.c.l.b16 %v395
    %v889 = vunpack.c.h.b16 %v395
    %v890 = vunpack.c.l.b16 %v396
    %v891 = vunpack.c.l.b16 %v397
    %v892 = vunpack.c.h.b16 %v397
    %v893 = vunpack.c.l.b16 %v398
    %v894 = vunpack.c.h.b16 %v398
    %v895 = vunpack.c.l.b16 %v399
    %v896 = vunpack.c.l.b16 %v400
    %v897 = vunpack.c.h.b16 %v400
    %v898 = vunpack.c.l.b16 %v401
    %v899 = vunpack.c.h.b16 %v401
    %v900 = vunpack.c.l.b16 %v402
    %v901 = vunpack.c.l.b16 %v403
    %v902 = vunpack.c.h.b16 %v403
    %v903 = vunpack.c.l.b16 %v404
    %v904 = vunpack.c.h.b16 %v404
    %v905 = vunpack.c.l.b16 %v405
    %v906 = vunpack.c.l.b16 %v406
    %v907 = vunpack.c.h.b16 %v406
    %v908 = vunpack.c.l.b16 %v407
    %v909 = vunpack.c.h.b16 %v407
    %v910 = vunpack.c.l.b16 %v408
    %v911 = vunpack.c.l.b16 %v409
    %v912 = vunpack.c.h.b16 %v409
    %v913 = vunpack.c.l.b16 %v410
    %v914 = vunpack.c.h.b16 %v410
    %v915 = vunpack.c.l.b16 %v411
    %v916 = vunpack.c.l.b16 %v412
    %v917 = vunpack.c.h.b16 %v412
    %v918 = vunpack.c.l.b16 %v413
    %v919 = vunpack.c.h.b16 %v413
    %v920 = vunpack.c.l.b16 %v414
    %v921 = vunpack.c.l.b16 %v415
    %v922 = vunpack.c.h.b16 %v415
    %v923 = vunpack.c.l.b16 %v416
    %v924 = vunpack.c.h.b16 %v416
    %v925 = vunpack.c.l.b16 %v417
    %v926 = vunpack.c.l.b16 %v418
    %v927 = vunpack.c.h.b16 %v418
    %v928 = vunpack.c.l.b16 %v419
    %v929 = vunpack.c.h.b16 %v419
    %v930 = vunpack.c.l.b16 %v420
    %v931 = vunpack.c.l.b16 %v421
    %v932 = vunpack.c.h.b16 %v421
    %v933 = vunpack.c.l.b16 %v422
    %v934 = vunpack.c.h.b16 %v422
    %v935 = vunpack.c.l.b16 %v423
    %v936 = vunpack.c.l.b16 %v424
    %v937 = vunpack.c.h.b16 %v424
    %v938 = vunpack.c.l.b16 %v425
    %v939 = vunpack.c.h.b16 %v425
    %v940 = vunpack.c.l.b16 %v426
    %v941 = vunpack.c.l.b16 %v427
    %v942 = vunpack.c.h.b16 %v427
    %v943 = vunpack.c.l.b16 %v428
    %v944 = vunpack.c.h.b16 %v428
    %v945 = vunpack.c.l.b16 %v429
    %v946 = vunpack.c.l.b16 %v430
    %v947 = vunpack.c.h.b16 %v430
    %v948 = vunpack.c.l.b16 %v431
    %v949 = vunpack.c.h.b16 %v431
    %v950 = vunpack.c.l.b16 %v432
    %v951 = vunpack.c.l.b16 %v433
    %v952 = vunpack.c.h.b16 %v433
    %v953 = vunpack.c.l.b16 %v434
    %v954 = vunpack.c.h.b16 %v434
    %v955 = vunpack.c.l.b16 %v435
    %v956 = vunpack.c.l.b16 %v436
    %v957 = vunpack.c.h.b16 %v436
    %v958 = vunpack.c.l.b16 %v437
    %v959 = vunpack.c.h.b16 %v437
    %v960 = vunpack.c.l.b16 %v438
    %v961 = vunpack.c.l.b16 %v439
    %v962 = vunpack.c.h.b16 %v439
    %v963 = vunpack.c.l.b16 %v440
    %v964 = vunpack.c.h.b16 %v440
    %v965 = vunpack.c.l.b16 %v441
    %v966 = vunpack.c.l.b16 %v442
    %v967 = vunpack.c.h.b16 %v442
    %v968 = vunpack.c.l.b16 %v443
    %v969 = vunpack.c.h.b16 %v443
    %v970 = vunpack.c.l.b16 %v444
    %v971 = vunpack.c.l.b16 %v445
    %v972 = vunpack.c.h.b16 %v445
    %v973 = vunpack.c.l.b16 %v446
    %v974 = vunpack.c.h.b16 %v446
    %v975 = vunpack.c.l.b16 %v447
    %v976 = vunpack.c.l.b16 %v448
    %v977 = vunpack.c.h.b16 %v448
    %v978 = vunpack.c.l.b16 %v449
    %v979 = vunpack.c.h.b16 %v449
    %v980 = vunpack.c.l.b16 %v450
    %v981 = vunpack.c.l.b16 %v451
    %v982 = vunpack.c.h.b16 %v451
    %v983 = vunpack.c.l.b16 %v452
    %v984 = vunpack.c.h.b16 %v452
    %v985 = vunpack.c.l.b16 %v453
    %v986 = vunpack.c.l.b16 %v454
    %v987 = vunpack.c.h.b16 %v454
    %v988 = vunpack.c.l.b16 %v455
    %v989 = vunpack.c.h.b16 %v455
    %v990 = vunpack.c.l.b16 %v456
    %v991 = vunpack.c.l.b16 %v457
    %v992 = vunpack.c.h.b16 %v457
    %v993 = vunpack.c.l.b16 %v458
    %v994 = vunpack.c.h.b16 %v458
    %v995 = vunpack.c.l.b16 %v459
    %v996 = vunpack.c.l.b16 %v460
    %v997 = vunpack.c.h.b16 %v460
    %v998 = vunpack.c.l.b16 %v461
    %v999 = vunpack.c.h.b16 %v461
    %v1000 = vunpack.c.l.b16 %v462
    %v1001 = vunpack.c.l.b16 %v463
    %v1002 = vunpack.c.h.b16 %v463
    %v1003 = vunpack.c.l.b16 %v464
    %v1004 = vunpack.c.h.b16 %v464
    %v1005 = vunpack.c.l.b16 %v465
    %v1006 = vunpack.c.l.b16 %v466
    %v1007 = vunpack.c.h.b16 %v466
    %v1008 = vunpack.c.l.b16 %v467
    %v1009 = vunpack.c.h.b16 %v467
    %v1010 = vunpack.c.l.b16 %v468
    %v1011 = vunpack.c.l.b16 %v469
    %v1012 = vunpack.c.h.b16 %v469
    %v1013 = vunpack.c.l.b16 %v470
    %v1014 = vunpack.c.h.b16 %v470
    %v1015 = vunpack.c.l.b16 %v471
    %v1016 = vunpack.c.l.b16 %v472
    %v1017 = vunpack.c.h.b16 %v472
    %v1018 = vunpack.c.l.b16 %v473
    %v1019 = vunpack.c.h.b16 %v473
    %v1020 = vunpack.c.l.b16 %v474
    %v1021 = vunpack.c.l.b16 %v475
    %v1022 = vunpack.c.h.b16 %v475
    %v1023 = vunpack.c.l.b16 %v476
    %v1024 = vunpack.c.h.b16 %v476
    %v1025 = vunpack.c.l.b16 %v477
    %v1026 = vunpack.c.l.b16 %v478
    %v1027 = vunpack.c.h.b16 %v478
    %v1028 = vunpack.c.l.b16 %v479
    %v1029 = vunpack.c.h.b16 %v479
    %v1030 = vunpack.c.l.b16 %v480
    %v1031 = vunpack.c.l.b16 %v481
    %v1032 = vunpack.c.h.b16 %v481
    %v1033 = vunpack.c.l.b16 %v482
    %v1034 = vunpack.c.h.b16 %v482
    %v1035 = vunpack.c.l.b16 %v483
    %v1036 = vunpack.c.l.b16 %v484
    %v1037 = vunpack.c.h.b16 %v484
    %v1038 = vunpack.c.l.b16 %v485
    %v1039 = vunpack.c.h.b16 %v485
    %v1040 = vunpack.c.l.b16 %v486
    %v1041 = vunpack.c.l.b16 %v487
    %v1042 = vunpack.c.h.b16 %v487
    %v1043 = vunpack.c.l.b16 %v488
    %v1044 = vunpack.c.h.b16 %v488
    %v1045 = vunpack.c.l.b16 %v489
    %v1046 = vunpack.c.l.b16 %v490
    %v1047 = vunpack.c.h.b16 %v490
    %v1048 = vunpack.c.l.b16 %v491
    %v1049 = vunpack.c.h.b16 %v491
    %v1050 = vunpack.c.l.b16 %v492
    %v1051 = vunpack.c.l.b16 %v493
    %v1052 = vunpack.c.h.b16 %v493
    %v1053 = vunpack.c.l.b16 %v494
    %v1054 = vunpack.c.h.b16 %v494
    %v1055 = vunpack.c.l.b16 %v495
    %v1056 = vunpack.c.l.b16 %v496
    %v1057 = vunpack.c.h.b16 %v496
    %v1058 = vunpack.c.l.b16 %v497
    %v1059 = vunpack.c.h.b16 %v497
    %v1060 = vunpack.c.l.b16 %v498
    %v1061 = vunpack.c.l.b16 %v499
    %v1062 = vunpack.c.h.b16 %v499
    %v1063 = vunpack.c.l.b16 %v500
    %v1064 = vunpack.c.h.b16 %v500
    %v1065 = vunpack.c.l.b16 %v501
    %v1066 = vunpack.c.l.b16 %v502
    %v1067 = vunpack.c.h.b16 %v502
    %v1068 = vunpack.c.l.b16 %v503
    %v1069 = vunpack.c.h.b16 %v503
    %v1070 = vunpack.c.l.b16 %v504
    %v1071 = vunpack.c.l.b16 %v505
    %v1072 = vunpack.c.h.b16 %v505
    %v1073 = vunpack.c.l.b16 %v506
    %v1074 = vunpack.c.h.b16 %v506
    %v1075 = vunpack.c.l.b16 %v507
    %v1076 = vunpack.c.l.b16 %v508
    %v1077 = vunpack.c.h.b16 %v508
    %v1078 = vunpack.c.l.b16 %v509
    %v1079 = vunpack.c.h.b16 %v509
    %v1080 = vunpack.c.l.b16 %v510
    %v1081 = vunpack.c.l.b16 %v511
    %v1082 = vunpack.c.h.b16 %v511
    %v1083 = vunpack.c.l.b16 %v512
    %v1084 = vunpack.c.h.b16 %v512
    %v1085 = vunpack.c.l.b16 %v513
    %v1086 = vunpack.c.l.b16 %v514
    %v1087 = vunpack.c.h.b16 %v514
    %v1088 = vunpack.c.l.b16 %v515
    %v1089 = vunpack.c.h.b16 %v515
    %v1090 = vunpack.c.l.b16 %v516
    %v1091 = vunpack.c.l.b16 %v517
    %v1092 = vunpack.c.h.b16 %v517
    %v1093 = vunpack.c.l.b16 %v518
    %v1094 = vunpack.c.h.b16 %v518
    %v1095 = vunpack.c.l.b16 %v519
    %v1096 = vpack.c.b16 %v741, %v736
    %v1097 = vpack.c.b16 %v742, %v737
    %v1098 = vpack.c.b16 %v743, %v738
    %v1099 = vpack.c.b16 %v744, %v739
    %v1100 = vpack.c.b16 %v745, %v740
    %v1101 = vpack.c.b16 %v751, %v746
    %v1102 = vpack.c.b16 %v752, %v747
    %v1103 = vpack.c.b16 %v753, %v748
    %v1104 = vpack.c.b16 %v754, %v749
    %v1105 = vpack.c.b16 %v755, %v750
    %v1106 = vpack.c.b16 %v761, %v756
    %v1107 = vpack.c.b16 %v762, %v757
    %v1108 = vpack.c.b16 %v763, %v758
    %v1109 = vpack.c.b16 %v764, %v759
    %v1110 = vpack.c.b16 %v765, %v760
    %v1111 = vpack.c.b16 %v771, %v766
    %v1112 = vpack.c.b16 %v772, %v767
    %v1113 = vpack.c.b16 %v773, %v768
    %v1114 = vpack.c.b16 %v774, %v769
    %v1115 = vpack.c.b16 %v775, %v770
    %v1116 = vpack.c.b16 %v781, %v776
    %v1117 = vpack.c.b16 %v782, %v777
    %v1118 = vpack.c.b16 %v783, %v778
    %v1119 = vpack.c.b16 %v784, %v779
    %v1120 = vpack.c.b16 %v785, %v780
    %v1121 = vpack.c.b16 %v791, %v786
    %v1122 = vpack.c.b16 %v792, %v787
    %v1123 = vpack.c.b16 %v793, %v788
    %v1124 = vpack.c.b16 %v794, %v789
    %v1125 = vpack.c.b16 %v795, %v790
    %v1126 = vpack.c.b16 %v801, %v796
    %v1127 = vpack.c.b16 %v802, %v797
    %v1128 = vpack.c.b16 %v803, %v798
    %v1129 = vpack.c.b16 %v804, %v799
    %v1130 = vpack.c.b16 %v805, %v800
    %v1131 = vpack.c.b16 %v811, %v806
    %v1132 = vpack.c.b16 %v812, %v807
    %v1133 = vpack.c.b16 %v813, %v808
    %v1134 = vpack.c.b16 %v814, %v809
    %v1135 = vpack.c.b16 %v815, %v810
    %v1136 = vpack.c.b16 %v821, %v816
    %v1137 = vpack.c.b16 %v822, %v817
    %v1138 = vpack.c.b16 %v823, %v818
    %v1139 = vpack.c.b16 %v824, %v819
    %v1140 = vpack.c.b16 %v825, %v820
    %v1141 = vpack.c.b16 %v831, %v826
    %v1142 = vpack.c.b16 %v832, %v827
    %v1143 = vpack.c.b16 %v833, %v828
    %v1144 = vpack.c.b16 %v834, %v829
    %v1145 = vpack.c.b16 %v835, %v830
    %v1146 = vpack.c.b16 %v841, %v836
    %v1147 = vpack.c.b16 %v842, %v837
    %v1148 = vpack.c.b16 %v843, %v838
    %v1149 = vpack.c.b16 %v844, %v839
    %v1150 = vpack.c.b16 %v845, %v840
    %v1151 = vpack.c.b16 %v851, %v846
    %v1152 = vpack.c.b16 %v852, %v847
    %v1153 = vpack.c.b16 %v853, %v848
    %v1154 = vpack.c.b16 %v854, %v849
    %v1155 = vpack.c.b16 %v855, %v850
    %v1156 = vpack.c.b16 %v861, %v856
    %v1157 = vpack.c.b16 %v862, %v857
    %v1158 = vpack.c.b16 %v863, %v858
    %v1159 = vpack.c.b16 %v864, %v859
    %v1160 = vpack.c.b16 %v865, %v860
    %v1161 = vpack.c.b16 %v871, %v866
    %v1162 = vpack.c.b16 %v872, %v867
    %v1163 = vpack.c.b16 %v873, %v868
    %v1164 = vpack.c.b16 %v874, %v869
    %v1165 = vpack.c.b16 %v875, %v870
    %v1166 = vpack.c.b16 %v881, %v876
    %v1167 = vpack.c.b16 %v882, %v877
    %v1168 = vpack.c.b16 %v883, %v878
    %v1169 = vpack.c.b16 %v884, %v879
    %v1170 = vpack.c.b16 %v885, %v880
    %v1171 = vpack.c.b16 %v891, %v886
    %v1172 = vpack.c.b16 %v892, %v887
    %v1173 = vpack.c.b16 %v893, %v888
    %v1174 = vpack.c.b16 %v894, %v889
    %v1175 = vpack.c.b16 %v895, %v890
    %v1176 = vpack.c.b16 %v901, %v896
    %v1177 = vpack.c.b16 %v902, %v897
    %v1178 = vpack.c.b16 %v903, %v898
    %v1179 = vpack.c.b16 %v904, %v899
    %v1180 = vpack.c.b16 %v905, %v900
    %v1181 = vpack.c.b16 %v911, %v906
    %v1182 = vpack.c.b16 %v912, %v907
    %v1183 = vpack.c.b16 %v913, %v908
    %v1184 = vpack.c.b16 %v914, %v909
    %v1185 = vpack.c.b16 %v915, %v910
    %v1186 = vpack.c.b16 %v921, %v916
    %v1187 = vpack.c.b16 %v922, %v917
    %v1188 = vpack.c.b16 %v923, %v918
    %v1189 = vpack.c.b16 %v924, %v919
    %v1190 = vpack.c.b16 %v925, %v920
    %v1191 = vpack.c.b16 %v931, %v926
    %v1192 = vpack.c.b16 %v932, %v927
    %v1193 = vpack.c.b16 %v933, %v928
    %v1194 = vpack.c.b16 %v934, %v929
    %v1195 = vpack.c.b16 %v935, %v930
    %v1196 = vpack.c.b16 %v941, %v936
    %v1197 = vpack.c.b16 %v942, %v937
    %v1198 = vpack.c.b16 %v943, %v938
    %v1199 = vpack.c.b16 %v944, %v939
    %v1200 = vpack.c.b16 %v945, %v940
    %v1201 = vpack.c.b16 %v951, %v946
    %v1202 = vpack.c.b16 %v952, %v947
    %v1203 = vpack.c.b16 %v953, %v948
    %v1204 = vpack.c.b16 %v954, %v949
    %v1205 = vpack.c.b16 %v955, %v950
    %v1206 = vpack.c.b16 %v961, %v956
    %v1207 = vpack.c.b16 %v962, %v957
    %v1208 = vpack.c.b16 %v963, %v958
    %v1209 = vpack.c.b16 %v964, %v959
    %v1210 = vpack.c.b16 %v965, %v960
    %v1211 = vpack.c.b16 %v971, %v966
    %v1212 = vpack.c.b16 %v972, %v967
    %v1213 = vpack.c.b16 %v973, %v968
    %v1214 = vpack.c.b16 %v974, %v969
    %v1215 = vpack.c.b16 %v975, %v970
    %v1216 = vpack.c.b16 %v981, %v976
    %v1217 = vpack.c.b16 %v982, %v977
    %v1218 = vpack.c.b16 %v983, %v978
    %v1219 = vpack.c.b16 %v984, %v979
    %v1220 = vpack.c.b16 %v985, %v980
    %v1221 = vpack.c.b16 %v991, %v986
    %v1222 = vpack.c.b16 %v992, %v987
    %v1223 = vpack.c.b16 %v993, %v988
    %v1224 = vpack.c.b16 %v994, %v989
    %v1225 = vpack.c.b16 %v995, %v990
    %v1226 = vpack.c.b16 %v1001, %v996
    %v1227 = vpack.c.b16 %v1002, %v997
    %v1228 = vpack.c.b16 %v1003, %v998
    %v1229 = vpack.c.b16 %v1004, %v999
    %v1230 = vpack.c.b16 %v1005, %v1000
    %v1231 = vpack.c.b16 %v1011, %v1006
    %v1232 = vpack.c.b16 %v1012, %v1007
    %v1233 = vpack.c.b16 %v1013, %v1008
    %v1234 = vpack.c.b16 %v1014, %v1009
    %v1235 = vpack.c.b16 %v1015, %v1010
    %v1236 = vpack.c.b16 %v1021, %v1016
    %v1237 = vpack.c.b16 %v1022, %v1017
    %v1238 = vpack.c.b16 %v1023, %v1018
    %v1239 = vpack.c.b16 %v1024, %v1019
    %v1240 = vpack.c.b16 %v1025, %v1020
    %v1241 = vpack.c.b16 %v1031, %v1026
    %v1242 = vpack.c.b16 %v1032, %v1027
    %v1243 = vpack.c.b16 %v1033, %v1028
    %v1244 = vpack.c.b16 %v1034, %v1029
    %v1245 = vpack.c.b16 %v1035, %v1030
    %v1246 = vpack.c.b16 %v1041, %v1036
    %v1247 = vpack.c.b16 %v1042, %v1037
    %v1248 = vpack.c.b16 %v1043, %v1038
    %v1249 = vpack.c.b16 %v1044, %v1039
    %v1250 = vpack.c.b16 %v1045, %v1040
    %v1251 = vpack.c.b16 %v1051, %v1046
    %v1252 = vpack.c.b16 %v1052, %v1047
    %v1253 = vpack.c.b16 %v1053, %v1048
    %v1254 = vpack.c.b16 %v1054, %v1049
    %v1255 = vpack.c.b16 %v1055, %v1050
    %v1256 = vpack.c.b16 %v1061, %v1056
    %v1257 = vpack.c.b16 %v1062, %v1057
    %v1258 = vpack.c.b16 %v1063, %v1058
    %v1259 = vpack.c.b16 %v1064, %v1059
    %v1260 = vpack.c.b16 %v1065, %v1060
    %v1261 = vpack.c.b16 %v1071, %v1066
    %v1262 = vpack.c.b16 %v1072, %v1067
    %v1263 = vpack.c.b16 %v1073, %v1068
    %v1264 = vpack.c.b16 %v1074, %v1069
    %v1265 = vpack.c.b16 %v1075, %v1070
    %v1266 = vpack.c.b16 %v1081, %v1076
    %v1267 = vpack.c.b16 %v1082, %v1077
    %v1268 = vpack.c.b16 %v1083, %v1078
    %v1269 = vpack.c.b16 %v1084, %v1079
    %v1270 = vpack.c.b16 %v1085, %v1080
    %v1271 = vpack.c.b16 %v1091, %v1086
    %v1272 = vpack.c.b16 %v1092, %v1087
    %v1273 = vpack.c.b16 %v1093, %v1088
    %v1274 = vpack.c.b16 %v1094, %v1089
    %v1275 = vpack.c.b16 %v1095, %v1090
    %v1457 = vsel %vm48, %v303, 0
    %1459 = vmatprep.subr.bf16.mxu0 %v1097
    %1460 = vmatpush1.bf16.msra.mxu0 %v1096
    %1461 = vmatprep.subr.bf16.mxu0 %v1102
    %1462 = vmatpush1.bf16.msra.mxu0 %v1101
    %1463 = vmatprep.subr.bf16.mxu0 %v1107
    %1464 = vmatpush1.bf16.msra.mxu0 %v1106
    %1465 = vmatprep.subr.bf16.mxu0 %v1112
    %1466 = vmatpush1.bf16.msra.mxu0 %v1111
    %1467 = vmatprep.subr.bf16.mxu0 %v1117
    %1468 = vmatpush1.bf16.msra.mxu0 %v1116
    %1469 = vmatprep.subr.bf16.mxu0 %v1122
    %1470 = vmatpush1.bf16.msra.mxu0 %v1121
    %1471 = vmatprep.subr.bf16.mxu0 %v1127
    %1472 = vmatpush1.bf16.msra.mxu0 %v1126
    %1473 = vmatprep.subr.bf16.mxu0 %v1132
    %1474 = vmatpush1.bf16.msra.mxu0 %v1131
    %1475 = vmatprep.subr.bf16.mxu0 %v1137
    %1476 = vmatpush1.bf16.msra.mxu0 %v1136
    %1477 = vmatprep.subr.bf16.mxu0 %v1142
    %1478 = vmatpush1.bf16.msra.mxu0 %v1141
    %1479 = vmatprep.subr.bf16.mxu0 %v1147
    %1480 = vmatpush1.bf16.msra.mxu0 %v1146
    %1481 = vmatprep.subr.bf16.mxu0 %v1152
    %1482 = vmatpush1.bf16.msra.mxu0 %v1151
    %1483 = vmatprep.subr.bf16.mxu0 %v1157
    %1484 = vmatpush1.bf16.msra.mxu0 %v1156
    %1485 = vmatprep.subr.bf16.mxu0 %v1162
    %1486 = vmatpush1.bf16.msra.mxu0 %v1161
    %1487 = vmatprep.subr.bf16.mxu0 %v1167
    %1488 = vmatpush1.bf16.msra.mxu0 %v1166
    %1489 = vmatprep.subr.bf16.mxu0 %v1172
    %1490 = vmatpush1.bf16.msra.mxu0 %v1171
    %1491 = vmatprep.mubr.bf16.mxu0 %v300
    %1492 = vmatmul.mubr.bf16.gmra.mrb[0].mxu0 %v299
    %v1493 = vpop.f32.mrb[0].mxu0
    %v1494 = vadd.f32 0.0, %v1493
    %v1495 = vpop.f32.mrb[0].mxu0
    %v1496 = vadd.f32 0.0, %v1495
    %v1497 = vpop.f32.mrb[0].mxu0
    %v1498 = vpop.f32.mrb[0].mxu0
    %1499 = vdwg.mxu0
    %1500 = vmatprep.subr.bf16.mxu0 %v1177
    %1501 = vmatpush1.bf16.msra.mxu0 %v1176
    %1502 = vmatprep.subr.bf16.mxu0 %v1182
    %1503 = vmatpush1.bf16.msra.mxu0 %v1181
    %1504 = vmatprep.subr.bf16.mxu0 %v1187
    %1505 = vmatpush1.bf16.msra.mxu0 %v1186
    %1506 = vmatprep.subr.bf16.mxu0 %v1192
    %1507 = vmatpush1.bf16.msra.mxu0 %v1191
    %1508 = vmatprep.subr.bf16.mxu0 %v1197
    %1509 = vmatpush1.bf16.msra.mxu0 %v1196
    %1510 = vmatprep.subr.bf16.mxu0 %v1202
    %1511 = vmatpush1.bf16.msra.mxu0 %v1201
    %1512 = vmatprep.subr.bf16.mxu0 %v1207
    %1513 = vmatpush1.bf16.msra.mxu0 %v1206
    %1514 = vmatprep.subr.bf16.mxu0 %v1212
    %1515 = vmatpush1.bf16.msra.mxu0 %v1211
    %1516 = vmatprep.subr.bf16.mxu0 %v1217
    %1517 = vmatpush1.bf16.msra.mxu0 %v1216
    %1518 = vmatprep.subr.bf16.mxu0 %v1222
    %1519 = vmatpush1.bf16.msra.mxu0 %v1221
    %1520 = vmatprep.subr.bf16.mxu0 %v1227
    %1521 = vmatpush1.bf16.msra.mxu0 %v1226
    %1522 = vmatprep.subr.bf16.mxu0 %v1232
    %1523 = vmatpush1.bf16.msra.mxu0 %v1231
    %1524 = vmatprep.subr.bf16.mxu0 %v1237
    %1525 = vmatpush1.bf16.msra.mxu0 %v1236
    %1526 = vmatprep.subr.bf16.mxu0 %v1242
    %1527 = vmatpush1.bf16.msra.mxu0 %v1241
    %1528 = vmatprep.subr.bf16.mxu0 %v1247
    %1529 = vmatpush1.bf16.msra.mxu0 %v1246
    %1530 = vmatprep.subr.bf16.mxu0 %v1252
    %1531 = vmatpush1.bf16.msra.mxu0 %v1251
    %1532 = vmatprep.mubr.bf16.mxu0 %v302
    %1533 = vmatmul.mubr.bf16.gmra.mrb[0].mxu0 %v301
    %v1534 = vpop.f32.mrb[0].mxu0
    %v1535 = vadd.f32 %v1494, %v1534
    %v1536 = vpop.f32.mrb[0].mxu0
    %v1537 = vadd.f32 %v1496, %v1536
    %v1538 = vpop.f32.mrb[0].mxu0
    %v1539 = vpop.f32.mrb[0].mxu0
    %1540 = vdwg.mxu0
    %1541 = vmatprep.subr.bf16.mxu0 %v1257
    %1542 = vmatpush1.bf16.msra.mxu0 %v1256
    %1543 = vmatprep.subr.bf16.mxu0 %v1262
    %1544 = vmatpush1.bf16.msra.mxu0 %v1261
    %1545 = vmatprep.subr.bf16.mxu0 %v1267
    %1546 = vmatpush1.bf16.msra.mxu0 %v1266
    %1547 = vmatprep.subr.bf16.mxu0 %v1272
    %1548 = vmatpush1.bf16.msra.mxu0 %v1271
    %1549 = vmatprep.subr.bf16.mxu0 0
    %1550 = vmatpush1.bf16.msra.mxu0 0
    %1551 = vmatprep.subr.bf16.mxu0 0
    %1552 = vmatpush1.bf16.msra.mxu0 0
    %1553 = vmatprep.subr.bf16.mxu0 0
    %1554 = vmatpush1.bf16.msra.mxu0 0
    %1555 = vmatprep.subr.bf16.mxu0 0
    %1556 = vmatpush1.bf16.msra.mxu0 0
    %1557 = vmatprep.subr.bf16.mxu0 0
    %1558 = vmatpush1.bf16.msra.mxu0 0
    %1559 = vmatprep.subr.bf16.mxu0 0
    %1560 = vmatpush1.bf16.msra.mxu0 0
    %1561 = vmatprep.subr.bf16.mxu0 0
    %1562 = vmatpush1.bf16.msra.mxu0 0
    %1563 = vmatprep.subr.bf16.mxu0 0
    %1564 = vmatpush1.bf16.msra.mxu0 0
    %1565 = vmatprep.subr.bf16.mxu0 0
    %1566 = vmatpush1.bf16.msra.mxu0 0
    %1567 = vmatprep.subr.bf16.mxu0 0
    %1568 = vmatpush1.bf16.msra.mxu0 0
    %1569 = vmatprep.subr.bf16.mxu0 0
    %1570 = vmatpush1.bf16.msra.mxu0 0
    %1571 = vmatprep.subr.bf16.mxu0 0
    %1572 = vmatpush1.bf16.msra.mxu0 0
    %1573 = vmatprep.mubr.bf16.mxu0 0
    %1574 = vmatmul.mubr.bf16.gmra.mrb[0].mxu0 %v1457
    %v1575 = vpop.f32.mrb[0].mxu0
    %v1576 = vadd.f32 %v1535, %v1575
    %v1577 = vpop.f32.mrb[0].mxu0
    %v1578 = vadd.f32 %v1537, %v1577
    %v1579 = vpop.f32.mrb[0].mxu0
    %v1580 = vpop.f32.mrb[0].mxu0
    %1581 = vdwg.mxu0
    %1582 = vmatprep.subr.bf16.mxu0 %v1099
    %1583 = vmatpush1.bf16.msra.mxu0 %v1098
    %1584 = vmatprep.subr.bf16.mxu0 %v1104
    %1585 = vmatpush1.bf16.msra.mxu0 %v1103
    %1586 = vmatprep.subr.bf16.mxu0 %v1109
    %1587 = vmatpush1.bf16.msra.mxu0 %v1108
    %1588 = vmatprep.subr.bf16.mxu0 %v1114
    %1589 = vmatpush1.bf16.msra.mxu0 %v1113
    %1590 = vmatprep.subr.bf16.mxu0 %v1119
    %1591 = vmatpush1.bf16.msra.mxu0 %v1118
    %1592 = vmatprep.subr.bf16.mxu0 %v1124
    %1593 = vmatpush1.bf16.msra.mxu0 %v1123
    %1594 = vmatprep.subr.bf16.mxu0 %v1129
    %1595 = vmatpush1.bf16.msra.mxu0 %v1128
    %1596 = vmatprep.subr.bf16.mxu0 %v1134
    %1597 = vmatpush1.bf16.msra.mxu0 %v1133
    %1598 = vmatprep.subr.bf16.mxu0 %v1139
    %1599 = vmatpush1.bf16.msra.mxu0 %v1138
    %1600 = vmatprep.subr.bf16.mxu0 %v1144
    %1601 = vmatpush1.bf16.msra.mxu0 %v1143
    %1602 = vmatprep.subr.bf16.mxu0 %v1149
    %1603 = vmatpush1.bf16.msra.mxu0 %v1148
    %1604 = vmatprep.subr.bf16.mxu0 %v1154
    %1605 = vmatpush1.bf16.msra.mxu0 %v1153
    %1606 = vmatprep.subr.bf16.mxu0 %v1159
    %1607 = vmatpush1.bf16.msra.mxu0 %v1158
    %1608 = vmatprep.subr.bf16.mxu0 %v1164
    %1609 = vmatpush1.bf16.msra.mxu0 %v1163
    %1610 = vmatprep.subr.bf16.mxu0 %v1169
    %1611 = vmatpush1.bf16.msra.mxu0 %v1168
    %1612 = vmatprep.subr.bf16.mxu0 %v1174
    %1613 = vmatpush1.bf16.msra.mxu0 %v1173
    %1614 = vmatprep.mubr.bf16.mxu0 %v300
    %1615 = vmatmul.mubr.bf16.gmra.mrb[0].mxu0 %v299
    %v1616 = vpop.f32.mrb[0].mxu0
    %v1617 = vadd.f32 0.0, %v1616
    %v1618 = vpop.f32.mrb[0].mxu0
    %v1619 = vadd.f32 0.0, %v1618
    %v1620 = vpop.f32.mrb[0].mxu0
    %v1621 = vpop.f32.mrb[0].mxu0
    %1622 = vdwg.mxu0
    %1623 = vmatprep.subr.bf16.mxu0 %v1179
    %1624 = vmatpush1.bf16.msra.mxu0 %v1178
    %1625 = vmatprep.subr.bf16.mxu0 %v1184
    %1626 = vmatpush1.bf16.msra.mxu0 %v1183
    %1627 = vmatprep.subr.bf16.mxu0 %v1189
    %1628 = vmatpush1.bf16.msra.mxu0 %v1188
    %1629 = vmatprep.subr.bf16.mxu0 %v1194
    %1630 = vmatpush1.bf16.msra.mxu0 %v1193
    %1631 = vmatprep.subr.bf16.mxu0 %v1199
    %1632 = vmatpush1.bf16.msra.mxu0 %v1198
    %1633 = vmatprep.subr.bf16.mxu0 %v1204
    %1634 = vmatpush1.bf16.msra.mxu0 %v1203
    %1635 = vmatprep.subr.bf16.mxu0 %v1209
    %1636 = vmatpush1.bf16.msra.mxu0 %v1208
    %1637 = vmatprep.subr.bf16.mxu0 %v1214
    %1638 = vmatpush1.bf16.msra.mxu0 %v1213
    %1639 = vmatprep.subr.bf16.mxu0 %v1219
    %1640 = vmatpush1.bf16.msra.mxu0 %v1218
    %1641 = vmatprep.subr.bf16.mxu0 %v1224
    %1642 = vmatpush1.bf16.msra.mxu0 %v1223
    %1643 = vmatprep.subr.bf16.mxu0 %v1229
    %1644 = vmatpush1.bf16.msra.mxu0 %v1228
    %1645 = vmatprep.subr.bf16.mxu0 %v1234
    %1646 = vmatpush1.bf16.msra.mxu0 %v1233
    %1647 = vmatprep.subr.bf16.mxu0 %v1239
    %1648 = vmatpush1.bf16.msra.mxu0 %v1238
    %1649 = vmatprep.subr.bf16.mxu0 %v1244
    %1650 = vmatpush1.bf16.msra.mxu0 %v1243
    %1651 = vmatprep.subr.bf16.mxu0 %v1249
    %1652 = vmatpush1.bf16.msra.mxu0 %v1248
    %1653 = vmatprep.subr.bf16.mxu0 %v1254
    %1654 = vmatpush1.bf16.msra.mxu0 %v1253
    %1655 = vmatprep.mubr.bf16.mxu0 %v302
    %1656 = vmatmul.mubr.bf16.gmra.mrb[0].mxu0 %v301
    %v1657 = vpop.f32.mrb[0].mxu0
    %v1658 = vadd.f32 %v1617, %v1657
    %v1659 = vpop.f32.mrb[0].mxu0
    %v1660 = vadd.f32 %v1619, %v1659
    %v1661 = vpop.f32.mrb[0].mxu0
    %v1662 = vpop.f32.mrb[0].mxu0
    %1663 = vdwg.mxu0
    %1664 = vmatprep.subr.bf16.mxu0 %v1259
    %1665 = vmatpush1.bf16.msra.mxu0 %v1258
    %1666 = vmatprep.subr.bf16.mxu0 %v1264
    %1667 = vmatpush1.bf16.msra.mxu0 %v1263
    %1668 = vmatprep.subr.bf16.mxu0 %v1269
    %1669 = vmatpush1.bf16.msra.mxu0 %v1268
    %1670 = vmatprep.subr.bf16.mxu0 %v1274
    %1671 = vmatpush1.bf16.msra.mxu0 %v1273
    %1672 = vmatprep.subr.bf16.mxu0 0
    %1673 = vmatpush1.bf16.msra.mxu0 0
    %1674 = vmatprep.subr.bf16.mxu0 0
    %1675 = vmatpush1.bf16.msra.mxu0 0
    %1676 = vmatprep.subr.bf16.mxu0 0
    %1677 = vmatpush1.bf16.msra.mxu0 0
    %1678 = vmatprep.subr.bf16.mxu0 0
    %1679 = vmatpush1.bf16.msra.mxu0 0
    %1680 = vmatprep.subr.bf16.mxu0 0
    %1681 = vmatpush1.bf16.msra.mxu0 0
    %1682 = vmatprep.subr.bf16.mxu0 0
    %1683 = vmatpush1.bf16.msra.mxu0 0
    %1684 = vmatprep.subr.bf16.mxu0 0
    %1685 = vmatpush1.bf16.msra.mxu0 0
    %1686 = vmatprep.subr.bf16.mxu0 0
    %1687 = vmatpush1.bf16.msra.mxu0 0
    %1688 = vmatprep.subr.bf16.mxu0 0
    %1689 = vmatpush1.bf16.msra.mxu0 0
    %1690 = vmatprep.subr.bf16.mxu0 0
    %1691 = vmatpush1.bf16.msra.mxu0 0
    %1692 = vmatprep.subr.bf16.mxu0 0
    %1693 = vmatpush1.bf16.msra.mxu0 0
    %1694 = vmatprep.subr.bf16.mxu0 0
    %1695 = vmatpush1.bf16.msra.mxu0 0
    %1696 = vmatprep.mubr.bf16.mxu0 0
    %1697 = vmatmul.mubr.bf16.gmra.mrb[0].mxu0 %v1457
    %v1698 = vpop.f32.mrb[0].mxu0
    %v1699 = vadd.f32 %v1658, %v1698
    %v1700 = vpop.f32.mrb[0].mxu0
    %v1701 = vadd.f32 %v1660, %v1700
    %v1702 = vpop.f32.mrb[0].mxu0
    %v1703 = vpop.f32.mrb[0].mxu0
    %1704 = vdwg.mxu0
    %1705 = vmatprep.subr.bf16.mxu0 0
    %1706 = vmatpush1.bf16.msra.mxu0 %v1100
    %1707 = vmatprep.subr.bf16.mxu0 0
    %1708 = vmatpush1.bf16.msra.mxu0 %v1105
    %1709 = vmatprep.subr.bf16.mxu0 0
    %1710 = vmatpush1.bf16.msra.mxu0 %v1110
    %1711 = vmatprep.subr.bf16.mxu0 0
    %1712 = vmatpush1.bf16.msra.mxu0 %v1115
    %1713 = vmatprep.subr.bf16.mxu0 0
    %1714 = vmatpush1.bf16.msra.mxu0 %v1120
    %1715 = vmatprep.subr.bf16.mxu0 0
    %1716 = vmatpush1.bf16.msra.mxu0 %v1125
    %1717 = vmatprep.subr.bf16.mxu0 0
    %1718 = vmatpush1.bf16.msra.mxu0 %v1130
    %1719 = vmatprep.subr.bf16.mxu0 0
    %1720 = vmatpush1.bf16.msra.mxu0 %v1135
    %1721 = vmatprep.subr.bf16.mxu0 0
    %1722 = vmatpush1.bf16.msra.mxu0 %v1140
    %1723 = vmatprep.subr.bf16.mxu0 0
    %1724 = vmatpush1.bf16.msra.mxu0 %v1145
    %1725 = vmatprep.subr.bf16.mxu0 0
    %1726 = vmatpush1.bf16.msra.mxu0 %v1150
    %1727 = vmatprep.subr.bf16.mxu0 0
    %1728 = vmatpush1.bf16.msra.mxu0 %v1155
    %1729 = vmatprep.subr.bf16.mxu0 0
    %1730 = vmatpush1.bf16.msra.mxu0 %v1160
    %1731 = vmatprep.subr.bf16.mxu0 0
    %1732 = vmatpush1.bf16.msra.mxu0 %v1165
    %1733 = vmatprep.subr.bf16.mxu0 0
    %1734 = vmatpush1.bf16.msra.mxu0 %v1170
    %1735 = vmatprep.subr.bf16.mxu0 0
    %1736 = vmatpush1.bf16.msra.mxu0 %v1175
    %1737 = vmatprep.mubr.bf16.mxu0 %v300
    %1738 = vmatmul.mubr.bf16.gmra.mrb[0].mxu0 %v299
    %v1739 = vpop.f32.mrb[0].mxu0
    %v1740 = vadd.f32 0.0, %v1739
    %v1741 = vpop.f32.mrb[0].mxu0
    %v1742 = vpop.f32.mrb[0].mxu0
    %v1743 = vpop.f32.mrb[0].mxu0
    %1744 = vdwg.mxu0
    %1745 = vmatprep.subr.bf16.mxu0 0
    %1746 = vmatpush1.bf16.msra.mxu0 %v1180
    %1747 = vmatprep.subr.bf16.mxu0 0
    %1748 = vmatpush1.bf16.msra.mxu0 %v1185
    %1749 = vmatprep.subr.bf16.mxu0 0
    %1750 = vmatpush1.bf16.msra.mxu0 %v1190
    %1751 = vmatprep.subr.bf16.mxu0 0
    %1752 = vmatpush1.bf16.msra.mxu0 %v1195
    %1753 = vmatprep.subr.bf16.mxu0 0
    %1754 = vmatpush1.bf16.msra.mxu0 %v1200
    %1755 = vmatprep.subr.bf16.mxu0 0
    %1756 = vmatpush1.bf16.msra.mxu0 %v1205
    %1757 = vmatprep.subr.bf16.mxu0 0
    %1758 = vmatpush1.bf16.msra.mxu0 %v1210
    %1759 = vmatprep.subr.bf16.mxu0 0
    %1760 = vmatpush1.bf16.msra.mxu0 %v1215
    %1761 = vmatprep.subr.bf16.mxu0 0
    %1762 = vmatpush1.bf16.msra.mxu0 %v1220
    %1763 = vmatprep.subr.bf16.mxu0 0
    %1764 = vmatpush1.bf16.msra.mxu0 %v1225
    %1765 = vmatprep.subr.bf16.mxu0 0
    %1766 = vmatpush1.bf16.msra.mxu0 %v1230
    %1767 = vmatprep.subr.bf16.mxu0 0
    %1768 = vmatpush1.bf16.msra.mxu0 %v1235
    %1769 = vmatprep.subr.bf16.mxu0 0
    %1770 = vmatpush1.bf16.msra.mxu0 %v1240
    %1771 = vmatprep.subr.bf16.mxu0 0
    %1772 = vmatpush1.bf16.msra.mxu0 %v1245
    %1773 = vmatprep.subr.bf16.mxu0 0
    %1774 = vmatpush1.bf16.msra.mxu0 %v1250
    %1775 = vmatprep.subr.bf16.mxu0 0
    %1776 = vmatpush1.bf16.msra.mxu0 %v1255
    %1777 = vmatprep.mubr.bf16.mxu0 %v302
    %1778 = vmatmul.mubr.bf16.gmra.mrb[0].mxu0 %v301
    %v1779 = vpop.f32.mrb[0].mxu0
    %v1780 = vadd.f32 %v1740, %v1779
    %v1781 = vpop.f32.mrb[0].mxu0
    %v1782 = vpop.f32.mrb[0].mxu0
    %v1783 = vpop.f32.mrb[0].mxu0
    %1784 = vdwg.mxu0
    %1785 = vmatprep.subr.bf16.mxu0 0
    %1786 = vmatpush1.bf16.msra.mxu0 %v1260
    %1787 = vmatprep.subr.bf16.mxu0 0
    %1788 = vmatpush1.bf16.msra.mxu0 %v1265
    %1789 = vmatprep.subr.bf16.mxu0 0
    %1790 = vmatpush1.bf16.msra.mxu0 %v1270
    %1791 = vmatprep.subr.bf16.mxu0 0
    %1792 = vmatpush1.bf16.msra.mxu0 %v1275
    %1793 = vmatprep.subr.bf16.mxu0 0
    %1794 = vmatpush1.bf16.msra.mxu0 0
    %1795 = vmatprep.subr.bf16.mxu0 0
    %1796 = vmatpush1.bf16.msra.mxu0 0
    %1797 = vmatprep.subr.bf16.mxu0 0
    %1798 = vmatpush1.bf16.msra.mxu0 0
    %1799 = vmatprep.subr.bf16.mxu0 0
    %1800 = vmatpush1.bf16.msra.mxu0 0
    %1801 = vmatprep.subr.bf16.mxu0 0
    %1802 = vmatpush1.bf16.msra.mxu0 0
    %1803 = vmatprep.subr.bf16.mxu0 0
    %1804 = vmatpush1.bf16.msra.mxu0 0
    %1805 = vmatprep.subr.bf16.mxu0 0
    %1806 = vmatpush1.bf16.msra.mxu0 0
    %1807 = vmatprep.subr.bf16.mxu0 0
    %1808 = vmatpush1.bf16.msra.mxu0 0
    %1809 = vmatprep.subr.bf16.mxu0 0
    %1810 = vmatpush1.bf16.msra.mxu0 0
    %1811 = vmatprep.subr.bf16.mxu0 0
    %1812 = vmatpush1.bf16.msra.mxu0 0
    %1813 = vmatprep.subr.bf16.mxu0 0
    %1814 = vmatpush1.bf16.msra.mxu0 0
    %1815 = vmatprep.subr.bf16.mxu0 0
    %1816 = vmatpush1.bf16.msra.mxu0 0
    %1817 = vmatprep.mubr.bf16.mxu0 0
    %1818 = vmatmul.mubr.bf16.gmra.mrb[0].mxu0 %v1457
    %v1819 = vpop.f32.mrb[0].mxu0
    %v1820 = vadd.f32 %v1780, %v1819
    %v1821 = vpop.f32.mrb[0].mxu0
    %v1822 = vpop.f32.mrb[0].mxu0
    %v1823 = vpop.f32.mrb[0].mxu0
    %1824 = vdwg.mxu0
    %1827 = vrot.lane.b32.xlu0 %v1578, 112
    %v1828 = vpop.permute.xlu0 %1827
    %1829 = vrot.lane.b32.xlu0 %v1699, 112
    %v1830 = vpop.permute.xlu0 %1829
    %vm1831 = vcmask 916480
    %v1832 = vsel %vm1831, %v1828, %v1830
    %v1835 = vmax.f32 %v1576, %v1832
    %v1836 = vmax.f32 %v1578, %v1830
    %1839 = vrot.lane.b32.xlu0 %v1701, 112
    %v1840 = vpop.permute.xlu0 %1839
    %1841 = vrot.lane.b32.xlu0 %v1820, 112
    %v1842 = vpop.permute.xlu0 %1841
    %v1843 = vsel %vm1831, %v1840, %v1842
    %v1846 = vmax.f32 %v1699, %v1843
    %v1847 = vmax.f32 %v1701, %v1842
    %1850 = vrot.lane.b32.xlu0 %v1846, 96
    %v1851 = vpop.permute.xlu0 %1850
    %1852 = vrot.lane.b32.xlu0 %v1847, 96
    %v1853 = vpop.permute.xlu0 %1852
    %vm1854 = vcmask 785408
    %v1855 = vsel %vm1854, %v1851, %v1853
    %v1858 = vmax.f32 %v1835, %v1855
    %v1859 = vmax.f32 %v1836, %v1853
    %v1860 = vpack.c.bf16 %v1858, %v1858
    %v1861 = vpack.c.bf16 %v1859, %v1859
    %v1862 = vld [vmem:[%s4] sm:$0xf]
    %v1863 = vld [vmem:[%s4 + $0x4] sm:$0xf]
    %v1864 = vld [vmem:[%s4 + $0x8] sm:$0xf]
    %v1865 = vld [vmem:[%s4 + $0xc] sm:$0xf]
    %v1866 = vld [vmem:[%s4 + $0x10] sm:$0xf]
    %v1867 = vld [vmem:[%s4 + $0x14] sm:$0xf]
    %v1868 = vld [vmem:[%s4 + $0x18] sm:$0xf]
    %v1869 = vld [vmem:[%s4 + $0x1c] sm:$0xf]
    %v1870 = vld [vmem:[%s4 + $0x20] sm:$0xf]
    %v1871 = vld [vmem:[%s4 + $0x24] sm:$0xf]
    %v1872 = vld [vmem:[%s4 + $0x28] sm:$0xf]
    %v1873 = vld [vmem:[%s4 + $0x2c] sm:$0xf]
    %v1874 = vld [vmem:[%s4 + $0x30] sm:$0xf]
    %v1875 = vld [vmem:[%s4 + $0x34] sm:$0xf]
    %v1876 = vld [vmem:[%s4 + $0x38] sm:$0xf]
    %v1877 = vld [vmem:[%s4 + $0x3c] sm:$0xf]
    %v1878 = vld [vmem:[%s4 + $0x40] sm:$0xf]
    %v1879 = vld [vmem:[%s4 + $0x44] sm:$0xf]
    %v1898 = vunpack.c.l.b16 %v1862
    %v1899 = vunpack.c.l.b16 %v1863
    %v1900 = vunpack.c.l.b16 %v1864
    %v1901 = vunpack.c.l.b16 %v1865
    %v1902 = vunpack.c.l.b16 %v1866
    %v1903 = vunpack.c.l.b16 %v1867
    %v1904 = vunpack.c.l.b16 %v1868
    %v1905 = vunpack.c.l.b16 %v1869
    %v1906 = vunpack.c.l.b16 %v1870
    %v1907 = vunpack.c.l.b16 %v1871
    %v1908 = vunpack.c.l.b16 %v1872
    %v1909 = vunpack.c.l.b16 %v1873
    %v1910 = vunpack.c.l.b16 %v1874
    %v1911 = vunpack.c.l.b16 %v1875
    %v1912 = vunpack.c.l.b16 %v1876
    %v1913 = vunpack.c.l.b16 %v1877
    %v1914 = vunpack.c.l.b16 %v1878
    %v1915 = vunpack.c.l.b16 %v1879
    %v1916 = vpack.c.b16 %v1899, %v1898
    %v1917 = vpack.c.b16 %v1901, %v1900
    %v1918 = vpack.c.b16 %v1903, %v1902
    %v1919 = vpack.c.b16 %v1905, %v1904
    %v1920 = vpack.c.b16 %v1907, %v1906
    %v1921 = vpack.c.b16 %v1909, %v1908
    %v1922 = vpack.c.b16 %v1911, %v1910
    %v1923 = vpack.c.b16 %v1913, %v1912
    %v1924 = vpack.c.b16 %v1915, %v1914
    %vm1934 = vcmask 130048
    %v1936 = vsel %vm1934, %v1861, 0
    %1938 = vmatprep.subr.bf16.mxu0 0
    %1939 = vmatpush1.bf16.msra.mxu0 %v1916
    %1940 = vmatprep.subr.bf16.mxu0 0
    %1941 = vmatpush1.bf16.msra.mxu0 %v1917
    %1942 = vmatprep.subr.bf16.mxu0 0
    %1943 = vmatpush1.bf16.msra.mxu0 %v1918
    %1944 = vmatprep.subr.bf16.mxu0 0
    %1945 = vmatpush1.bf16.msra.mxu0 %v1919
    %1946 = vmatprep.subr.bf16.mxu0 0
    %1947 = vmatpush1.bf16.msra.mxu0 %v1920
    %1948 = vmatprep.subr.bf16.mxu0 0
    %1949 = vmatpush1.bf16.msra.mxu0 %v1921
    %1950 = vmatprep.subr.bf16.mxu0 0
    %1951 = vmatpush1.bf16.msra.mxu0 %v1922
    %1952 = vmatprep.subr.bf16.mxu0 0
    %1953 = vmatpush1.bf16.msra.mxu0 %v1923
    %1954 = vmatprep.subr.bf16.mxu0 0
    %1955 = vmatpush1.bf16.msra.mxu0 %v1924
    %1956 = vmatprep.subr.bf16.mxu0 0
    %1957 = vmatpush1.bf16.msra.mxu0 0
    %1958 = vmatprep.subr.bf16.mxu0 0
    %1959 = vmatpush1.bf16.msra.mxu0 0
    %1960 = vmatprep.subr.bf16.mxu0 0
    %1961 = vmatpush1.bf16.msra.mxu0 0
    %1962 = vmatprep.subr.bf16.mxu0 0
    %1963 = vmatpush1.bf16.msra.mxu0 0
    %1964 = vmatprep.subr.bf16.mxu0 0
    %1965 = vmatpush1.bf16.msra.mxu0 0
    %1966 = vmatprep.subr.bf16.mxu0 0
    %1967 = vmatpush1.bf16.msra.mxu0 0
    %1968 = vmatprep.subr.bf16.mxu0 0
    %1969 = vmatpush1.bf16.msra.mxu0 0
    %1970 = vmatprep.mubr.bf16.mxu0 %v1936
    %1971 = vmatmul.mubr.bf16.gmra.mrb[0].mxu0 %v1860
    %v1972 = vpop.f32.mrb[0].mxu0
    %v1973 = vadd.f32 0.0, %v1972
    %v1974 = vpop.f32.mrb[0].mxu0
    %v1975 = vpop.f32.mrb[0].mxu0
    %v1976 = vpop.f32.mrb[0].mxu0
    %1977 = vdwg.mxu0
    %vm1978 = vcmask 521216
    %1979 = vst.msk [vmem:[#allocation2] sm:$0x3f] %vm1978, %v1973
    %s1980 = scalar_lea.vmem %s4, 72
    %v1981 = vld [vmem:[%s1980] sm:$0xf]
    %v1982 = vld [vmem:[%s1980 + $0x4] sm:$0xf]
    %v1983 = vld [vmem:[%s1980 + $0x8] sm:$0xf]
    %v1984 = vld [vmem:[%s1980 + $0xc] sm:$0xf]
    %v1985 = vld [vmem:[%s1980 + $0x10] sm:$0xf]
    %v1986 = vld [vmem:[%s1980 + $0x14] sm:$0xf]
    %v1987 = vld [vmem:[%s1980 + $0x18] sm:$0xf]
    %v1988 = vld [vmem:[%s1980 + $0x1c] sm:$0xf]
    %v1989 = vld [vmem:[%s1980 + $0x20] sm:$0xf]
    %v1990 = vld [vmem:[%s1980 + $0x24] sm:$0xf]
    %v1991 = vld [vmem:[%s1980 + $0x28] sm:$0xf]
    %v1992 = vld [vmem:[%s1980 + $0x2c] sm:$0xf]
    %v1993 = vld [vmem:[%s1980 + $0x30] sm:$0xf]
    %v1994 = vld [vmem:[%s1980 + $0x34] sm:$0xf]
    %v1995 = vld [vmem:[%s1980 + $0x38] sm:$0xf]
    %v1996 = vld [vmem:[%s1980 + $0x3c] sm:$0xf]
    %v1997 = vld [vmem:[%s1980 + $0x40] sm:$0xf]
    %v1998 = vld [vmem:[%s1980 + $0x44] sm:$0xf]
    %v2017 = vunpack.c.l.b16 %v1981
    %v2018 = vunpack.c.l.b16 %v1982
    %v2019 = vunpack.c.l.b16 %v1983
    %v2020 = vunpack.c.l.b16 %v1984
    %v2021 = vunpack.c.l.b16 %v1985
    %v2022 = vunpack.c.l.b16 %v1986
    %v2023 = vunpack.c.l.b16 %v1987
    %v2024 = vunpack.c.l.b16 %v1988
    %v2025 = vunpack.c.l.b16 %v1989
    %v2026 = vunpack.c.l.b16 %v1990
    %v2027 = vunpack.c.l.b16 %v1991
    %v2028 = vunpack.c.l.b16 %v1992
    %v2029 = vunpack.c.l.b16 %v1993
    %v2030 = vunpack.c.l.b16 %v1994
    %v2031 = vunpack.c.l.b16 %v1995
    %v2032 = vunpack.c.l.b16 %v1996
    %v2033 = vunpack.c.l.b16 %v1997
    %v2034 = vunpack.c.l.b16 %v1998
    %v2035 = vpack.c.b16 %v2018, %v2017
    %v2036 = vpack.c.b16 %v2020, %v2019
    %v2037 = vpack.c.b16 %v2022, %v2021
    %v2038 = vpack.c.b16 %v2024, %v2023
    %v2039 = vpack.c.b16 %v2026, %v2025
    %v2040 = vpack.c.b16 %v2028, %v2027
    %v2041 = vpack.c.b16 %v2030, %v2029
    %v2042 = vpack.c.b16 %v2032, %v2031
    %v2043 = vpack.c.b16 %v2034, %v2033
    %2053 = vmatprep.subr.bf16.mxu0 0
    %2054 = vmatpush1.bf16.msra.mxu0 %v2035
    %2055 = vmatprep.subr.bf16.mxu0 0
    %2056 = vmatpush1.bf16.msra.mxu0 %v2036
    %2057 = vmatprep.subr.bf16.mxu0 0
    %2058 = vmatpush1.bf16.msra.mxu0 %v2037
    %2059 = vmatprep.subr.bf16.mxu0 0
    %2060 = vmatpush1.bf16.msra.mxu0 %v2038
    %2061 = vmatprep.subr.bf16.mxu0 0
    %2062 = vmatpush1.bf16.msra.mxu0 %v2039
    %2063 = vmatprep.subr.bf16.mxu0 0
    %2064 = vmatpush1.bf16.msra.mxu0 %v2040
    %2065 = vmatprep.subr.bf16.mxu0 0
    %2066 = vmatpush1.bf16.msra.mxu0 %v2041
    %2067 = vmatprep.subr.bf16.mxu0 0
    %2068 = vmatpush1.bf16.msra.mxu0 %v2042
    %2069 = vmatprep.subr.bf16.mxu0 0
    %2070 = vmatpush1.bf16.msra.mxu0 %v2043
    %2071 = vmatprep.subr.bf16.mxu0 0
    %2072 = vmatpush1.bf16.msra.mxu0 0
    %2073 = vmatprep.subr.bf16.mxu0 0
    %2074 = vmatpush1.bf16.msra.mxu0 0
    %2075 = vmatprep.subr.bf16.mxu0 0
    %2076 = vmatpush1.bf16.msra.mxu0 0
    %2077 = vmatprep.subr.bf16.mxu0 0
    %2078 = vmatpush1.bf16.msra.mxu0 0
    %2079 = vmatprep.subr.bf16.mxu0 0
    %2080 = vmatpush1.bf16.msra.mxu0 0
    %2081 = vmatprep.subr.bf16.mxu0 0
    %2082 = vmatpush1.bf16.msra.mxu0 0
    %2083 = vmatprep.subr.bf16.mxu0 0
    %2084 = vmatpush1.bf16.msra.mxu0 0
    %2085 = vmatprep.mubr.bf16.mxu0 %v1936
    %2086 = vmatmul.mubr.bf16.gmra.mrb[0].mxu0 %v1860
    %v2087 = vpop.f32.mrb[0].mxu0
    %v2088 = vadd.f32 0.0, %v2087
    %v2089 = vpop.f32.mrb[0].mxu0
    %v2090 = vpop.f32.mrb[0].mxu0
    %v2091 = vpop.f32.mrb[0].mxu0
    %2092 = vdwg.mxu0
    %2093 = vst.msk [vmem:[#allocation2 + $0x8] sm:$0x3f] %vm1978, %v2088
    %s2094 = scalar_lea.vmem %s4, 144
    %v2095 = vld [vmem:[%s2094] sm:$0xf]
    %v2096 = vld [vmem:[%s2094 + $0x4] sm:$0xf]
    %v2097 = vld [vmem:[%s2094 + $0x8] sm:$0xf]
    %v2098 = vld [vmem:[%s2094 + $0xc] sm:$0xf]
    %v2099 = vld [vmem:[%s2094 + $0x10] sm:$0xf]
    %v2100 = vld [vmem:[%s2094 + $0x14] sm:$0xf]
    %v2101 = vld [vmem:[%s2094 + $0x18] sm:$0xf]
    %v2102 = vld [vmem:[%s2094 + $0x1c] sm:$0xf]
    %v2103 = vld [vmem:[%s2094 + $0x20] sm:$0xf]
    %v2104 = vld [vmem:[%s2094 + $0x24] sm:$0xf]
    %v2105 = vld [vmem:[%s2094 + $0x28] sm:$0xf]
    %v2106 = vld [vmem:[%s2094 + $0x2c] sm:$0xf]
    %v2107 = vld [vmem:[%s2094 + $0x30] sm:$0xf]
    %v2108 = vld [vmem:[%s2094 + $0x34] sm:$0xf]
    %v2109 = vld [vmem:[%s2094 + $0x38] sm:$0xf]
    %v2110 = vld [vmem:[%s2094 + $0x3c] sm:$0xf]
    %v2111 = vld [vmem:[%s2094 + $0x40] sm:$0xf]
    %v2112 = vld [vmem:[%s2094 + $0x44] sm:$0xf]
    %v2131 = vunpack.c.l.b16 %v2095
    %v2132 = vunpack.c.l.b16 %v2096
    %v2133 = vunpack.c.l.b16 %v2097
    %v2134 = vunpack.c.l.b16 %v2098
    %v2135 = vunpack.c.l.b16 %v2099
    %v2136 = vunpack.c.l.b16 %v2100
    %v2137 = vunpack.c.l.b16 %v2101
    %v2138 = vunpack.c.l.b16 %v2102
    %v2139 = vunpack.c.l.b16 %v2103
    %v2140 = vunpack.c.l.b16 %v2104
    %v2141 = vunpack.c.l.b16 %v2105
    %v2142 = vunpack.c.l.b16 %v2106
    %v2143 = vunpack.c.l.b16 %v2107
    %v2144 = vunpack.c.l.b16 %v2108
    %v2145 = vunpack.c.l.b16 %v2109
    %v2146 = vunpack.c.l.b16 %v2110
    %v2147 = vunpack.c.l.b16 %v2111
    %v2148 = vunpack.c.l.b16 %v2112
    %v2149 = vpack.c.b16 %v2132, %v2131
    %v2150 = vpack.c.b16 %v2134, %v2133
    %v2151 = vpack.c.b16 %v2136, %v2135
    %v2152 = vpack.c.b16 %v2138, %v2137
    %v2153 = vpack.c.b16 %v2140, %v2139
    %v2154 = vpack.c.b16 %v2142, %v2141
    %v2155 = vpack.c.b16 %v2144, %v2143
    %v2156 = vpack.c.b16 %v2146, %v2145
    %v2157 = vpack.c.b16 %v2148, %v2147
    %2167 = vmatprep.subr.bf16.mxu0 0
    %2168 = vmatpush1.bf16.msra.mxu0 %v2149
    %2169 = vmatprep.subr.bf16.mxu0 0
    %2170 = vmatpush1.bf16.msra.mxu0 %v2150
    %2171 = vmatprep.subr.bf16.mxu0 0
    %2172 = vmatpush1.bf16.msra.mxu0 %v2151
    %2173 = vmatprep.subr.bf16.mxu0 0
    %2174 = vmatpush1.bf16.msra.mxu0 %v2152
    %2175 = vmatprep.subr.bf16.mxu0 0
    %2176 = vmatpush1.bf16.msra.mxu0 %v2153
    %2177 = vmatprep.subr.bf16.mxu0 0
    %2178 = vmatpush1.bf16.msra.mxu0 %v2154
    %2179 = vmatprep.subr.bf16.mxu0 0
    %2180 = vmatpush1.bf16.msra.mxu0 %v2155
    %2181 = vmatprep.subr.bf16.mxu0 0
    %2182 = vmatpush1.bf16.msra.mxu0 %v2156
    %2183 = vmatprep.subr.bf16.mxu0 0
    %2184 = vmatpush1.bf16.msra.mxu0 %v2157
    %2185 = vmatprep.subr.bf16.mxu0 0
    %2186 = vmatpush1.bf16.msra.mxu0 0
    %2187 = vmatprep.subr.bf16.mxu0 0
    %2188 = vmatpush1.bf16.msra.mxu0 0
    %2189 = vmatprep.subr.bf16.mxu0 0
    %2190 = vmatpush1.bf16.msra.mxu0 0
    %2191 = vmatprep.subr.bf16.mxu0 0
    %2192 = vmatpush1.bf16.msra.mxu0 0
    %2193 = vmatprep.subr.bf16.mxu0 0
    %2194 = vmatpush1.bf16.msra.mxu0 0
    %2195 = vmatprep.subr.bf16.mxu0 0
    %2196 = vmatpush1.bf16.msra.mxu0 0
    %2197 = vmatprep.subr.bf16.mxu0 0
    %2198 = vmatpush1.bf16.msra.mxu0 0
    %2199 = vmatprep.mubr.bf16.mxu0 %v1936
    %2200 = vmatmul.mubr.bf16.gmra.mrb[0].mxu0 %v1860
    %v2201 = vpop.f32.mrb[0].mxu0
    %v2202 = vadd.f32 0.0, %v2201
    %v2203 = vpop.f32.mrb[0].mxu0
    %v2204 = vpop.f32.mrb[0].mxu0
    %v2205 = vpop.f32.mrb[0].mxu0
    %2206 = vdwg.mxu0
    %2207 = vst.msk [vmem:[#allocation2 + $0x10] sm:$0x3f] %vm1978, %v2202
    %s2208 = scalar_lea.vmem %s4, 216
    %v2209 = vld [vmem:[%s2208] sm:$0xf]
    %v2210 = vld [vmem:[%s2208 + $0x4] sm:$0xf]
    %v2211 = vld [vmem:[%s2208 + $0x8] sm:$0xf]
    %v2212 = vld [vmem:[%s2208 + $0xc] sm:$0xf]
    %v2213 = vld [vmem:[%s2208 + $0x10] sm:$0xf]
    %v2214 = vld [vmem:[%s2208 + $0x14] sm:$0xf]
    %v2215 = vld [vmem:[%s2208 + $0x18] sm:$0xf]
    %v2216 = vld [vmem:[%s2208 + $0x1c] sm:$0xf]
    %v2217 = vld [vmem:[%s2208 + $0x20] sm:$0xf]
    %v2218 = vld [vmem:[%s2208 + $0x24] sm:$0xf]
    %v2219 = vld [vmem:[%s2208 + $0x28] sm:$0xf]
    %v2220 = vld [vmem:[%s2208 + $0x2c] sm:$0xf]
    %v2221 = vld [vmem:[%s2208 + $0x30] sm:$0xf]
    %v2222 = vld [vmem:[%s2208 + $0x34] sm:$0xf]
    %v2223 = vld [vmem:[%s2208 + $0x38] sm:$0xf]
    %v2224 = vld [vmem:[%s2208 + $0x3c] sm:$0xf]
    %v2225 = vld [vmem:[%s2208 + $0x40] sm:$0xf]
    %v2226 = vld [vmem:[%s2208 + $0x44] sm:$0xf]
    %v2245 = vunpack.c.l.b16 %v2209
    %v2246 = vunpack.c.l.b16 %v2210
    %v2247 = vunpack.c.l.b16 %v2211
    %v2248 = vunpack.c.l.b16 %v2212
    %v2249 = vunpack.c.l.b16 %v2213
    %v2250 = vunpack.c.l.b16 %v2214
    %v2251 = vunpack.c.l.b16 %v2215
    %v2252 = vunpack.c.l.b16 %v2216
    %v2253 = vunpack.c.l.b16 %v2217
    %v2254 = vunpack.c.l.b16 %v2218
    %v2255 = vunpack.c.l.b16 %v2219
    %v2256 = vunpack.c.l.b16 %v2220
    %v2257 = vunpack.c.l.b16 %v2221
    %v2258 = vunpack.c.l.b16 %v2222
    %v2259 = vunpack.c.l.b16 %v2223
    %v2260 = vunpack.c.l.b16 %v2224
    %v2261 = vunpack.c.l.b16 %v2225
    %v2262 = vunpack.c.l.b16 %v2226
    %v2263 = vpack.c.b16 %v2246, %v2245
    %v2264 = vpack.c.b16 %v2248, %v2247
    %v2265 = vpack.c.b16 %v2250, %v2249
    %v2266 = vpack.c.b16 %v2252, %v2251
    %v2267 = vpack.c.b16 %v2254, %v2253
    %v2268 = vpack.c.b16 %v2256, %v2255
    %v2269 = vpack.c.b16 %v2258, %v2257
    %v2270 = vpack.c.b16 %v2260, %v2259
    %v2271 = vpack.c.b16 %v2262, %v2261
    %2281 = vmatprep.subr.bf16.mxu0 0
    %2282 = vmatpush1.bf16.msra.mxu0 %v2263
    %2283 = vmatprep.subr.bf16.mxu0 0
    %2284 = vmatpush1.bf16.msra.mxu0 %v2264
    %2285 = vmatprep.subr.bf16.mxu0 0
    %2286 = vmatpush1.bf16.msra.mxu0 %v2265
    %2287 = vmatprep.subr.bf16.mxu0 0
    %2288 = vmatpush1.bf16.msra.mxu0 %v2266
    %2289 = vmatprep.subr.bf16.mxu0 0
    %2290 = vmatpush1.bf16.msra.mxu0 %v2267
    %2291 = vmatprep.subr.bf16.mxu0 0
    %2292 = vmatpush1.bf16.msra.mxu0 %v2268
    %2293 = vmatprep.subr.bf16.mxu0 0
    %2294 = vmatpush1.bf16.msra.mxu0 %v2269
    %2295 = vmatprep.subr.bf16.mxu0 0
    %2296 = vmatpush1.bf16.msra.mxu0 %v2270
    %2297 = vmatprep.subr.bf16.mxu0 0
    %2298 = vmatpush1.bf16.msra.mxu0 %v2271
    %2299 = vmatprep.subr.bf16.mxu0 0
    %2300 = vmatpush1.bf16.msra.mxu0 0
    %2301 = vmatprep.subr.bf16.mxu0 0
    %2302 = vmatpush1.bf16.msra.mxu0 0
    %2303 = vmatprep.subr.bf16.mxu0 0
    %2304 = vmatpush1.bf16.msra.mxu0 0
    %2305 = vmatprep.subr.bf16.mxu0 0
    %2306 = vmatpush1.bf16.msra.mxu0 0
    %2307 = vmatprep.subr.bf16.mxu0 0
    %2308 = vmatpush1.bf16.msra.mxu0 0
    %2309 = vmatprep.subr.bf16.mxu0 0
    %2310 = vmatpush1.bf16.msra.mxu0 0
    %2311 = vmatprep.subr.bf16.mxu0 0
    %2312 = vmatpush1.bf16.msra.mxu0 0
    %2313 = vmatprep.mubr.bf16.mxu0 %v1936
    %2314 = vmatmul.mubr.bf16.gmra.mrb[0].mxu0 %v1860
    %v2315 = vpop.f32.mrb[0].mxu0
    %v2316 = vadd.f32 0.0, %v2315
    %v2317 = vpop.f32.mrb[0].mxu0
    %v2318 = vpop.f32.mrb[0].mxu0
    %v2319 = vpop.f32.mrb[0].mxu0
    %2320 = vdwg.mxu0
    %2321 = vst.msk [vmem:[#allocation2 + $0x18] sm:$0x3f] %vm1978, %v2316
    %s2322 = scalar_lea.vmem %s4, 288
    %v2323 = vld [vmem:[%s2322] sm:$0xf]
    %v2324 = vld [vmem:[%s2322 + $0x4] sm:$0xf]
    %v2325 = vld [vmem:[%s2322 + $0x8] sm:$0xf]
    %v2326 = vld [vmem:[%s2322 + $0xc] sm:$0xf]
    %v2327 = vld [vmem:[%s2322 + $0x10] sm:$0xf]
    %v2328 = vld [vmem:[%s2322 + $0x14] sm:$0xf]
    %v2329 = vld [vmem:[%s2322 + $0x18] sm:$0xf]
    %v2330 = vld [vmem:[%s2322 + $0x1c] sm:$0xf]
    %v2331 = vld [vmem:[%s2322 + $0x20] sm:$0xf]
    %v2332 = vld [vmem:[%s2322 + $0x24] sm:$0xf]
    %v2333 = vld [vmem:[%s2322 + $0x28] sm:$0xf]
    %v2334 = vld [vmem:[%s2322 + $0x2c] sm:$0xf]
    %v2335 = vld [vmem:[%s2322 + $0x30] sm:$0xf]
    %v2336 = vld [vmem:[%s2322 + $0x34] sm:$0xf]
    %v2337 = vld [vmem:[%s2322 + $0x38] sm:$0xf]
    %v2338 = vld [vmem:[%s2322 + $0x3c] sm:$0xf]
    %v2339 = vld [vmem:[%s2322 + $0x40] sm:$0xf]
    %v2340 = vld [vmem:[%s2322 + $0x44] sm:$0xf]
    %v2359 = vunpack.c.l.b16 %v2323
    %v2360 = vunpack.c.l.b16 %v2324
    %v2361 = vunpack.c.l.b16 %v2325
    %v2362 = vunpack.c.l.b16 %v2326
    %v2363 = vunpack.c.l.b16 %v2327
    %v2364 = vunpack.c.l.b16 %v2328
    %v2365 = vunpack.c.l.b16 %v2329
    %v2366 = vunpack.c.l.b16 %v2330
    %v2367 = vunpack.c.l.b16 %v2331
    %v2368 = vunpack.c.l.b16 %v2332
    %v2369 = vunpack.c.l.b16 %v2333
    %v2370 = vunpack.c.l.b16 %v2334
    %v2371 = vunpack.c.l.b16 %v2335
    %v2372 = vunpack.c.l.b16 %v2336
    %v2373 = vunpack.c.l.b16 %v2337
    %v2374 = vunpack.c.l.b16 %v2338
    %v2375 = vunpack.c.l.b16 %v2339
    %v2376 = vunpack.c.l.b16 %v2340
    %v2377 = vpack.c.b16 %v2360, %v2359
    %v2378 = vpack.c.b16 %v2362, %v2361
    %v2379 = vpack.c.b16 %v2364, %v2363
    %v2380 = vpack.c.b16 %v2366, %v2365
    %v2381 = vpack.c.b16 %v2368, %v2367
    %v2382 = vpack.c.b16 %v2370, %v2369
    %v2383 = vpack.c.b16 %v2372, %v2371
    %v2384 = vpack.c.b16 %v2374, %v2373
    %v2385 = vpack.c.b16 %v2376, %v2375
    %2395 = vmatprep.subr.bf16.mxu0 0
    %2396 = vmatpush1.bf16.msra.mxu0 %v2377
    %2397 = vmatprep.subr.bf16.mxu0 0
    %2398 = vmatpush1.bf16.msra.mxu0 %v2378
    %2399 = vmatprep.subr.bf16.mxu0 0
    %2400 = vmatpush1.bf16.msra.mxu0 %v2379
    %2401 = vmatprep.subr.bf16.mxu0 0
    %2402 = vmatpush1.bf16.msra.mxu0 %v2380
    %2403 = vmatprep.subr.bf16.mxu0 0
    %2404 = vmatpush1.bf16.msra.mxu0 %v2381
    %2405 = vmatprep.subr.bf16.mxu0 0
    %2406 = vmatpush1.bf16.msra.mxu0 %v2382
    %2407 = vmatprep.subr.bf16.mxu0 0
    %2408 = vmatpush1.bf16.msra.mxu0 %v2383
    %2409 = vmatprep.subr.bf16.mxu0 0
    %2410 = vmatpush1.bf16.msra.mxu0 %v2384
    %2411 = vmatprep.subr.bf16.mxu0 0
    %2412 = vmatpush1.bf16.msra.mxu0 %v2385
    %2413 = vmatprep.subr.bf16.mxu0 0
    %2414 = vmatpush1.bf16.msra.mxu0 0
    %2415 = vmatprep.subr.bf16.mxu0 0
    %2416 = vmatpush1.bf16.msra.mxu0 0
    %2417 = vmatprep.subr.bf16.mxu0 0
    %2418 = vmatpush1.bf16.msra.mxu0 0
    %2419 = vmatprep.subr.bf16.mxu0 0
    %2420 = vmatpush1.bf16.msra.mxu0 0
    %2421 = vmatprep.subr.bf16.mxu0 0
    %2422 = vmatpush1.bf16.msra.mxu0 0
    %2423 = vmatprep.subr.bf16.mxu0 0
    %2424 = vmatpush1.bf16.msra.mxu0 0
    %2425 = vmatprep.subr.bf16.mxu0 0
    %2426 = vmatpush1.bf16.msra.mxu0 0
    %2427 = vmatprep.mubr.bf16.mxu0 %v1936
    %2428 = vmatmul.mubr.bf16.gmra.mrb[0].mxu0 %v1860
    %v2429 = vpop.f32.mrb[0].mxu0
    %v2430 = vadd.f32 0.0, %v2429
    %v2431 = vpop.f32.mrb[0].mxu0
    %v2432 = vpop.f32.mrb[0].mxu0
    %v2433 = vpop.f32.mrb[0].mxu0
    %2434 = vdwg.mxu0
    %2435 = vst.msk [vmem:[#allocation2 + $0x20] sm:$0x3f] %vm1978, %v2430
    %s2436 = scalar_lea.vmem %s4, 360
    %v2437 = vld [vmem:[%s2436] sm:$0xf]
    %v2438 = vld [vmem:[%s2436 + $0x4] sm:$0xf]
    %v2439 = vld [vmem:[%s2436 + $0x8] sm:$0xf]
    %v2440 = vld [vmem:[%s2436 + $0xc] sm:$0xf]
    %v2441 = vld [vmem:[%s2436 + $0x10] sm:$0xf]
    %v2442 = vld [vmem:[%s2436 + $0x14] sm:$0xf]
    %v2443 = vld [vmem:[%s2436 + $0x18] sm:$0xf]
    %v2444 = vld [vmem:[%s2436 + $0x1c] sm:$0xf]
    %v2445 = vld [vmem:[%s2436 + $0x20] sm:$0xf]
    %v2446 = vld [vmem:[%s2436 + $0x24] sm:$0xf]
    %v2447 = vld [vmem:[%s2436 + $0x28] sm:$0xf]
    %v2448 = vld [vmem:[%s2436 + $0x2c] sm:$0xf]
    %v2449 = vld [vmem:[%s2436 + $0x30] sm:$0xf]
    %v2450 = vld [vmem:[%s2436 + $0x34] sm:$0xf]
    %v2451 = vld [vmem:[%s2436 + $0x38] sm:$0xf]
    %v2452 = vld [vmem:[%s2436 + $0x3c] sm:$0xf]
    %v2453 = vld [vmem:[%s2436 + $0x40] sm:$0xf]
    %v2454 = vld [vmem:[%s2436 + $0x44] sm:$0xf]
    %v2473 = vunpack.c.l.b16 %v2437
    %v2474 = vunpack.c.l.b16 %v2438
    %v2475 = vunpack.c.l.b16 %v2439
    %v2476 = vunpack.c.l.b16 %v2440
    %v2477 = vunpack.c.l.b16 %v2441
    %v2478 = vunpack.c.l.b16 %v2442
    %v2479 = vunpack.c.l.b16 %v2443
    %v2480 = vunpack.c.l.b16 %v2444
    %v2481 = vunpack.c.l.b16 %v2445
    %v2482 = vunpack.c.l.b16 %v2446
    %v2483 = vunpack.c.l.b16 %v2447
    %v2484 = vunpack.c.l.b16 %v2448
    %v2485 = vunpack.c.l.b16 %v2449
    %v2486 = vunpack.c.l.b16 %v2450
    %v2487 = vunpack.c.l.b16 %v2451
    %v2488 = vunpack.c.l.b16 %v2452
    %v2489 = vunpack.c.l.b16 %v2453
    %v2490 = vunpack.c.l.b16 %v2454
    %v2491 = vpack.c.b16 %v2474, %v2473
    %v2492 = vpack.c.b16 %v2476, %v2475
    %v2493 = vpack.c.b16 %v2478, %v2477
    %v2494 = vpack.c.b16 %v2480, %v2479
    %v2495 = vpack.c.b16 %v2482, %v2481
    %v2496 = vpack.c.b16 %v2484, %v2483
    %v2497 = vpack.c.b16 %v2486, %v2485
    %v2498 = vpack.c.b16 %v2488, %v2487
    %v2499 = vpack.c.b16 %v2490, %v2489
    %2509 = vmatprep.subr.bf16.mxu0 0
    %2510 = vmatpush1.bf16.msra.mxu0 %v2491
    %2511 = vmatprep.subr.bf16.mxu0 0
    %2512 = vmatpush1.bf16.msra.mxu0 %v2492
    %2513 = vmatprep.subr.bf16.mxu0 0
    %2514 = vmatpush1.bf16.msra.mxu0 %v2493
    %2515 = vmatprep.subr.bf16.mxu0 0
    %2516 = vmatpush1.bf16.msra.mxu0 %v2494
    %2517 = vmatprep.subr.bf16.mxu0 0
    %2518 = vmatpush1.bf16.msra.mxu0 %v2495
    %2519 = vmatprep.subr.bf16.mxu0 0
    %2520 = vmatpush1.bf16.msra.mxu0 %v2496
    %2521 = vmatprep.subr.bf16.mxu0 0
    %2522 = vmatpush1.bf16.msra.mxu0 %v2497
    %2523 = vmatprep.subr.bf16.mxu0 0
    %2524 = vmatpush1.bf16.msra.mxu0 %v2498
    %2525 = vmatprep.subr.bf16.mxu0 0
    %2526 = vmatpush1.bf16.msra.mxu0 %v2499
    %2527 = vmatprep.subr.bf16.mxu0 0
    %2528 = vmatpush1.bf16.msra.mxu0 0
    %2529 = vmatprep.subr.bf16.mxu0 0
    %2530 = vmatpush1.bf16.msra.mxu0 0
    %2531 = vmatprep.subr.bf16.mxu0 0
    %2532 = vmatpush1.bf16.msra.mxu0 0
    %2533 = vmatprep.subr.bf16.mxu0 0
    %2534 = vmatpush1.bf16.msra.mxu0 0
    %2535 = vmatprep.subr.bf16.mxu0 0
    %2536 = vmatpush1.bf16.msra.mxu0 0
    %2537 = vmatprep.subr.bf16.mxu0 0
    %2538 = vmatpush1.bf16.msra.mxu0 0
    %2539 = vmatprep.subr.bf16.mxu0 0
    %2540 = vmatpush1.bf16.msra.mxu0 0
    %2541 = vmatprep.mubr.bf16.mxu0 %v1936
    %2542 = vmatmul.mubr.bf16.gmra.mrb[0].mxu0 %v1860
    %v2543 = vpop.f32.mrb[0].mxu0
    %v2544 = vadd.f32 0.0, %v2543
    %v2545 = vpop.f32.mrb[0].mxu0
    %v2546 = vpop.f32.mrb[0].mxu0
    %v2547 = vpop.f32.mrb[0].mxu0
    %2548 = vdwg.mxu0
    %2549 = vst.msk [vmem:[#allocation2 + $0x28] sm:$0x3f] %vm1978, %v2544
    %s2550 = scalar_lea.vmem %s4, 432
    %v2551 = vld [vmem:[%s2550] sm:$0xf]
    %v2552 = vld [vmem:[%s2550 + $0x4] sm:$0xf]
    %v2553 = vld [vmem:[%s2550 + $0x8] sm:$0xf]
    %v2554 = vld [vmem:[%s2550 + $0xc] sm:$0xf]
    %v2555 = vld [vmem:[%s2550 + $0x10] sm:$0xf]
    %v2556 = vld [vmem:[%s2550 + $0x14] sm:$0xf]
    %v2557 = vld [vmem:[%s2550 + $0x18] sm:$0xf]
    %v2558 = vld [vmem:[%s2550 + $0x1c] sm:$0xf]
    %v2559 = vld [vmem:[%s2550 + $0x20] sm:$0xf]
    %v2560 = vld [vmem:[%s2550 + $0x24] sm:$0xf]
    %v2561 = vld [vmem:[%s2550 + $0x28] sm:$0xf]
    %v2562 = vld [vmem:[%s2550 + $0x2c] sm:$0xf]
    %v2563 = vld [vmem:[%s2550 + $0x30] sm:$0xf]
    %v2564 = vld [vmem:[%s2550 + $0x34] sm:$0xf]
    %v2565 = vld [vmem:[%s2550 + $0x38] sm:$0xf]
    %v2566 = vld [vmem:[%s2550 + $0x3c] sm:$0xf]
    %v2567 = vld [vmem:[%s2550 + $0x40] sm:$0xf]
    %v2568 = vld [vmem:[%s2550 + $0x44] sm:$0xf]
    %v2587 = vunpack.c.l.b16 %v2551
    %v2588 = vunpack.c.l.b16 %v2552
    %v2589 = vunpack.c.l.b16 %v2553
    %v2590 = vunpack.c.l.b16 %v2554
    %v2591 = vunpack.c.l.b16 %v2555
    %v2592 = vunpack.c.l.b16 %v2556
    %v2593 = vunpack.c.l.b16 %v2557
    %v2594 = vunpack.c.l.b16 %v2558
    %v2595 = vunpack.c.l.b16 %v2559
    %v2596 = vunpack.c.l.b16 %v2560
    %v2597 = vunpack.c.l.b16 %v2561
    %v2598 = vunpack.c.l.b16 %v2562
    %v2599 = vunpack.c.l.b16 %v2563
    %v2600 = vunpack.c.l.b16 %v2564
    %v2601 = vunpack.c.l.b16 %v2565
    %v2602 = vunpack.c.l.b16 %v2566
    %v2603 = vunpack.c.l.b16 %v2567
    %v2604 = vunpack.c.l.b16 %v2568
    %v2605 = vpack.c.b16 %v2588, %v2587
    %v2606 = vpack.c.b16 %v2590, %v2589
    %v2607 = vpack.c.b16 %v2592, %v2591
    %v2608 = vpack.c.b16 %v2594, %v2593
    %v2609 = vpack.c.b16 %v2596, %v2595
    %v2610 = vpack.c.b16 %v2598, %v2597
    %v2611 = vpack.c.b16 %v2600, %v2599
    %v2612 = vpack.c.b16 %v2602, %v2601
    %v2613 = vpack.c.b16 %v2604, %v2603
    %2623 = vmatprep.subr.bf16.mxu0 0
    %2624 = vmatpush1.bf16.msra.mxu0 %v2605
    %2625 = vmatprep.subr.bf16.mxu0 0
    %2626 = vmatpush1.bf16.msra.mxu0 %v2606
    %2627 = vmatprep.subr.bf16.mxu0 0
    %2628 = vmatpush1.bf16.msra.mxu0 %v2607
    %2629 = vmatprep.subr.bf16.mxu0 0
    %2630 = vmatpush1.bf16.msra.mxu0 %v2608
    %2631 = vmatprep.subr.bf16.mxu0 0
    %2632 = vmatpush1.bf16.msra.mxu0 %v2609
    %2633 = vmatprep.subr.bf16.mxu0 0
    %2634 = vmatpush1.bf16.msra.mxu0 %v2610
    %2635 = vmatprep.subr.bf16.mxu0 0
    %2636 = vmatpush1.bf16.msra.mxu0 %v2611
    %2637 = vmatprep.subr.bf16.mxu0 0
    %2638 = vmatpush1.bf16.msra.mxu0 %v2612
    %2639 = vmatprep.subr.bf16.mxu0 0
    %2640 = vmatpush1.bf16.msra.mxu0 %v2613
    %2641 = vmatprep.subr.bf16.mxu0 0
    %2642 = vmatpush1.bf16.msra.mxu0 0
    %2643 = vmatprep.subr.bf16.mxu0 0
    %2644 = vmatpush1.bf16.msra.mxu0 0
    %2645 = vmatprep.subr.bf16.mxu0 0
    %2646 = vmatpush1.bf16.msra.mxu0 0
    %2647 = vmatprep.subr.bf16.mxu0 0
    %2648 = vmatpush1.bf16.msra.mxu0 0
    %2649 = vmatprep.subr.bf16.mxu0 0
    %2650 = vmatpush1.bf16.msra.mxu0 0
    %2651 = vmatprep.subr.bf16.mxu0 0
    %2652 = vmatpush1.bf16.msra.mxu0 0
    %2653 = vmatprep.subr.bf16.mxu0 0
    %2654 = vmatpush1.bf16.msra.mxu0 0
    %2655 = vmatprep.mubr.bf16.mxu0 %v1936
    %2656 = vmatmul.mubr.bf16.gmra.mrb[0].mxu0 %v1860
    %v2657 = vpop.f32.mrb[0].mxu0
    %v2658 = vadd.f32 0.0, %v2657
    %v2659 = vpop.f32.mrb[0].mxu0
    %v2660 = vpop.f32.mrb[0].mxu0
    %v2661 = vpop.f32.mrb[0].mxu0
    %2662 = vdwg.mxu0
    %2663 = vst.msk [vmem:[#allocation2 + $0x30] sm:$0x3f] %vm1978, %v2658
    %s2664 = scalar_lea.vmem %s4, 504
    %v2665 = vld [vmem:[%s2664] sm:$0xf]
    %v2666 = vld [vmem:[%s2664 + $0x4] sm:$0xf]
    %v2667 = vld [vmem:[%s2664 + $0x8] sm:$0xf]
    %v2668 = vld [vmem:[%s2664 + $0xc] sm:$0xf]
    %v2669 = vld [vmem:[%s2664 + $0x10] sm:$0xf]
    %v2670 = vld [vmem:[%s2664 + $0x14] sm:$0xf]
    %v2671 = vld [vmem:[%s2664 + $0x18] sm:$0xf]
    %v2672 = vld [vmem:[%s2664 + $0x1c] sm:$0xf]
    %v2673 = vld [vmem:[%s2664 + $0x20] sm:$0xf]
    %v2674 = vld [vmem:[%s2664 + $0x24] sm:$0xf]
    %v2675 = vld [vmem:[%s2664 + $0x28] sm:$0xf]
    %v2676 = vld [vmem:[%s2664 + $0x2c] sm:$0xf]
    %v2677 = vld [vmem:[%s2664 + $0x30] sm:$0xf]
    %v2678 = vld [vmem:[%s2664 + $0x34] sm:$0xf]
    %v2679 = vld [vmem:[%s2664 + $0x38] sm:$0xf]
    %v2680 = vld [vmem:[%s2664 + $0x3c] sm:$0xf]
    %v2681 = vld [vmem:[%s2664 + $0x40] sm:$0xf]
    %v2682 = vld [vmem:[%s2664 + $0x44] sm:$0xf]
    %v2701 = vunpack.c.l.b16 %v2665
    %v2702 = vunpack.c.l.b16 %v2666
    %v2703 = vunpack.c.l.b16 %v2667
    %v2704 = vunpack.c.l.b16 %v2668
    %v2705 = vunpack.c.l.b16 %v2669
    %v2706 = vunpack.c.l.b16 %v2670
    %v2707 = vunpack.c.l.b16 %v2671
    %v2708 = vunpack.c.l.b16 %v2672
    %v2709 = vunpack.c.l.b16 %v2673
    %v2710 = vunpack.c.l.b16 %v2674
    %v2711 = vunpack.c.l.b16 %v2675
    %v2712 = vunpack.c.l.b16 %v2676
    %v2713 = vunpack.c.l.b16 %v2677
    %v2714 = vunpack.c.l.b16 %v2678
    %v2715 = vunpack.c.l.b16 %v2679
    %v2716 = vunpack.c.l.b16 %v2680
    %v2717 = vunpack.c.l.b16 %v2681
    %v2718 = vunpack.c.l.b16 %v2682
    %v2719 = vpack.c.b16 %v2702, %v2701
    %v2720 = vpack.c.b16 %v2704, %v2703
    %v2721 = vpack.c.b16 %v2706, %v2705
    %v2722 = vpack.c.b16 %v2708, %v2707
    %v2723 = vpack.c.b16 %v2710, %v2709
    %v2724 = vpack.c.b16 %v2712, %v2711
    %v2725 = vpack.c.b16 %v2714, %v2713
    %v2726 = vpack.c.b16 %v2716, %v2715
    %v2727 = vpack.c.b16 %v2718, %v2717
    %2737 = vmatprep.subr.bf16.mxu0 0
    %2738 = vmatpush1.bf16.msra.mxu0 %v2719
    %2739 = vmatprep.subr.bf16.mxu0 0
    %2740 = vmatpush1.bf16.msra.mxu0 %v2720
    %2741 = vmatprep.subr.bf16.mxu0 0
    %2742 = vmatpush1.bf16.msra.mxu0 %v2721
    %2743 = vmatprep.subr.bf16.mxu0 0
    %2744 = vmatpush1.bf16.msra.mxu0 %v2722
    %2745 = vmatprep.subr.bf16.mxu0 0
    %2746 = vmatpush1.bf16.msra.mxu0 %v2723
    %2747 = vmatprep.subr.bf16.mxu0 0
    %2748 = vmatpush1.bf16.msra.mxu0 %v2724
    %2749 = vmatprep.subr.bf16.mxu0 0
    %2750 = vmatpush1.bf16.msra.mxu0 %v2725
    %2751 = vmatprep.subr.bf16.mxu0 0
    %2752 = vmatpush1.bf16.msra.mxu0 %v2726
    %2753 = vmatprep.subr.bf16.mxu0 0
    %2754 = vmatpush1.bf16.msra.mxu0 %v2727
    %2755 = vmatprep.subr.bf16.mxu0 0
    %2756 = vmatpush1.bf16.msra.mxu0 0
    %2757 = vmatprep.subr.bf16.mxu0 0
    %2758 = vmatpush1.bf16.msra.mxu0 0
    %2759 = vmatprep.subr.bf16.mxu0 0
    %2760 = vmatpush1.bf16.msra.mxu0 0
    %2761 = vmatprep.subr.bf16.mxu0 0
    %2762 = vmatpush1.bf16.msra.mxu0 0
    %2763 = vmatprep.subr.bf16.mxu0 0
    %2764 = vmatpush1.bf16.msra.mxu0 0
    %2765 = vmatprep.subr.bf16.mxu0 0
    %2766 = vmatpush1.bf16.msra.mxu0 0
    %2767 = vmatprep.subr.bf16.mxu0 0
    %2768 = vmatpush1.bf16.msra.mxu0 0
    %2769 = vmatprep.mubr.bf16.mxu0 %v1936
    %2770 = vmatmul.mubr.bf16.gmra.mrb[0].mxu0 %v1860
    %v2771 = vpop.f32.mrb[0].mxu0
    %v2772 = vadd.f32 0.0, %v2771
    %v2773 = vpop.f32.mrb[0].mxu0
    %v2774 = vpop.f32.mrb[0].mxu0
    %v2775 = vpop.f32.mrb[0].mxu0
    %2776 = vdwg.mxu0
    %2777 = vst.msk [vmem:[#allocation2 + $0x38] sm:$0x3f] %vm1978, %v2772
    %s2778 = scalar_lea.vmem %s4, 576
    %v2779 = vld [vmem:[%s2778] sm:$0xf]
    %v2780 = vld [vmem:[%s2778 + $0x4] sm:$0xf]
    %v2781 = vld [vmem:[%s2778 + $0x8] sm:$0xf]
    %v2782 = vld [vmem:[%s2778 + $0xc] sm:$0xf]
    %v2783 = vld [vmem:[%s2778 + $0x10] sm:$0xf]
    %v2784 = vld [vmem:[%s2778 + $0x14] sm:$0xf]
    %v2785 = vld [vmem:[%s2778 + $0x18] sm:$0xf]
    %v2786 = vld [vmem:[%s2778 + $0x1c] sm:$0xf]
    %v2787 = vld [vmem:[%s2778 + $0x20] sm:$0xf]
    %v2788 = vld [vmem:[%s2778 + $0x24] sm:$0xf]
    %v2789 = vld [vmem:[%s2778 + $0x28] sm:$0xf]
    %v2790 = vld [vmem:[%s2778 + $0x2c] sm:$0xf]
    %v2791 = vld [vmem:[%s2778 + $0x30] sm:$0xf]
    %v2792 = vld [vmem:[%s2778 + $0x34] sm:$0xf]
    %v2793 = vld [vmem:[%s2778 + $0x38] sm:$0xf]
    %v2794 = vld [vmem:[%s2778 + $0x3c] sm:$0xf]
    %v2795 = vld [vmem:[%s2778 + $0x40] sm:$0xf]
    %v2796 = vld [vmem:[%s2778 + $0x44] sm:$0xf]
    %v2815 = vunpack.c.l.b16 %v2779
    %v2816 = vunpack.c.l.b16 %v2780
    %v2817 = vunpack.c.l.b16 %v2781
    %v2818 = vunpack.c.l.b16 %v2782
    %v2819 = vunpack.c.l.b16 %v2783
    %v2820 = vunpack.c.l.b16 %v2784
    %v2821 = vunpack.c.l.b16 %v2785
    %v2822 = vunpack.c.l.b16 %v2786
    %v2823 = vunpack.c.l.b16 %v2787
    %v2824 = vunpack.c.l.b16 %v2788
    %v2825 = vunpack.c.l.b16 %v2789
    %v2826 = vunpack.c.l.b16 %v2790
    %v2827 = vunpack.c.l.b16 %v2791
    %v2828 = vunpack.c.l.b16 %v2792
    %v2829 = vunpack.c.l.b16 %v2793
    %v2830 = vunpack.c.l.b16 %v2794
    %v2831 = vunpack.c.l.b16 %v2795
    %v2832 = vunpack.c.l.b16 %v2796
    %v2833 = vpack.c.b16 %v2816, %v2815
    %v2834 = vpack.c.b16 %v2818, %v2817
    %v2835 = vpack.c.b16 %v2820, %v2819
    %v2836 = vpack.c.b16 %v2822, %v2821
    %v2837 = vpack.c.b16 %v2824, %v2823
    %v2838 = vpack.c.b16 %v2826, %v2825
    %v2839 = vpack.c.b16 %v2828, %v2827
    %v2840 = vpack.c.b16 %v2830, %v2829
    %v2841 = vpack.c.b16 %v2832, %v2831
    %2851 = vmatprep.subr.bf16.mxu0 0
    %2852 = vmatpush1.bf16.msra.mxu0 %v2833
    %2853 = vmatprep.subr.bf16.mxu0 0
    %2854 = vmatpush1.bf16.msra.mxu0 %v2834
    %2855 = vmatprep.subr.bf16.mxu0 0
    %2856 = vmatpush1.bf16.msra.mxu0 %v2835
    %2857 = vmatprep.subr.bf16.mxu0 0
    %2858 = vmatpush1.bf16.msra.mxu0 %v2836
    %2859 = vmatprep.subr.bf16.mxu0 0
    %2860 = vmatpush1.bf16.msra.mxu0 %v2837
    %2861 = vmatprep.subr.bf16.mxu0 0
    %2862 = vmatpush1.bf16.msra.mxu0 %v2838
    %2863 = vmatprep.subr.bf16.mxu0 0
    %2864 = vmatpush1.bf16.msra.mxu0 %v2839
    %2865 = vmatprep.subr.bf16.mxu0 0
    %2866 = vmatpush1.bf16.msra.mxu0 %v2840
    %2867 = vmatprep.subr.bf16.mxu0 0
    %2868 = vmatpush1.bf16.msra.mxu0 %v2841
    %2869 = vmatprep.subr.bf16.mxu0 0
    %2870 = vmatpush1.bf16.msra.mxu0 0
    %2871 = vmatprep.subr.bf16.mxu0 0
    %2872 = vmatpush1.bf16.msra.mxu0 0
    %2873 = vmatprep.subr.bf16.mxu0 0
    %2874 = vmatpush1.bf16.msra.mxu0 0
    %2875 = vmatprep.subr.bf16.mxu0 0
    %2876 = vmatpush1.bf16.msra.mxu0 0
    %2877 = vmatprep.subr.bf16.mxu0 0
    %2878 = vmatpush1.bf16.msra.mxu0 0
    %2879 = vmatprep.subr.bf16.mxu0 0
    %2880 = vmatpush1.bf16.msra.mxu0 0
    %2881 = vmatprep.subr.bf16.mxu0 0
    %2882 = vmatpush1.bf16.msra.mxu0 0
    %2883 = vmatprep.mubr.bf16.mxu0 %v1936
    %2884 = vmatmul.mubr.bf16.gmra.mrb[0].mxu0 %v1860
    %v2885 = vpop.f32.mrb[0].mxu0
    %v2886 = vadd.f32 0.0, %v2885
    %v2887 = vpop.f32.mrb[0].mxu0
    %v2888 = vpop.f32.mrb[0].mxu0
    %v2889 = vpop.f32.mrb[0].mxu0
    %2890 = vdwg.mxu0
    %2891 = vst.msk [vmem:[#allocation2 + $0x40] sm:$0x3f] %vm1978, %v2886
    %s2892 = scalar_lea.vmem %s4, 648
    %v2893 = vld [vmem:[%s2892] sm:$0xf]
    %v2894 = vld [vmem:[%s2892 + $0x4] sm:$0xf]
    %v2895 = vld [vmem:[%s2892 + $0x8] sm:$0xf]
    %v2896 = vld [vmem:[%s2892 + $0xc] sm:$0xf]
    %v2897 = vld [vmem:[%s2892 + $0x10] sm:$0xf]
    %v2898 = vld [vmem:[%s2892 + $0x14] sm:$0xf]
    %v2899 = vld [vmem:[%s2892 + $0x18] sm:$0xf]
    %v2900 = vld [vmem:[%s2892 + $0x1c] sm:$0xf]
    %v2901 = vld [vmem:[%s2892 + $0x20] sm:$0xf]
    %v2902 = vld [vmem:[%s2892 + $0x24] sm:$0xf]
    %v2903 = vld [vmem:[%s2892 + $0x28] sm:$0xf]
    %v2904 = vld [vmem:[%s2892 + $0x2c] sm:$0xf]
    %v2905 = vld [vmem:[%s2892 + $0x30] sm:$0xf]
    %v2906 = vld [vmem:[%s2892 + $0x34] sm:$0xf]
    %v2907 = vld [vmem:[%s2892 + $0x38] sm:$0xf]
    %v2908 = vld [vmem:[%s2892 + $0x3c] sm:$0xf]
    %v2909 = vld [vmem:[%s2892 + $0x40] sm:$0xf]
    %v2910 = vld [vmem:[%s2892 + $0x44] sm:$0xf]
    %v2929 = vunpack.c.l.b16 %v2893
    %v2930 = vunpack.c.l.b16 %v2894
    %v2931 = vunpack.c.l.b16 %v2895
    %v2932 = vunpack.c.l.b16 %v2896
    %v2933 = vunpack.c.l.b16 %v2897
    %v2934 = vunpack.c.l.b16 %v2898
    %v2935 = vunpack.c.l.b16 %v2899
    %v2936 = vunpack.c.l.b16 %v2900
    %v2937 = vunpack.c.l.b16 %v2901
    %v2938 = vunpack.c.l.b16 %v2902
    %v2939 = vunpack.c.l.b16 %v2903
    %v2940 = vunpack.c.l.b16 %v2904
    %v2941 = vunpack.c.l.b16 %v2905
    %v2942 = vunpack.c.l.b16 %v2906
    %v2943 = vunpack.c.l.b16 %v2907
    %v2944 = vunpack.c.l.b16 %v2908
    %v2945 = vunpack.c.l.b16 %v2909
    %v2946 = vunpack.c.l.b16 %v2910
    %v2947 = vpack.c.b16 %v2930, %v2929
    %v2948 = vpack.c.b16 %v2932, %v2931
    %v2949 = vpack.c.b16 %v2934, %v2933
    %v2950 = vpack.c.b16 %v2936, %v2935
    %v2951 = vpack.c.b16 %v2938, %v2937
    %v2952 = vpack.c.b16 %v2940, %v2939
    %v2953 = vpack.c.b16 %v2942, %v2941
    %v2954 = vpack.c.b16 %v2944, %v2943
    %v2955 = vpack.c.b16 %v2946, %v2945
    %2965 = vmatprep.subr.bf16.mxu0 0
    %2966 = vmatpush1.bf16.msra.mxu0 %v2947
    %2967 = vmatprep.subr.bf16.mxu0 0
    %2968 = vmatpush1.bf16.msra.mxu0 %v2948
    %2969 = vmatprep.subr.bf16.mxu0 0
    %2970 = vmatpush1.bf16.msra.mxu0 %v2949
    %2971 = vmatprep.subr.bf16.mxu0 0
    %2972 = vmatpush1.bf16.msra.mxu0 %v2950
    %2973 = vmatprep.subr.bf16.mxu0 0
    %2974 = vmatpush1.bf16.msra.mxu0 %v2951
    %2975 = vmatprep.subr.bf16.mxu0 0
    %2976 = vmatpush1.bf16.msra.mxu0 %v2952
    %2977 = vmatprep.subr.bf16.mxu0 0
    %2978 = vmatpush1.bf16.msra.mxu0 %v2953
    %2979 = vmatprep.subr.bf16.mxu0 0
    %2980 = vmatpush1.bf16.msra.mxu0 %v2954
    %2981 = vmatprep.subr.bf16.mxu0 0
    %2982 = vmatpush1.bf16.msra.mxu0 %v2955
    %2983 = vmatprep.subr.bf16.mxu0 0
    %2984 = vmatpush1.bf16.msra.mxu0 0
    %2985 = vmatprep.subr.bf16.mxu0 0
    %2986 = vmatpush1.bf16.msra.mxu0 0
    %2987 = vmatprep.subr.bf16.mxu0 0
    %2988 = vmatpush1.bf16.msra.mxu0 0
    %2989 = vmatprep.subr.bf16.mxu0 0
    %2990 = vmatpush1.bf16.msra.mxu0 0
    %2991 = vmatprep.subr.bf16.mxu0 0
    %2992 = vmatpush1.bf16.msra.mxu0 0
    %2993 = vmatprep.subr.bf16.mxu0 0
    %2994 = vmatpush1.bf16.msra.mxu0 0
    %2995 = vmatprep.subr.bf16.mxu0 0
    %2996 = vmatpush1.bf16.msra.mxu0 0
    %2997 = vmatprep.mubr.bf16.mxu0 %v1936
    %2998 = vmatmul.mubr.bf16.gmra.mrb[0].mxu0 %v1860
    %v2999 = vpop.f32.mrb[0].mxu0
    %v3000 = vadd.f32 0.0, %v2999
    %v3001 = vpop.f32.mrb[0].mxu0
    %v3002 = vpop.f32.mrb[0].mxu0
    %v3003 = vpop.f32.mrb[0].mxu0
    %3004 = vdwg.mxu0
    %3005 = vst.msk [vmem:[#allocation2 + $0x48] sm:$0x3f] %vm1978, %v3000
    %s3006 = scalar_lea.vmem %s4, 720
    %v3007 = vld [vmem:[%s3006] sm:$0xf]
    %v3008 = vld [vmem:[%s3006 + $0x4] sm:$0xf]
    %v3009 = vld [vmem:[%s3006 + $0x8] sm:$0xf]
    %v3010 = vld [vmem:[%s3006 + $0xc] sm:$0xf]
    %v3011 = vld [vmem:[%s3006 + $0x10] sm:$0xf]
    %v3012 = vld [vmem:[%s3006 + $0x14] sm:$0xf]
    %v3013 = vld [vmem:[%s3006 + $0x18] sm:$0xf]
    %v3014 = vld [vmem:[%s3006 + $0x1c] sm:$0xf]
    %v3015 = vld [vmem:[%s3006 + $0x20] sm:$0xf]
    %v3016 = vld [vmem:[%s3006 + $0x24] sm:$0xf]
    %v3017 = vld [vmem:[%s3006 + $0x28] sm:$0xf]
    %v3018 = vld [vmem:[%s3006 + $0x2c] sm:$0xf]
    %v3019 = vld [vmem:[%s3006 + $0x30] sm:$0xf]
    %v3020 = vld [vmem:[%s3006 + $0x34] sm:$0xf]
    %v3021 = vld [vmem:[%s3006 + $0x38] sm:$0xf]
    %v3022 = vld [vmem:[%s3006 + $0x3c] sm:$0xf]
    %v3023 = vld [vmem:[%s3006 + $0x40] sm:$0xf]
    %v3024 = vld [vmem:[%s3006 + $0x44] sm:$0xf]
    %v3043 = vunpack.c.l.b16 %v3007
    %v3044 = vunpack.c.l.b16 %v3008
    %v3045 = vunpack.c.l.b16 %v3009
    %v3046 = vunpack.c.l.b16 %v3010
    %v3047 = vunpack.c.l.b16 %v3011
    %v3048 = vunpack.c.l.b16 %v3012
    %v3049 = vunpack.c.l.b16 %v3013
    %v3050 = vunpack.c.l.b16 %v3014
    %v3051 = vunpack.c.l.b16 %v3015
    %v3052 = vunpack.c.l.b16 %v3016
    %v3053 = vunpack.c.l.b16 %v3017
    %v3054 = vunpack.c.l.b16 %v3018
    %v3055 = vunpack.c.l.b16 %v3019
    %v3056 = vunpack.c.l.b16 %v3020
    %v3057 = vunpack.c.l.b16 %v3021
    %v3058 = vunpack.c.l.b16 %v3022
    %v3059 = vunpack.c.l.b16 %v3023
    %v3060 = vunpack.c.l.b16 %v3024
    %v3061 = vpack.c.b16 %v3044, %v3043
    %v3062 = vpack.c.b16 %v3046, %v3045
    %v3063 = vpack.c.b16 %v3048, %v3047
    %v3064 = vpack.c.b16 %v3050, %v3049
    %v3065 = vpack.c.b16 %v3052, %v3051
    %v3066 = vpack.c.b16 %v3054, %v3053
    %v3067 = vpack.c.b16 %v3056, %v3055
    %v3068 = vpack.c.b16 %v3058, %v3057
    %v3069 = vpack.c.b16 %v3060, %v3059
    %3079 = vmatprep.subr.bf16.mxu0 0
    %3080 = vmatpush1.bf16.msra.mxu0 %v3061
    %3081 = vmatprep.subr.bf16.mxu0 0
    %3082 = vmatpush1.bf16.msra.mxu0 %v3062
    %3083 = vmatprep.subr.bf16.mxu0 0
    %3084 = vmatpush1.bf16.msra.mxu0 %v3063
    %3085 = vmatprep.subr.bf16.mxu0 0
    %3086 = vmatpush1.bf16.msra.mxu0 %v3064
    %3087 = vmatprep.subr.bf16.mxu0 0
    %3088 = vmatpush1.bf16.msra.mxu0 %v3065
    %3089 = vmatprep.subr.bf16.mxu0 0
    %3090 = vmatpush1.bf16.msra.mxu0 %v3066
    %3091 = vmatprep.subr.bf16.mxu0 0
    %3092 = vmatpush1.bf16.msra.mxu0 %v3067
    %3093 = vmatprep.subr.bf16.mxu0 0
    %3094 = vmatpush1.bf16.msra.mxu0 %v3068
    %3095 = vmatprep.subr.bf16.mxu0 0
    %3096 = vmatpush1.bf16.msra.mxu0 %v3069
    %3097 = vmatprep.subr.bf16.mxu0 0
    %3098 = vmatpush1.bf16.msra.mxu0 0
    %3099 = vmatprep.subr.bf16.mxu0 0
    %3100 = vmatpush1.bf16.msra.mxu0 0
    %3101 = vmatprep.subr.bf16.mxu0 0
    %3102 = vmatpush1.bf16.msra.mxu0 0
    %3103 = vmatprep.subr.bf16.mxu0 0
    %3104 = vmatpush1.bf16.msra.mxu0 0
    %3105 = vmatprep.subr.bf16.mxu0 0
    %3106 = vmatpush1.bf16.msra.mxu0 0
    %3107 = vmatprep.subr.bf16.mxu0 0
    %3108 = vmatpush1.bf16.msra.mxu0 0
    %3109 = vmatprep.subr.bf16.mxu0 0
    %3110 = vmatpush1.bf16.msra.mxu0 0
    %3111 = vmatprep.mubr.bf16.mxu0 %v1936
    %3112 = vmatmul.mubr.bf16.gmra.mrb[0].mxu0 %v1860
    %v3113 = vpop.f32.mrb[0].mxu0
    %v3114 = vadd.f32 0.0, %v3113
    %v3115 = vpop.f32.mrb[0].mxu0
    %v3116 = vpop.f32.mrb[0].mxu0
    %v3117 = vpop.f32.mrb[0].mxu0
    %3118 = vdwg.mxu0
    %3119 = vst.msk [vmem:[#allocation2 + $0x50] sm:$0x3f] %vm1978, %v3114
    %s3120 = scalar_lea.vmem %s4, 792
    %v3121 = vld [vmem:[%s3120] sm:$0xf]
    %v3122 = vld [vmem:[%s3120 + $0x4] sm:$0xf]
    %v3123 = vld [vmem:[%s3120 + $0x8] sm:$0xf]
    %v3124 = vld [vmem:[%s3120 + $0xc] sm:$0xf]
    %v3125 = vld [vmem:[%s3120 + $0x10] sm:$0xf]
    %v3126 = vld [vmem:[%s3120 + $0x14] sm:$0xf]
    %v3127 = vld [vmem:[%s3120 + $0x18] sm:$0xf]
    %v3128 = vld [vmem:[%s3120 + $0x1c] sm:$0xf]
    %v3129 = vld [vmem:[%s3120 + $0x20] sm:$0xf]
    %v3130 = vld [vmem:[%s3120 + $0x24] sm:$0xf]
    %v3131 = vld [vmem:[%s3120 + $0x28] sm:$0xf]
    %v3132 = vld [vmem:[%s3120 + $0x2c] sm:$0xf]
    %v3133 = vld [vmem:[%s3120 + $0x30] sm:$0xf]
    %v3134 = vld [vmem:[%s3120 + $0x34] sm:$0xf]
    %v3135 = vld [vmem:[%s3120 + $0x38] sm:$0xf]
    %v3136 = vld [vmem:[%s3120 + $0x3c] sm:$0xf]
    %v3137 = vld [vmem:[%s3120 + $0x40] sm:$0xf]
    %v3138 = vld [vmem:[%s3120 + $0x44] sm:$0xf]
    %v3157 = vunpack.c.l.b16 %v3121
    %v3158 = vunpack.c.l.b16 %v3122
    %v3159 = vunpack.c.l.b16 %v3123
    %v3160 = vunpack.c.l.b16 %v3124
    %v3161 = vunpack.c.l.b16 %v3125
    %v3162 = vunpack.c.l.b16 %v3126
    %v3163 = vunpack.c.l.b16 %v3127
    %v3164 = vunpack.c.l.b16 %v3128
    %v3165 = vunpack.c.l.b16 %v3129
    %v3166 = vunpack.c.l.b16 %v3130
    %v3167 = vunpack.c.l.b16 %v3131
    %v3168 = vunpack.c.l.b16 %v3132
    %v3169 = vunpack.c.l.b16 %v3133
    %v3170 = vunpack.c.l.b16 %v3134
    %v3171 = vunpack.c.l.b16 %v3135
    %v3172 = vunpack.c.l.b16 %v3136
    %v3173 = vunpack.c.l.b16 %v3137
    %v3174 = vunpack.c.l.b16 %v3138
    %v3175 = vpack.c.b16 %v3158, %v3157
    %v3176 = vpack.c.b16 %v3160, %v3159
    %v3177 = vpack.c.b16 %v3162, %v3161
    %v3178 = vpack.c.b16 %v3164, %v3163
    %v3179 = vpack.c.b16 %v3166, %v3165
    %v3180 = vpack.c.b16 %v3168, %v3167
    %v3181 = vpack.c.b16 %v3170, %v3169
    %v3182 = vpack.c.b16 %v3172, %v3171
    %v3183 = vpack.c.b16 %v3174, %v3173
    %3193 = vmatprep.subr.bf16.mxu0 0
    %3194 = vmatpush1.bf16.msra.mxu0 %v3175
    %3195 = vmatprep.subr.bf16.mxu0 0
    %3196 = vmatpush1.bf16.msra.mxu0 %v3176
    %3197 = vmatprep.subr.bf16.mxu0 0
    %3198 = vmatpush1.bf16.msra.mxu0 %v3177
    %3199 = vmatprep.subr.bf16.mxu0 0
    %3200 = vmatpush1.bf16.msra.mxu0 %v3178
    %3201 = vmatprep.subr.bf16.mxu0 0
    %3202 = vmatpush1.bf16.msra.mxu0 %v3179
    %3203 = vmatprep.subr.bf16.mxu0 0
    %3204 = vmatpush1.bf16.msra.mxu0 %v3180
    %3205 = vmatprep.subr.bf16.mxu0 0
    %3206 = vmatpush1.bf16.msra.mxu0 %v3181
    %3207 = vmatprep.subr.bf16.mxu0 0
    %3208 = vmatpush1.bf16.msra.mxu0 %v3182
    %3209 = vmatprep.subr.bf16.mxu0 0
    %3210 = vmatpush1.bf16.msra.mxu0 %v3183
    %3211 = vmatprep.subr.bf16.mxu0 0
    %3212 = vmatpush1.bf16.msra.mxu0 0
    %3213 = vmatprep.subr.bf16.mxu0 0
    %3214 = vmatpush1.bf16.msra.mxu0 0
    %3215 = vmatprep.subr.bf16.mxu0 0
    %3216 = vmatpush1.bf16.msra.mxu0 0
    %3217 = vmatprep.subr.bf16.mxu0 0
    %3218 = vmatpush1.bf16.msra.mxu0 0
    %3219 = vmatprep.subr.bf16.mxu0 0
    %3220 = vmatpush1.bf16.msra.mxu0 0
    %3221 = vmatprep.subr.bf16.mxu0 0
    %3222 = vmatpush1.bf16.msra.mxu0 0
    %3223 = vmatprep.subr.bf16.mxu0 0
    %3224 = vmatpush1.bf16.msra.mxu0 0
    %3225 = vmatprep.mubr.bf16.mxu0 %v1936
    %3226 = vmatmul.mubr.bf16.gmra.mrb[0].mxu0 %v1860
    %v3227 = vpop.f32.mrb[0].mxu0
    %v3228 = vadd.f32 0.0, %v3227
    %v3229 = vpop.f32.mrb[0].mxu0
    %v3230 = vpop.f32.mrb[0].mxu0
    %v3231 = vpop.f32.mrb[0].mxu0
    %3232 = vdwg.mxu0
    %3233 = vst.msk [vmem:[#allocation2 + $0x58] sm:$0x3f] %vm1978, %v3228
    %s3234 = scalar_lea.vmem %s4, 864
    %v3235 = vld [vmem:[%s3234] sm:$0xf]
    %v3236 = vld [vmem:[%s3234 + $0x4] sm:$0xf]
    %v3237 = vld [vmem:[%s3234 + $0x8] sm:$0xf]
    %v3238 = vld [vmem:[%s3234 + $0xc] sm:$0xf]
    %v3239 = vld [vmem:[%s3234 + $0x10] sm:$0xf]
    %v3240 = vld [vmem:[%s3234 + $0x14] sm:$0xf]
    %v3241 = vld [vmem:[%s3234 + $0x18] sm:$0xf]
    %v3242 = vld [vmem:[%s3234 + $0x1c] sm:$0xf]
    %v3243 = vld [vmem:[%s3234 + $0x20] sm:$0xf]
    %v3244 = vld [vmem:[%s3234 + $0x24] sm:$0xf]
    %v3245 = vld [vmem:[%s3234 + $0x28] sm:$0xf]
    %v3246 = vld [vmem:[%s3234 + $0x2c] sm:$0xf]
    %v3247 = vld [vmem:[%s3234 + $0x30] sm:$0xf]
    %v3248 = vld [vmem:[%s3234 + $0x34] sm:$0xf]
    %v3249 = vld [vmem:[%s3234 + $0x38] sm:$0xf]
    %v3250 = vld [vmem:[%s3234 + $0x3c] sm:$0xf]
    %v3251 = vld [vmem:[%s3234 + $0x40] sm:$0xf]
    %v3252 = vld [vmem:[%s3234 + $0x44] sm:$0xf]
    %v3271 = vunpack.c.l.b16 %v3235
    %v3272 = vunpack.c.l.b16 %v3236
    %v3273 = vunpack.c.l.b16 %v3237
    %v3274 = vunpack.c.l.b16 %v3238
    %v3275 = vunpack.c.l.b16 %v3239
    %v3276 = vunpack.c.l.b16 %v3240
    %v3277 = vunpack.c.l.b16 %v3241
    %v3278 = vunpack.c.l.b16 %v3242
    %v3279 = vunpack.c.l.b16 %v3243
    %v3280 = vunpack.c.l.b16 %v3244
    %v3281 = vunpack.c.l.b16 %v3245
    %v3282 = vunpack.c.l.b16 %v3246
    %v3283 = vunpack.c.l.b16 %v3247
    %v3284 = vunpack.c.l.b16 %v3248
    %v3285 = vunpack.c.l.b16 %v3249
    %v3286 = vunpack.c.l.b16 %v3250
    %v3287 = vunpack.c.l.b16 %v3251
    %v3288 = vunpack.c.l.b16 %v3252
    %v3289 = vpack.c.b16 %v3272, %v3271
    %v3290 = vpack.c.b16 %v3274, %v3273
    %v3291 = vpack.c.b16 %v3276, %v3275
    %v3292 = vpack.c.b16 %v3278, %v3277
    %v3293 = vpack.c.b16 %v3280, %v3279
    %v3294 = vpack.c.b16 %v3282, %v3281
    %v3295 = vpack.c.b16 %v3284, %v3283
    %v3296 = vpack.c.b16 %v3286, %v3285
    %v3297 = vpack.c.b16 %v3288, %v3287
    %3307 = vmatprep.subr.bf16.mxu0 0
    %3308 = vmatpush1.bf16.msra.mxu0 %v3289
    %3309 = vmatprep.subr.bf16.mxu0 0
    %3310 = vmatpush1.bf16.msra.mxu0 %v3290
    %3311 = vmatprep.subr.bf16.mxu0 0
    %3312 = vmatpush1.bf16.msra.mxu0 %v3291
    %3313 = vmatprep.subr.bf16.mxu0 0
    %3314 = vmatpush1.bf16.msra.mxu0 %v3292
    %3315 = vmatprep.subr.bf16.mxu0 0
    %3316 = vmatpush1.bf16.msra.mxu0 %v3293
    %3317 = vmatprep.subr.bf16.mxu0 0
    %3318 = vmatpush1.bf16.msra.mxu0 %v3294
    %3319 = vmatprep.subr.bf16.mxu0 0
    %3320 = vmatpush1.bf16.msra.mxu0 %v3295
    %3321 = vmatprep.subr.bf16.mxu0 0
    %3322 = vmatpush1.bf16.msra.mxu0 %v3296
    %3323 = vmatprep.subr.bf16.mxu0 0
    %3324 = vmatpush1.bf16.msra.mxu0 %v3297
    %3325 = vmatprep.subr.bf16.mxu0 0
    %3326 = vmatpush1.bf16.msra.mxu0 0
    %3327 = vmatprep.subr.bf16.mxu0 0
    %3328 = vmatpush1.bf16.msra.mxu0 0
    %3329 = vmatprep.subr.bf16.mxu0 0
    %3330 = vmatpush1.bf16.msra.mxu0 0
    %3331 = vmatprep.subr.bf16.mxu0 0
    %3332 = vmatpush1.bf16.msra.mxu0 0
    %3333 = vmatprep.subr.bf16.mxu0 0
    %3334 = vmatpush1.bf16.msra.mxu0 0
    %3335 = vmatprep.subr.bf16.mxu0 0
    %3336 = vmatpush1.bf16.msra.mxu0 0
    %3337 = vmatprep.subr.bf16.mxu0 0
    %3338 = vmatpush1.bf16.msra.mxu0 0
    %3339 = vmatprep.mubr.bf16.mxu0 %v1936
    %3340 = vmatmul.mubr.bf16.gmra.mrb[0].mxu0 %v1860
    %v3341 = vpop.f32.mrb[0].mxu0
    %v3342 = vadd.f32 0.0, %v3341
    %v3343 = vpop.f32.mrb[0].mxu0
    %v3344 = vpop.f32.mrb[0].mxu0
    %v3345 = vpop.f32.mrb[0].mxu0
    %3346 = vdwg.mxu0
    %3347 = vst.msk [vmem:[#allocation2 + $0x60] sm:$0x3f] %vm1978, %v3342
    %s3348 = scalar_lea.vmem %s4, 936
    %v3349 = vld [vmem:[%s3348] sm:$0xf]
    %v3350 = vld [vmem:[%s3348 + $0x4] sm:$0xf]
    %v3351 = vld [vmem:[%s3348 + $0x8] sm:$0xf]
    %v3352 = vld [vmem:[%s3348 + $0xc] sm:$0xf]
    %v3353 = vld [vmem:[%s3348 + $0x10] sm:$0xf]
    %v3354 = vld [vmem:[%s3348 + $0x14] sm:$0xf]
    %v3355 = vld [vmem:[%s3348 + $0x18] sm:$0xf]
    %v3356 = vld [vmem:[%s3348 + $0x1c] sm:$0xf]
    %v3357 = vld [vmem:[%s3348 + $0x20] sm:$0xf]
    %v3358 = vld [vmem:[%s3348 + $0x24] sm:$0xf]
    %v3359 = vld [vmem:[%s3348 + $0x28] sm:$0xf]
    %v3360 = vld [vmem:[%s3348 + $0x2c] sm:$0xf]
    %v3361 = vld [vmem:[%s3348 + $0x30] sm:$0xf]
    %v3362 = vld [vmem:[%s3348 + $0x34] sm:$0xf]
    %v3363 = vld [vmem:[%s3348 + $0x38] sm:$0xf]
    %v3364 = vld [vmem:[%s3348 + $0x3c] sm:$0xf]
    %v3365 = vld [vmem:[%s3348 + $0x40] sm:$0xf]
    %v3366 = vld [vmem:[%s3348 + $0x44] sm:$0xf]
    %v3385 = vunpack.c.l.b16 %v3349
    %v3386 = vunpack.c.l.b16 %v3350
    %v3387 = vunpack.c.l.b16 %v3351
    %v3388 = vunpack.c.l.b16 %v3352
    %v3389 = vunpack.c.l.b16 %v3353
    %v3390 = vunpack.c.l.b16 %v3354
    %v3391 = vunpack.c.l.b16 %v3355
    %v3392 = vunpack.c.l.b16 %v3356
    %v3393 = vunpack.c.l.b16 %v3357
    %v3394 = vunpack.c.l.b16 %v3358
    %v3395 = vunpack.c.l.b16 %v3359
    %v3396 = vunpack.c.l.b16 %v3360
    %v3397 = vunpack.c.l.b16 %v3361
    %v3398 = vunpack.c.l.b16 %v3362
    %v3399 = vunpack.c.l.b16 %v3363
    %v3400 = vunpack.c.l.b16 %v3364
    %v3401 = vunpack.c.l.b16 %v3365
    %v3402 = vunpack.c.l.b16 %v3366
    %v3403 = vpack.c.b16 %v3386, %v3385
    %v3404 = vpack.c.b16 %v3388, %v3387
    %v3405 = vpack.c.b16 %v3390, %v3389
    %v3406 = vpack.c.b16 %v3392, %v3391
    %v3407 = vpack.c.b16 %v3394, %v3393
    %v3408 = vpack.c.b16 %v3396, %v3395
    %v3409 = vpack.c.b16 %v3398, %v3397
    %v3410 = vpack.c.b16 %v3400, %v3399
    %v3411 = vpack.c.b16 %v3402, %v3401
    %3421 = vmatprep.subr.bf16.mxu0 0
    %3422 = vmatpush1.bf16.msra.mxu0 %v3403
    %3423 = vmatprep.subr.bf16.mxu0 0
    %3424 = vmatpush1.bf16.msra.mxu0 %v3404
    %3425 = vmatprep.subr.bf16.mxu0 0
    %3426 = vmatpush1.bf16.msra.mxu0 %v3405
    %3427 = vmatprep.subr.bf16.mxu0 0
    %3428 = vmatpush1.bf16.msra.mxu0 %v3406
    %3429 = vmatprep.subr.bf16.mxu0 0
    %3430 = vmatpush1.bf16.msra.mxu0 %v3407
    %3431 = vmatprep.subr.bf16.mxu0 0
    %3432 = vmatpush1.bf16.msra.mxu0 %v3408
    %3433 = vmatprep.subr.bf16.mxu0 0
    %3434 = vmatpush1.bf16.msra.mxu0 %v3409
    %3435 = vmatprep.subr.bf16.mxu0 0
    %3436 = vmatpush1.bf16.msra.mxu0 %v3410
    %3437 = vmatprep.subr.bf16.mxu0 0
    %3438 = vmatpush1.bf16.msra.mxu0 %v3411
    %3439 = vmatprep.subr.bf16.mxu0 0
    %3440 = vmatpush1.bf16.msra.mxu0 0
    %3441 = vmatprep.subr.bf16.mxu0 0
    %3442 = vmatpush1.bf16.msra.mxu0 0
    %3443 = vmatprep.subr.bf16.mxu0 0
    %3444 = vmatpush1.bf16.msra.mxu0 0
    %3445 = vmatprep.subr.bf16.mxu0 0
    %3446 = vmatpush1.bf16.msra.mxu0 0
    %3447 = vmatprep.subr.bf16.mxu0 0
    %3448 = vmatpush1.bf16.msra.mxu0 0
    %3449 = vmatprep.subr.bf16.mxu0 0
    %3450 = vmatpush1.bf16.msra.mxu0 0
    %3451 = vmatprep.subr.bf16.mxu0 0
    %3452 = vmatpush1.bf16.msra.mxu0 0
    %3453 = vmatprep.mubr.bf16.mxu0 %v1936
    %3454 = vmatmul.mubr.bf16.gmra.mrb[0].mxu0 %v1860
    %v3455 = vpop.f32.mrb[0].mxu0
    %v3456 = vadd.f32 0.0, %v3455
    %v3457 = vpop.f32.mrb[0].mxu0
    %v3458 = vpop.f32.mrb[0].mxu0
    %v3459 = vpop.f32.mrb[0].mxu0
    %3460 = vdwg.mxu0
    %3461 = vst.msk [vmem:[#allocation2 + $0x68] sm:$0x3f] %vm1978, %v3456
    %s3462 = scalar_lea.vmem %s4, 1008
    %v3463 = vld [vmem:[%s3462] sm:$0xf]
    %v3464 = vld [vmem:[%s3462 + $0x4] sm:$0xf]
    %v3465 = vld [vmem:[%s3462 + $0x8] sm:$0xf]
    %v3466 = vld [vmem:[%s3462 + $0xc] sm:$0xf]
    %v3467 = vld [vmem:[%s3462 + $0x10] sm:$0xf]
    %v3468 = vld [vmem:[%s3462 + $0x14] sm:$0xf]
    %v3469 = vld [vmem:[%s3462 + $0x18] sm:$0xf]
    %v3470 = vld [vmem:[%s3462 + $0x1c] sm:$0xf]
    %v3471 = vld [vmem:[%s3462 + $0x20] sm:$0xf]
    %v3472 = vld [vmem:[%s3462 + $0x24] sm:$0xf]
    %v3473 = vld [vmem:[%s3462 + $0x28] sm:$0xf]
    %v3474 = vld [vmem:[%s3462 + $0x2c] sm:$0xf]
    %v3475 = vld [vmem:[%s3462 + $0x30] sm:$0xf]
    %v3476 = vld [vmem:[%s3462 + $0x34] sm:$0xf]
    %v3477 = vld [vmem:[%s3462 + $0x38] sm:$0xf]
    %v3478 = vld [vmem:[%s3462 + $0x3c] sm:$0xf]
    %v3479 = vld [vmem:[%s3462 + $0x40] sm:$0xf]
    %v3480 = vld [vmem:[%s3462 + $0x44] sm:$0xf]
    %v3499 = vunpack.c.l.b16 %v3463
    %v3500 = vunpack.c.l.b16 %v3464
    %v3501 = vunpack.c.l.b16 %v3465
    %v3502 = vunpack.c.l.b16 %v3466
    %v3503 = vunpack.c.l.b16 %v3467
    %v3504 = vunpack.c.l.b16 %v3468
    %v3505 = vunpack.c.l.b16 %v3469
    %v3506 = vunpack.c.l.b16 %v3470
    %v3507 = vunpack.c.l.b16 %v3471
    %v3508 = vunpack.c.l.b16 %v3472
    %v3509 = vunpack.c.l.b16 %v3473
    %v3510 = vunpack.c.l.b16 %v3474
    %v3511 = vunpack.c.l.b16 %v3475
    %v3512 = vunpack.c.l.b16 %v3476
    %v3513 = vunpack.c.l.b16 %v3477
    %v3514 = vunpack.c.l.b16 %v3478
    %v3515 = vunpack.c.l.b16 %v3479
    %v3516 = vunpack.c.l.b16 %v3480
    %v3517 = vpack.c.b16 %v3500, %v3499
    %v3518 = vpack.c.b16 %v3502, %v3501
    %v3519 = vpack.c.b16 %v3504, %v3503
    %v3520 = vpack.c.b16 %v3506, %v3505
    %v3521 = vpack.c.b16 %v3508, %v3507
    %v3522 = vpack.c.b16 %v3510, %v3509
    %v3523 = vpack.c.b16 %v3512, %v3511
    %v3524 = vpack.c.b16 %v3514, %v3513
    %v3525 = vpack.c.b16 %v3516, %v3515
    %3535 = vmatprep.subr.bf16.mxu0 0
    %3536 = vmatpush1.bf16.msra.mxu0 %v3517
    %3537 = vmatprep.subr.bf16.mxu0 0
    %3538 = vmatpush1.bf16.msra.mxu0 %v3518
    %3539 = vmatprep.subr.bf16.mxu0 0
    %3540 = vmatpush1.bf16.msra.mxu0 %v3519
    %3541 = vmatprep.subr.bf16.mxu0 0
    %3542 = vmatpush1.bf16.msra.mxu0 %v3520
    %3543 = vmatprep.subr.bf16.mxu0 0
    %3544 = vmatpush1.bf16.msra.mxu0 %v3521
    %3545 = vmatprep.subr.bf16.mxu0 0
    %3546 = vmatpush1.bf16.msra.mxu0 %v3522
    %3547 = vmatprep.subr.bf16.mxu0 0
    %3548 = vmatpush1.bf16.msra.mxu0 %v3523
    %3549 = vmatprep.subr.bf16.mxu0 0
    %3550 = vmatpush1.bf16.msra.mxu0 %v3524
    %3551 = vmatprep.subr.bf16.mxu0 0
    %3552 = vmatpush1.bf16.msra.mxu0 %v3525
    %3553 = vmatprep.subr.bf16.mxu0 0
    %3554 = vmatpush1.bf16.msra.mxu0 0
    %3555 = vmatprep.subr.bf16.mxu0 0
    %3556 = vmatpush1.bf16.msra.mxu0 0
    %3557 = vmatprep.subr.bf16.mxu0 0
    %3558 = vmatpush1.bf16.msra.mxu0 0
    %3559 = vmatprep.subr.bf16.mxu0 0
    %3560 = vmatpush1.bf16.msra.mxu0 0
    %3561 = vmatprep.subr.bf16.mxu0 0
    %3562 = vmatpush1.bf16.msra.mxu0 0
    %3563 = vmatprep.subr.bf16.mxu0 0
    %3564 = vmatpush1.bf16.msra.mxu0 0
    %3565 = vmatprep.subr.bf16.mxu0 0
    %3566 = vmatpush1.bf16.msra.mxu0 0
    %3567 = vmatprep.mubr.bf16.mxu0 %v1936
    %3568 = vmatmul.mubr.bf16.gmra.mrb[0].mxu0 %v1860
    %v3569 = vpop.f32.mrb[0].mxu0
    %v3570 = vadd.f32 0.0, %v3569
    %v3571 = vpop.f32.mrb[0].mxu0
    %v3572 = vpop.f32.mrb[0].mxu0
    %v3573 = vpop.f32.mrb[0].mxu0
    %3574 = vdwg.mxu0
    %3575 = vst.msk [vmem:[#allocation2 + $0x70] sm:$0x3f] %vm1978, %v3570
    %s3576 = scalar_lea.vmem %s4, 1080
    %v3577 = vld [vmem:[%s3576] sm:$0xf]
    %v3578 = vld [vmem:[%s3576 + $0x4] sm:$0xf]
    %v3579 = vld [vmem:[%s3576 + $0x8] sm:$0xf]
    %v3580 = vld [vmem:[%s3576 + $0xc] sm:$0xf]
    %v3581 = vld [vmem:[%s3576 + $0x10] sm:$0xf]
    %v3582 = vld [vmem:[%s3576 + $0x14] sm:$0xf]
    %v3583 = vld [vmem:[%s3576 + $0x18] sm:$0xf]
    %v3584 = vld [vmem:[%s3576 + $0x1c] sm:$0xf]
    %v3585 = vld [vmem:[%s3576 + $0x20] sm:$0xf]
    %v3586 = vld [vmem:[%s3576 + $0x24] sm:$0xf]
    %v3587 = vld [vmem:[%s3576 + $0x28] sm:$0xf]
    %v3588 = vld [vmem:[%s3576 + $0x2c] sm:$0xf]
    %v3589 = vld [vmem:[%s3576 + $0x30] sm:$0xf]
    %v3590 = vld [vmem:[%s3576 + $0x34] sm:$0xf]
    %v3591 = vld [vmem:[%s3576 + $0x38] sm:$0xf]
    %v3592 = vld [vmem:[%s3576 + $0x3c] sm:$0xf]
    %v3593 = vld [vmem:[%s3576 + $0x40] sm:$0xf]
    %v3594 = vld [vmem:[%s3576 + $0x44] sm:$0xf]
    %v3613 = vunpack.c.l.b16 %v3577
    %v3614 = vunpack.c.l.b16 %v3578
    %v3615 = vunpack.c.l.b16 %v3579
    %v3616 = vunpack.c.l.b16 %v3580
    %v3617 = vunpack.c.l.b16 %v3581
    %v3618 = vunpack.c.l.b16 %v3582
    %v3619 = vunpack.c.l.b16 %v3583
    %v3620 = vunpack.c.l.b16 %v3584
    %v3621 = vunpack.c.l.b16 %v3585
    %v3622 = vunpack.c.l.b16 %v3586
    %v3623 = vunpack.c.l.b16 %v3587
    %v3624 = vunpack.c.l.b16 %v3588
    %v3625 = vunpack.c.l.b16 %v3589
    %v3626 = vunpack.c.l.b16 %v3590
    %v3627 = vunpack.c.l.b16 %v3591
    %v3628 = vunpack.c.l.b16 %v3592
    %v3629 = vunpack.c.l.b16 %v3593
    %v3630 = vunpack.c.l.b16 %v3594
    %v3631 = vpack.c.b16 %v3614, %v3613
    %v3632 = vpack.c.b16 %v3616, %v3615
    %v3633 = vpack.c.b16 %v3618, %v3617
    %v3634 = vpack.c.b16 %v3620, %v3619
    %v3635 = vpack.c.b16 %v3622, %v3621
    %v3636 = vpack.c.b16 %v3624, %v3623
    %v3637 = vpack.c.b16 %v3626, %v3625
    %v3638 = vpack.c.b16 %v3628, %v3627
    %v3639 = vpack.c.b16 %v3630, %v3629
    %3649 = vmatprep.subr.bf16.mxu0 0
    %3650 = vmatpush1.bf16.msra.mxu0 %v3631
    %3651 = vmatprep.subr.bf16.mxu0 0
    %3652 = vmatpush1.bf16.msra.mxu0 %v3632
    %3653 = vmatprep.subr.bf16.mxu0 0
    %3654 = vmatpush1.bf16.msra.mxu0 %v3633
    %3655 = vmatprep.subr.bf16.mxu0 0
    %3656 = vmatpush1.bf16.msra.mxu0 %v3634
    %3657 = vmatprep.subr.bf16.mxu0 0
    %3658 = vmatpush1.bf16.msra.mxu0 %v3635
    %3659 = vmatprep.subr.bf16.mxu0 0
    %3660 = vmatpush1.bf16.msra.mxu0 %v3636
    %3661 = vmatprep.subr.bf16.mxu0 0
    %3662 = vmatpush1.bf16.msra.mxu0 %v3637
    %3663 = vmatprep.subr.bf16.mxu0 0
    %3664 = vmatpush1.bf16.msra.mxu0 %v3638
    %3665 = vmatprep.subr.bf16.mxu0 0
    %3666 = vmatpush1.bf16.msra.mxu0 %v3639
    %3667 = vmatprep.subr.bf16.mxu0 0
    %3668 = vmatpush1.bf16.msra.mxu0 0
    %3669 = vmatprep.subr.bf16.mxu0 0
    %3670 = vmatpush1.bf16.msra.mxu0 0
    %3671 = vmatprep.subr.bf16.mxu0 0
    %3672 = vmatpush1.bf16.msra.mxu0 0
    %3673 = vmatprep.subr.bf16.mxu0 0
    %3674 = vmatpush1.bf16.msra.mxu0 0
    %3675 = vmatprep.subr.bf16.mxu0 0
    %3676 = vmatpush1.bf16.msra.mxu0 0
    %3677 = vmatprep.subr.bf16.mxu0 0
    %3678 = vmatpush1.bf16.msra.mxu0 0
    %3679 = vmatprep.subr.bf16.mxu0 0
    %3680 = vmatpush1.bf16.msra.mxu0 0
    %3681 = vmatprep.mubr.bf16.mxu0 %v1936
    %3682 = vmatmul.mubr.bf16.gmra.mrb[0].mxu0 %v1860
    %v3683 = vpop.f32.mrb[0].mxu0
    %v3684 = vadd.f32 0.0, %v3683
    %v3685 = vpop.f32.mrb[0].mxu0
    %v3686 = vpop.f32.mrb[0].mxu0
    %v3687 = vpop.f32.mrb[0].mxu0
    %3688 = vdwg.mxu0
    %3689 = vst.msk [vmem:[#allocation2 + $0x78] sm:$0x3f] %vm1978, %v3684
    %s3690 = scalar_lea.vmem %s4, 1152
    %v3691 = vld [vmem:[%s3690] sm:$0xf]
    %v3692 = vld [vmem:[%s3690 + $0x4] sm:$0xf]
    %v3693 = vld [vmem:[%s3690 + $0x8] sm:$0xf]
    %v3694 = vld [vmem:[%s3690 + $0xc] sm:$0xf]
    %v3695 = vld [vmem:[%s3690 + $0x10] sm:$0xf]
    %v3696 = vld [vmem:[%s3690 + $0x14] sm:$0xf]
    %v3697 = vld [vmem:[%s3690 + $0x18] sm:$0xf]
    %v3698 = vld [vmem:[%s3690 + $0x1c] sm:$0xf]
    %v3699 = vld [vmem:[%s3690 + $0x20] sm:$0xf]
    %v3700 = vld [vmem:[%s3690 + $0x24] sm:$0xf]
    %v3701 = vld [vmem:[%s3690 + $0x28] sm:$0xf]
    %v3702 = vld [vmem:[%s3690 + $0x2c] sm:$0xf]
    %v3703 = vld [vmem:[%s3690 + $0x30] sm:$0xf]
    %v3704 = vld [vmem:[%s3690 + $0x34] sm:$0xf]
    %v3705 = vld [vmem:[%s3690 + $0x38] sm:$0xf]
    %v3706 = vld [vmem:[%s3690 + $0x3c] sm:$0xf]
    %v3707 = vld [vmem:[%s3690 + $0x40] sm:$0xf]
    %v3708 = vld [vmem:[%s3690 + $0x44] sm:$0xf]
    %v3727 = vunpack.c.l.b16 %v3691
    %v3728 = vunpack.c.l.b16 %v3692
    %v3729 = vunpack.c.l.b16 %v3693
    %v3730 = vunpack.c.l.b16 %v3694
    %v3731 = vunpack.c.l.b16 %v3695
    %v3732 = vunpack.c.l.b16 %v3696
    %v3733 = vunpack.c.l.b16 %v3697
    %v3734 = vunpack.c.l.b16 %v3698
    %v3735 = vunpack.c.l.b16 %v3699
    %v3736 = vunpack.c.l.b16 %v3700
    %v3737 = vunpack.c.l.b16 %v3701
    %v3738 = vunpack.c.l.b16 %v3702
    %v3739 = vunpack.c.l.b16 %v3703
    %v3740 = vunpack.c.l.b16 %v3704
    %v3741 = vunpack.c.l.b16 %v3705
    %v3742 = vunpack.c.l.b16 %v3706
    %v3743 = vunpack.c.l.b16 %v3707
    %v3744 = vunpack.c.l.b16 %v3708
    %v3745 = vpack.c.b16 %v3728, %v3727
    %v3746 = vpack.c.b16 %v3730, %v3729
    %v3747 = vpack.c.b16 %v3732, %v3731
    %v3748 = vpack.c.b16 %v3734, %v3733
    %v3749 = vpack.c.b16 %v3736, %v3735
    %v3750 = vpack.c.b16 %v3738, %v3737
    %v3751 = vpack.c.b16 %v3740, %v3739
    %v3752 = vpack.c.b16 %v3742, %v3741
    %v3753 = vpack.c.b16 %v3744, %v3743
    %3763 = vmatprep.subr.bf16.mxu0 0
    %3764 = vmatpush1.bf16.msra.mxu0 %v3745
    %3765 = vmatprep.subr.bf16.mxu0 0
    %3766 = vmatpush1.bf16.msra.mxu0 %v3746
    %3767 = vmatprep.subr.bf16.mxu0 0
    %3768 = vmatpush1.bf16.msra.mxu0 %v3747
    %3769 = vmatprep.subr.bf16.mxu0 0
    %3770 = vmatpush1.bf16.msra.mxu0 %v3748
    %3771 = vmatprep.subr.bf16.mxu0 0
    %3772 = vmatpush1.bf16.msra.mxu0 %v3749
    %3773 = vmatprep.subr.bf16.mxu0 0
    %3774 = vmatpush1.bf16.msra.mxu0 %v3750
    %3775 = vmatprep.subr.bf16.mxu0 0
    %3776 = vmatpush1.bf16.msra.mxu0 %v3751
    %3777 = vmatprep.subr.bf16.mxu0 0
    %3778 = vmatpush1.bf16.msra.mxu0 %v3752
    %3779 = vmatprep.subr.bf16.mxu0 0
    %3780 = vmatpush1.bf16.msra.mxu0 %v3753
    %3781 = vmatprep.subr.bf16.mxu0 0
    %3782 = vmatpush1.bf16.msra.mxu0 0
    %3783 = vmatprep.subr.bf16.mxu0 0
    %3784 = vmatpush1.bf16.msra.mxu0 0
    %3785 = vmatprep.subr.bf16.mxu0 0
    %3786 = vmatpush1.bf16.msra.mxu0 0
    %3787 = vmatprep.subr.bf16.mxu0 0
    %3788 = vmatpush1.bf16.msra.mxu0 0
    %3789 = vmatprep.subr.bf16.mxu0 0
    %3790 = vmatpush1.bf16.msra.mxu0 0
    %3791 = vmatprep.subr.bf16.mxu0 0
    %3792 = vmatpush1.bf16.msra.mxu0 0
    %3793 = vmatprep.subr.bf16.mxu0 0
    %3794 = vmatpush1.bf16.msra.mxu0 0
    %3795 = vmatprep.mubr.bf16.mxu0 %v1936
    %3796 = vmatmul.mubr.bf16.gmra.mrb[0].mxu0 %v1860
    %v3797 = vpop.f32.mrb[0].mxu0
    %v3798 = vadd.f32 0.0, %v3797
    %v3799 = vpop.f32.mrb[0].mxu0
    %v3800 = vpop.f32.mrb[0].mxu0
    %v3801 = vpop.f32.mrb[0].mxu0
    %3802 = vdwg.mxu0
    %3803 = vst.msk [vmem:[#allocation2 + $0x80] sm:$0x3f] %vm1978, %v3798
    %s3804 = scalar_lea.vmem %s4, 1224
    %v3805 = vld [vmem:[%s3804] sm:$0xf]
    %v3806 = vld [vmem:[%s3804 + $0x4] sm:$0xf]
    %v3807 = vld [vmem:[%s3804 + $0x8] sm:$0xf]
    %v3808 = vld [vmem:[%s3804 + $0xc] sm:$0xf]
    %v3809 = vld [vmem:[%s3804 + $0x10] sm:$0xf]
    %v3810 = vld [vmem:[%s3804 + $0x14] sm:$0xf]
    %v3811 = vld [vmem:[%s3804 + $0x18] sm:$0xf]
    %v3812 = vld [vmem:[%s3804 + $0x1c] sm:$0xf]
    %v3813 = vld [vmem:[%s3804 + $0x20] sm:$0xf]
    %v3814 = vld [vmem:[%s3804 + $0x24] sm:$0xf]
    %v3815 = vld [vmem:[%s3804 + $0x28] sm:$0xf]
    %v3816 = vld [vmem:[%s3804 + $0x2c] sm:$0xf]
    %v3817 = vld [vmem:[%s3804 + $0x30] sm:$0xf]
    %v3818 = vld [vmem:[%s3804 + $0x34] sm:$0xf]
    %v3819 = vld [vmem:[%s3804 + $0x38] sm:$0xf]
    %v3820 = vld [vmem:[%s3804 + $0x3c] sm:$0xf]
    %v3821 = vld [vmem:[%s3804 + $0x40] sm:$0xf]
    %v3822 = vld [vmem:[%s3804 + $0x44] sm:$0xf]
    %v3841 = vunpack.c.l.b16 %v3805
    %v3842 = vunpack.c.l.b16 %v3806
    %v3843 = vunpack.c.l.b16 %v3807
    %v3844 = vunpack.c.l.b16 %v3808
    %v3845 = vunpack.c.l.b16 %v3809
    %v3846 = vunpack.c.l.b16 %v3810
    %v3847 = vunpack.c.l.b16 %v3811
    %v3848 = vunpack.c.l.b16 %v3812
    %v3849 = vunpack.c.l.b16 %v3813
    %v3850 = vunpack.c.l.b16 %v3814
    %v3851 = vunpack.c.l.b16 %v3815
    %v3852 = vunpack.c.l.b16 %v3816
    %v3853 = vunpack.c.l.b16 %v3817
    %v3854 = vunpack.c.l.b16 %v3818
    %v3855 = vunpack.c.l.b16 %v3819
    %v3856 = vunpack.c.l.b16 %v3820
    %v3857 = vunpack.c.l.b16 %v3821
    %v3858 = vunpack.c.l.b16 %v3822
    %v3859 = vpack.c.b16 %v3842, %v3841
    %v3860 = vpack.c.b16 %v3844, %v3843
    %v3861 = vpack.c.b16 %v3846, %v3845
    %v3862 = vpack.c.b16 %v3848, %v3847
    %v3863 = vpack.c.b16 %v3850, %v3849
    %v3864 = vpack.c.b16 %v3852, %v3851
    %v3865 = vpack.c.b16 %v3854, %v3853
    %v3866 = vpack.c.b16 %v3856, %v3855
    %v3867 = vpack.c.b16 %v3858, %v3857
    %3877 = vmatprep.subr.bf16.mxu0 0
    %3878 = vmatpush1.bf16.msra.mxu0 %v3859
    %3879 = vmatprep.subr.bf16.mxu0 0
    %3880 = vmatpush1.bf16.msra.mxu0 %v3860
    %3881 = vmatprep.subr.bf16.mxu0 0
    %3882 = vmatpush1.bf16.msra.mxu0 %v3861
    %3883 = vmatprep.subr.bf16.mxu0 0
    %3884 = vmatpush1.bf16.msra.mxu0 %v3862
    %3885 = vmatprep.subr.bf16.mxu0 0
    %3886 = vmatpush1.bf16.msra.mxu0 %v3863
    %3887 = vmatprep.subr.bf16.mxu0 0
    %3888 = vmatpush1.bf16.msra.mxu0 %v3864
    %3889 = vmatprep.subr.bf16.mxu0 0
    %3890 = vmatpush1.bf16.msra.mxu0 %v3865
    %3891 = vmatprep.subr.bf16.mxu0 0
    %3892 = vmatpush1.bf16.msra.mxu0 %v3866
    %3893 = vmatprep.subr.bf16.mxu0 0
    %3894 = vmatpush1.bf16.msra.mxu0 %v3867
    %3895 = vmatprep.subr.bf16.mxu0 0
    %3896 = vmatpush1.bf16.msra.mxu0 0
    %3897 = vmatprep.subr.bf16.mxu0 0
    %3898 = vmatpush1.bf16.msra.mxu0 0
    %3899 = vmatprep.subr.bf16.mxu0 0
    %3900 = vmatpush1.bf16.msra.mxu0 0
    %3901 = vmatprep.subr.bf16.mxu0 0
    %3902 = vmatpush1.bf16.msra.mxu0 0
    %3903 = vmatprep.subr.bf16.mxu0 0
    %3904 = vmatpush1.bf16.msra.mxu0 0
    %3905 = vmatprep.subr.bf16.mxu0 0
    %3906 = vmatpush1.bf16.msra.mxu0 0
    %3907 = vmatprep.subr.bf16.mxu0 0
    %3908 = vmatpush1.bf16.msra.mxu0 0
    %3909 = vmatprep.mubr.bf16.mxu0 %v1936
    %3910 = vmatmul.mubr.bf16.gmra.mrb[0].mxu0 %v1860
    %v3911 = vpop.f32.mrb[0].mxu0
    %v3912 = vadd.f32 0.0, %v3911
    %v3913 = vpop.f32.mrb[0].mxu0
    %v3914 = vpop.f32.mrb[0].mxu0
    %v3915 = vpop.f32.mrb[0].mxu0
    %3916 = vdwg.mxu0
    %3917 = vst.msk [vmem:[#allocation2 + $0x88] sm:$0x3f] %vm1978, %v3912
    %s3918 = scalar_lea.vmem %s4, 1296
    %v3919 = vld [vmem:[%s3918] sm:$0xf]
    %v3920 = vld [vmem:[%s3918 + $0x4] sm:$0xf]
    %v3921 = vld [vmem:[%s3918 + $0x8] sm:$0xf]
    %v3922 = vld [vmem:[%s3918 + $0xc] sm:$0xf]
    %v3923 = vld [vmem:[%s3918 + $0x10] sm:$0xf]
    %v3924 = vld [vmem:[%s3918 + $0x14] sm:$0xf]
    %v3925 = vld [vmem:[%s3918 + $0x18] sm:$0xf]
    %v3926 = vld [vmem:[%s3918 + $0x1c] sm:$0xf]
    %v3927 = vld [vmem:[%s3918 + $0x20] sm:$0xf]
    %v3928 = vld [vmem:[%s3918 + $0x24] sm:$0xf]
    %v3929 = vld [vmem:[%s3918 + $0x28] sm:$0xf]
    %v3930 = vld [vmem:[%s3918 + $0x2c] sm:$0xf]
    %v3931 = vld [vmem:[%s3918 + $0x30] sm:$0xf]
    %v3932 = vld [vmem:[%s3918 + $0x34] sm:$0xf]
    %v3933 = vld [vmem:[%s3918 + $0x38] sm:$0xf]
    %v3934 = vld [vmem:[%s3918 + $0x3c] sm:$0xf]
    %v3935 = vld [vmem:[%s3918 + $0x40] sm:$0xf]
    %v3936 = vld [vmem:[%s3918 + $0x44] sm:$0xf]
    %v3955 = vunpack.c.l.b16 %v3919
    %v3956 = vunpack.c.l.b16 %v3920
    %v3957 = vunpack.c.l.b16 %v3921
    %v3958 = vunpack.c.l.b16 %v3922
    %v3959 = vunpack.c.l.b16 %v3923
    %v3960 = vunpack.c.l.b16 %v3924
    %v3961 = vunpack.c.l.b16 %v3925
    %v3962 = vunpack.c.l.b16 %v3926
    %v3963 = vunpack.c.l.b16 %v3927
    %v3964 = vunpack.c.l.b16 %v3928
    %v3965 = vunpack.c.l.b16 %v3929
    %v3966 = vunpack.c.l.b16 %v3930
    %v3967 = vunpack.c.l.b16 %v3931
    %v3968 = vunpack.c.l.b16 %v3932
    %v3969 = vunpack.c.l.b16 %v3933
    %v3970 = vunpack.c.l.b16 %v3934
    %v3971 = vunpack.c.l.b16 %v3935
    %v3972 = vunpack.c.l.b16 %v3936
    %v3973 = vpack.c.b16 %v3956, %v3955
    %v3974 = vpack.c.b16 %v3958, %v3957
    %v3975 = vpack.c.b16 %v3960, %v3959
    %v3976 = vpack.c.b16 %v3962, %v3961
    %v3977 = vpack.c.b16 %v3964, %v3963
    %v3978 = vpack.c.b16 %v3966, %v3965
    %v3979 = vpack.c.b16 %v3968, %v3967
    %v3980 = vpack.c.b16 %v3970, %v3969
    %v3981 = vpack.c.b16 %v3972, %v3971
    %3991 = vmatprep.subr.bf16.mxu0 0
    %3992 = vmatpush1.bf16.msra.mxu0 %v3973
    %3993 = vmatprep.subr.bf16.mxu0 0
    %3994 = vmatpush1.bf16.msra.mxu0 %v3974
    %3995 = vmatprep.subr.bf16.mxu0 0
    %3996 = vmatpush1.bf16.msra.mxu0 %v3975
    %3997 = vmatprep.subr.bf16.mxu0 0
    %3998 = vmatpush1.bf16.msra.mxu0 %v3976
    %3999 = vmatprep.subr.bf16.mxu0 0
    %4000 = vmatpush1.bf16.msra.mxu0 %v3977
    %4001 = vmatprep.subr.bf16.mxu0 0
    %4002 = vmatpush1.bf16.msra.mxu0 %v3978
    %4003 = vmatprep.subr.bf16.mxu0 0
    %4004 = vmatpush1.bf16.msra.mxu0 %v3979
    %4005 = vmatprep.subr.bf16.mxu0 0
    %4006 = vmatpush1.bf16.msra.mxu0 %v3980
    %4007 = vmatprep.subr.bf16.mxu0 0
    %4008 = vmatpush1.bf16.msra.mxu0 %v3981
    %4009 = vmatprep.subr.bf16.mxu0 0
    %4010 = vmatpush1.bf16.msra.mxu0 0
    %4011 = vmatprep.subr.bf16.mxu0 0
    %4012 = vmatpush1.bf16.msra.mxu0 0
    %4013 = vmatprep.subr.bf16.mxu0 0
    %4014 = vmatpush1.bf16.msra.mxu0 0
    %4015 = vmatprep.subr.bf16.mxu0 0
    %4016 = vmatpush1.bf16.msra.mxu0 0
    %4017 = vmatprep.subr.bf16.mxu0 0
    %4018 = vmatpush1.bf16.msra.mxu0 0
    %4019 = vmatprep.subr.bf16.mxu0 0
    %4020 = vmatpush1.bf16.msra.mxu0 0
    %4021 = vmatprep.subr.bf16.mxu0 0
    %4022 = vmatpush1.bf16.msra.mxu0 0
    %4023 = vmatprep.mubr.bf16.mxu0 %v1936
    %4024 = vmatmul.mubr.bf16.gmra.mrb[0].mxu0 %v1860
    %v4025 = vpop.f32.mrb[0].mxu0
    %v4026 = vadd.f32 0.0, %v4025
    %v4027 = vpop.f32.mrb[0].mxu0
    %v4028 = vpop.f32.mrb[0].mxu0
    %v4029 = vpop.f32.mrb[0].mxu0
    %4030 = vdwg.mxu0
    %4031 = vst.msk [vmem:[#allocation2 + $0x90] sm:$0x3f] %vm1978, %v4026
    %s4032 = scalar_lea.vmem %s4, 1368
    %v4033 = vld [vmem:[%s4032] sm:$0xf]
    %v4034 = vld [vmem:[%s4032 + $0x4] sm:$0xf]
    %v4035 = vld [vmem:[%s4032 + $0x8] sm:$0xf]
    %v4036 = vld [vmem:[%s4032 + $0xc] sm:$0xf]
    %v4037 = vld [vmem:[%s4032 + $0x10] sm:$0xf]
    %v4038 = vld [vmem:[%s4032 + $0x14] sm:$0xf]
    %v4039 = vld [vmem:[%s4032 + $0x18] sm:$0xf]
    %v4040 = vld [vmem:[%s4032 + $0x1c] sm:$0xf]
    %v4041 = vld [vmem:[%s4032 + $0x20] sm:$0xf]
    %v4042 = vld [vmem:[%s4032 + $0x24] sm:$0xf]
    %v4043 = vld [vmem:[%s4032 + $0x28] sm:$0xf]
    %v4044 = vld [vmem:[%s4032 + $0x2c] sm:$0xf]
    %v4045 = vld [vmem:[%s4032 + $0x30] sm:$0xf]
    %v4046 = vld [vmem:[%s4032 + $0x34] sm:$0xf]
    %v4047 = vld [vmem:[%s4032 + $0x38] sm:$0xf]
    %v4048 = vld [vmem:[%s4032 + $0x3c] sm:$0xf]
    %v4049 = vld [vmem:[%s4032 + $0x40] sm:$0xf]
    %v4050 = vld [vmem:[%s4032 + $0x44] sm:$0xf]
    %v4069 = vunpack.c.l.b16 %v4033
    %v4070 = vunpack.c.l.b16 %v4034
    %v4071 = vunpack.c.l.b16 %v4035
    %v4072 = vunpack.c.l.b16 %v4036
    %v4073 = vunpack.c.l.b16 %v4037
    %v4074 = vunpack.c.l.b16 %v4038
    %v4075 = vunpack.c.l.b16 %v4039
    %v4076 = vunpack.c.l.b16 %v4040
    %v4077 = vunpack.c.l.b16 %v4041
    %v4078 = vunpack.c.l.b16 %v4042
    %v4079 = vunpack.c.l.b16 %v4043
    %v4080 = vunpack.c.l.b16 %v4044
    %v4081 = vunpack.c.l.b16 %v4045
    %v4082 = vunpack.c.l.b16 %v4046
    %v4083 = vunpack.c.l.b16 %v4047
    %v4084 = vunpack.c.l.b16 %v4048
    %v4085 = vunpack.c.l.b16 %v4049
    %v4086 = vunpack.c.l.b16 %v4050
    %v4087 = vpack.c.b16 %v4070, %v4069
    %v4088 = vpack.c.b16 %v4072, %v4071
    %v4089 = vpack.c.b16 %v4074, %v4073
    %v4090 = vpack.c.b16 %v4076, %v4075
    %v4091 = vpack.c.b16 %v4078, %v4077
    %v4092 = vpack.c.b16 %v4080, %v4079
    %v4093 = vpack.c.b16 %v4082, %v4081
    %v4094 = vpack.c.b16 %v4084, %v4083
    %v4095 = vpack.c.b16 %v4086, %v4085
    %4105 = vmatprep.subr.bf16.mxu0 0
    %4106 = vmatpush1.bf16.msra.mxu0 %v4087
    %4107 = vmatprep.subr.bf16.mxu0 0
    %4108 = vmatpush1.bf16.msra.mxu0 %v4088
    %4109 = vmatprep.subr.bf16.mxu0 0
    %4110 = vmatpush1.bf16.msra.mxu0 %v4089
    %4111 = vmatprep.subr.bf16.mxu0 0
    %4112 = vmatpush1.bf16.msra.mxu0 %v4090
    %4113 = vmatprep.subr.bf16.mxu0 0
    %4114 = vmatpush1.bf16.msra.mxu0 %v4091
    %4115 = vmatprep.subr.bf16.mxu0 0
    %4116 = vmatpush1.bf16.msra.mxu0 %v4092
    %4117 = vmatprep.subr.bf16.mxu0 0
    %4118 = vmatpush1.bf16.msra.mxu0 %v4093
    %4119 = vmatprep.subr.bf16.mxu0 0
    %4120 = vmatpush1.bf16.msra.mxu0 %v4094
    %4121 = vmatprep.subr.bf16.mxu0 0
    %4122 = vmatpush1.bf16.msra.mxu0 %v4095
    %4123 = vmatprep.subr.bf16.mxu0 0
    %4124 = vmatpush1.bf16.msra.mxu0 0
    %4125 = vmatprep.subr.bf16.mxu0 0
    %4126 = vmatpush1.bf16.msra.mxu0 0
    %4127 = vmatprep.subr.bf16.mxu0 0
    %4128 = vmatpush1.bf16.msra.mxu0 0
    %4129 = vmatprep.subr.bf16.mxu0 0
    %4130 = vmatpush1.bf16.msra.mxu0 0
    %4131 = vmatprep.subr.bf16.mxu0 0
    %4132 = vmatpush1.bf16.msra.mxu0 0
    %4133 = vmatprep.subr.bf16.mxu0 0
    %4134 = vmatpush1.bf16.msra.mxu0 0
    %4135 = vmatprep.subr.bf16.mxu0 0
    %4136 = vmatpush1.bf16.msra.mxu0 0
    %4137 = vmatprep.mubr.bf16.mxu0 %v1936
    %4138 = vmatmul.mubr.bf16.gmra.mrb[0].mxu0 %v1860
    %v4139 = vpop.f32.mrb[0].mxu0
    %v4140 = vadd.f32 0.0, %v4139
    %v4141 = vpop.f32.mrb[0].mxu0
    %v4142 = vpop.f32.mrb[0].mxu0
    %v4143 = vpop.f32.mrb[0].mxu0
    %4144 = vdwg.mxu0
    %4145 = vst.msk [vmem:[#allocation2 + $0x98] sm:$0x3f] %vm1978, %v4140
    %s4146 = scalar_lea.vmem %s4, 1440
    %v4147 = vld [vmem:[%s4146] sm:$0xf]
    %v4148 = vld [vmem:[%s4146 + $0x4] sm:$0xf]
    %v4149 = vld [vmem:[%s4146 + $0x8] sm:$0xf]
    %v4150 = vld [vmem:[%s4146 + $0xc] sm:$0xf]
    %v4151 = vld [vmem:[%s4146 + $0x10] sm:$0xf]
    %v4152 = vld [vmem:[%s4146 + $0x14] sm:$0xf]
    %v4153 = vld [vmem:[%s4146 + $0x18] sm:$0xf]
    %v4154 = vld [vmem:[%s4146 + $0x1c] sm:$0xf]
    %v4155 = vld [vmem:[%s4146 + $0x20] sm:$0xf]
    %v4156 = vld [vmem:[%s4146 + $0x24] sm:$0xf]
    %v4157 = vld [vmem:[%s4146 + $0x28] sm:$0xf]
    %v4158 = vld [vmem:[%s4146 + $0x2c] sm:$0xf]
    %v4159 = vld [vmem:[%s4146 + $0x30] sm:$0xf]
    %v4160 = vld [vmem:[%s4146 + $0x34] sm:$0xf]
    %v4161 = vld [vmem:[%s4146 + $0x38] sm:$0xf]
    %v4162 = vld [vmem:[%s4146 + $0x3c] sm:$0xf]
    %v4163 = vld [vmem:[%s4146 + $0x40] sm:$0xf]
    %v4164 = vld [vmem:[%s4146 + $0x44] sm:$0xf]
    %v4183 = vunpack.c.l.b16 %v4147
    %v4184 = vunpack.c.l.b16 %v4148
    %v4185 = vunpack.c.l.b16 %v4149
    %v4186 = vunpack.c.l.b16 %v4150
    %v4187 = vunpack.c.l.b16 %v4151
    %v4188 = vunpack.c.l.b16 %v4152
    %v4189 = vunpack.c.l.b16 %v4153
    %v4190 = vunpack.c.l.b16 %v4154
    %v4191 = vunpack.c.l.b16 %v4155
    %v4192 = vunpack.c.l.b16 %v4156
    %v4193 = vunpack.c.l.b16 %v4157
    %v4194 = vunpack.c.l.b16 %v4158
    %v4195 = vunpack.c.l.b16 %v4159
    %v4196 = vunpack.c.l.b16 %v4160
    %v4197 = vunpack.c.l.b16 %v4161
    %v4198 = vunpack.c.l.b16 %v4162
    %v4199 = vunpack.c.l.b16 %v4163
    %v4200 = vunpack.c.l.b16 %v4164
    %v4201 = vpack.c.b16 %v4184, %v4183
    %v4202 = vpack.c.b16 %v4186, %v4185
    %v4203 = vpack.c.b16 %v4188, %v4187
    %v4204 = vpack.c.b16 %v4190, %v4189
    %v4205 = vpack.c.b16 %v4192, %v4191
    %v4206 = vpack.c.b16 %v4194, %v4193
    %v4207 = vpack.c.b16 %v4196, %v4195
    %v4208 = vpack.c.b16 %v4198, %v4197
    %v4209 = vpack.c.b16 %v4200, %v4199
    %4219 = vmatprep.subr.bf16.mxu0 0
    %4220 = vmatpush1.bf16.msra.mxu0 %v4201
    %4221 = vmatprep.subr.bf16.mxu0 0
    %4222 = vmatpush1.bf16.msra.mxu0 %v4202
    %4223 = vmatprep.subr.bf16.mxu0 0
    %4224 = vmatpush1.bf16.msra.mxu0 %v4203
    %4225 = vmatprep.subr.bf16.mxu0 0
    %4226 = vmatpush1.bf16.msra.mxu0 %v4204
    %4227 = vmatprep.subr.bf16.mxu0 0
    %4228 = vmatpush1.bf16.msra.mxu0 %v4205
    %4229 = vmatprep.subr.bf16.mxu0 0
    %4230 = vmatpush1.bf16.msra.mxu0 %v4206
    %4231 = vmatprep.subr.bf16.mxu0 0
    %4232 = vmatpush1.bf16.msra.mxu0 %v4207
    %4233 = vmatprep.subr.bf16.mxu0 0
    %4234 = vmatpush1.bf16.msra.mxu0 %v4208
    %4235 = vmatprep.subr.bf16.mxu0 0
    %4236 = vmatpush1.bf16.msra.mxu0 %v4209
    %4237 = vmatprep.subr.bf16.mxu0 0
    %4238 = vmatpush1.bf16.msra.mxu0 0
    %4239 = vmatprep.subr.bf16.mxu0 0
    %4240 = vmatpush1.bf16.msra.mxu0 0
    %4241 = vmatprep.subr.bf16.mxu0 0
    %4242 = vmatpush1.bf16.msra.mxu0 0
    %4243 = vmatprep.subr.bf16.mxu0 0
    %4244 = vmatpush1.bf16.msra.mxu0 0
    %4245 = vmatprep.subr.bf16.mxu0 0
    %4246 = vmatpush1.bf16.msra.mxu0 0
    %4247 = vmatprep.subr.bf16.mxu0 0
    %4248 = vmatpush1.bf16.msra.mxu0 0
    %4249 = vmatprep.subr.bf16.mxu0 0
    %4250 = vmatpush1.bf16.msra.mxu0 0
    %4251 = vmatprep.mubr.bf16.mxu0 %v1936
    %4252 = vmatmul.mubr.bf16.gmra.mrb[0].mxu0 %v1860
    %v4253 = vpop.f32.mrb[0].mxu0
    %v4254 = vadd.f32 0.0, %v4253
    %v4255 = vpop.f32.mrb[0].mxu0
    %v4256 = vpop.f32.mrb[0].mxu0
    %v4257 = vpop.f32.mrb[0].mxu0
    %4258 = vdwg.mxu0
    %4259 = vst.msk [vmem:[#allocation2 + $0xa0] sm:$0x3f] %vm1978, %v4254
    %s4260 = scalar_lea.vmem %s4, 1512
    %v4261 = vld [vmem:[%s4260] sm:$0xf]
    %v4262 = vld [vmem:[%s4260 + $0x4] sm:$0xf]
    %v4263 = vld [vmem:[%s4260 + $0x8] sm:$0xf]
    %v4264 = vld [vmem:[%s4260 + $0xc] sm:$0xf]
    %v4265 = vld [vmem:[%s4260 + $0x10] sm:$0xf]
    %v4266 = vld [vmem:[%s4260 + $0x14] sm:$0xf]
    %v4267 = vld [vmem:[%s4260 + $0x18] sm:$0xf]
    %v4268 = vld [vmem:[%s4260 + $0x1c] sm:$0xf]
    %v4269 = vld [vmem:[%s4260 + $0x20] sm:$0xf]
    %v4270 = vld [vmem:[%s4260 + $0x24] sm:$0xf]
    %v4271 = vld [vmem:[%s4260 + $0x28] sm:$0xf]
    %v4272 = vld [vmem:[%s4260 + $0x2c] sm:$0xf]
    %v4273 = vld [vmem:[%s4260 + $0x30] sm:$0xf]
    %v4274 = vld [vmem:[%s4260 + $0x34] sm:$0xf]
    %v4275 = vld [vmem:[%s4260 + $0x38] sm:$0xf]
    %v4276 = vld [vmem:[%s4260 + $0x3c] sm:$0xf]
    %v4277 = vld [vmem:[%s4260 + $0x40] sm:$0xf]
    %v4278 = vld [vmem:[%s4260 + $0x44] sm:$0xf]
    %v4297 = vunpack.c.l.b16 %v4261
    %v4298 = vunpack.c.l.b16 %v4262
    %v4299 = vunpack.c.l.b16 %v4263
    %v4300 = vunpack.c.l.b16 %v4264
    %v4301 = vunpack.c.l.b16 %v4265
    %v4302 = vunpack.c.l.b16 %v4266
    %v4303 = vunpack.c.l.b16 %v4267
    %v4304 = vunpack.c.l.b16 %v4268
    %v4305 = vunpack.c.l.b16 %v4269
    %v4306 = vunpack.c.l.b16 %v4270
    %v4307 = vunpack.c.l.b16 %v4271
    %v4308 = vunpack.c.l.b16 %v4272
    %v4309 = vunpack.c.l.b16 %v4273
    %v4310 = vunpack.c.l.b16 %v4274
    %v4311 = vunpack.c.l.b16 %v4275
    %v4312 = vunpack.c.l.b16 %v4276
    %v4313 = vunpack.c.l.b16 %v4277
    %v4314 = vunpack.c.l.b16 %v4278
    %v4315 = vpack.c.b16 %v4298, %v4297
    %v4316 = vpack.c.b16 %v4300, %v4299
    %v4317 = vpack.c.b16 %v4302, %v4301
    %v4318 = vpack.c.b16 %v4304, %v4303
    %v4319 = vpack.c.b16 %v4306, %v4305
    %v4320 = vpack.c.b16 %v4308, %v4307
    %v4321 = vpack.c.b16 %v4310, %v4309
    %v4322 = vpack.c.b16 %v4312, %v4311
    %v4323 = vpack.c.b16 %v4314, %v4313
    %4333 = vmatprep.subr.bf16.mxu0 0
    %4334 = vmatpush1.bf16.msra.mxu0 %v4315
    %4335 = vmatprep.subr.bf16.mxu0 0
    %4336 = vmatpush1.bf16.msra.mxu0 %v4316
    %4337 = vmatprep.subr.bf16.mxu0 0
    %4338 = vmatpush1.bf16.msra.mxu0 %v4317
    %4339 = vmatprep.subr.bf16.mxu0 0
    %4340 = vmatpush1.bf16.msra.mxu0 %v4318
    %4341 = vmatprep.subr.bf16.mxu0 0
    %4342 = vmatpush1.bf16.msra.mxu0 %v4319
    %4343 = vmatprep.subr.bf16.mxu0 0
    %4344 = vmatpush1.bf16.msra.mxu0 %v4320
    %4345 = vmatprep.subr.bf16.mxu0 0
    %4346 = vmatpush1.bf16.msra.mxu0 %v4321
    %4347 = vmatprep.subr.bf16.mxu0 0
    %4348 = vmatpush1.bf16.msra.mxu0 %v4322
    %4349 = vmatprep.subr.bf16.mxu0 0
    %4350 = vmatpush1.bf16.msra.mxu0 %v4323
    %4351 = vmatprep.subr.bf16.mxu0 0
    %4352 = vmatpush1.bf16.msra.mxu0 0
    %4353 = vmatprep.subr.bf16.mxu0 0
    %4354 = vmatpush1.bf16.msra.mxu0 0
    %4355 = vmatprep.subr.bf16.mxu0 0
    %4356 = vmatpush1.bf16.msra.mxu0 0
    %4357 = vmatprep.subr.bf16.mxu0 0
    %4358 = vmatpush1.bf16.msra.mxu0 0
    %4359 = vmatprep.subr.bf16.mxu0 0
    %4360 = vmatpush1.bf16.msra.mxu0 0
    %4361 = vmatprep.subr.bf16.mxu0 0
    %4362 = vmatpush1.bf16.msra.mxu0 0
    %4363 = vmatprep.subr.bf16.mxu0 0
    %4364 = vmatpush1.bf16.msra.mxu0 0
    %4365 = vmatprep.mubr.bf16.mxu0 %v1936
    %4366 = vmatmul.mubr.bf16.gmra.mrb[0].mxu0 %v1860
    %v4367 = vpop.f32.mrb[0].mxu0
    %v4368 = vadd.f32 0.0, %v4367
    %v4369 = vpop.f32.mrb[0].mxu0
    %v4370 = vpop.f32.mrb[0].mxu0
    %v4371 = vpop.f32.mrb[0].mxu0
    %4372 = vdwg.mxu0
    %4373 = vst.msk [vmem:[#allocation2 + $0xa8] sm:$0x3f] %vm1978, %v4368
    %s4374 = scalar_lea.vmem %s4, 1584
    %v4375 = vld [vmem:[%s4374] sm:$0xf]
    %v4376 = vld [vmem:[%s4374 + $0x4] sm:$0xf]
    %v4377 = vld [vmem:[%s4374 + $0x8] sm:$0xf]
    %v4378 = vld [vmem:[%s4374 + $0xc] sm:$0xf]
    %v4379 = vld [vmem:[%s4374 + $0x10] sm:$0xf]
    %v4380 = vld [vmem:[%s4374 + $0x14] sm:$0xf]
    %v4381 = vld [vmem:[%s4374 + $0x18] sm:$0xf]
    %v4382 = vld [vmem:[%s4374 + $0x1c] sm:$0xf]
    %v4383 = vld [vmem:[%s4374 + $0x20] sm:$0xf]
    %v4384 = vld [vmem:[%s4374 + $0x24] sm:$0xf]
    %v4385 = vld [vmem:[%s4374 + $0x28] sm:$0xf]
    %v4386 = vld [vmem:[%s4374 + $0x2c] sm:$0xf]
    %v4387 = vld [vmem:[%s4374 + $0x30] sm:$0xf]
    %v4388 = vld [vmem:[%s4374 + $0x34] sm:$0xf]
    %v4389 = vld [vmem:[%s4374 + $0x38] sm:$0xf]
    %v4390 = vld [vmem:[%s4374 + $0x3c] sm:$0xf]
    %v4391 = vld [vmem:[%s4374 + $0x40] sm:$0xf]
    %v4392 = vld [vmem:[%s4374 + $0x44] sm:$0xf]
    %v4411 = vunpack.c.l.b16 %v4375
    %v4412 = vunpack.c.l.b16 %v4376
    %v4413 = vunpack.c.l.b16 %v4377
    %v4414 = vunpack.c.l.b16 %v4378
    %v4415 = vunpack.c.l.b16 %v4379
    %v4416 = vunpack.c.l.b16 %v4380
    %v4417 = vunpack.c.l.b16 %v4381
    %v4418 = vunpack.c.l.b16 %v4382
    %v4419 = vunpack.c.l.b16 %v4383
    %v4420 = vunpack.c.l.b16 %v4384
    %v4421 = vunpack.c.l.b16 %v4385
    %v4422 = vunpack.c.l.b16 %v4386
    %v4423 = vunpack.c.l.b16 %v4387
    %v4424 = vunpack.c.l.b16 %v4388
    %v4425 = vunpack.c.l.b16 %v4389
    %v4426 = vunpack.c.l.b16 %v4390
    %v4427 = vunpack.c.l.b16 %v4391
    %v4428 = vunpack.c.l.b16 %v4392
    %v4429 = vpack.c.b16 %v4412, %v4411
    %v4430 = vpack.c.b16 %v4414, %v4413
    %v4431 = vpack.c.b16 %v4416, %v4415
    %v4432 = vpack.c.b16 %v4418, %v4417
    %v4433 = vpack.c.b16 %v4420, %v4419
    %v4434 = vpack.c.b16 %v4422, %v4421
    %v4435 = vpack.c.b16 %v4424, %v4423
    %v4436 = vpack.c.b16 %v4426, %v4425
    %v4437 = vpack.c.b16 %v4428, %v4427
    %4447 = vmatprep.subr.bf16.mxu0 0
    %4448 = vmatpush1.bf16.msra.mxu0 %v4429
    %4449 = vmatprep.subr.bf16.mxu0 0
    %4450 = vmatpush1.bf16.msra.mxu0 %v4430
    %4451 = vmatprep.subr.bf16.mxu0 0
    %4452 = vmatpush1.bf16.msra.mxu0 %v4431
    %4453 = vmatprep.subr.bf16.mxu0 0
    %4454 = vmatpush1.bf16.msra.mxu0 %v4432
    %4455 = vmatprep.subr.bf16.mxu0 0
    %4456 = vmatpush1.bf16.msra.mxu0 %v4433
    %4457 = vmatprep.subr.bf16.mxu0 0
    %4458 = vmatpush1.bf16.msra.mxu0 %v4434
    %4459 = vmatprep.subr.bf16.mxu0 0
    %4460 = vmatpush1.bf16.msra.mxu0 %v4435
    %4461 = vmatprep.subr.bf16.mxu0 0
    %4462 = vmatpush1.bf16.msra.mxu0 %v4436
    %4463 = vmatprep.subr.bf16.mxu0 0
    %4464 = vmatpush1.bf16.msra.mxu0 %v4437
    %4465 = vmatprep.subr.bf16.mxu0 0
    %4466 = vmatpush1.bf16.msra.mxu0 0
    %4467 = vmatprep.subr.bf16.mxu0 0
    %4468 = vmatpush1.bf16.msra.mxu0 0
    %4469 = vmatprep.subr.bf16.mxu0 0
    %4470 = vmatpush1.bf16.msra.mxu0 0
    %4471 = vmatprep.subr.bf16.mxu0 0
    %4472 = vmatpush1.bf16.msra.mxu0 0
    %4473 = vmatprep.subr.bf16.mxu0 0
    %4474 = vmatpush1.bf16.msra.mxu0 0
    %4475 = vmatprep.subr.bf16.mxu0 0
    %4476 = vmatpush1.bf16.msra.mxu0 0
    %4477 = vmatprep.subr.bf16.mxu0 0
    %4478 = vmatpush1.bf16.msra.mxu0 0
    %4479 = vmatprep.mubr.bf16.mxu0 %v1936
    %4480 = vmatmul.mubr.bf16.gmra.mrb[0].mxu0 %v1860
    %v4481 = vpop.f32.mrb[0].mxu0
    %v4482 = vadd.f32 0.0, %v4481
    %v4483 = vpop.f32.mrb[0].mxu0
    %v4484 = vpop.f32.mrb[0].mxu0
    %v4485 = vpop.f32.mrb[0].mxu0
    %4486 = vdwg.mxu0
    %4487 = vst.msk [vmem:[#allocation2 + $0xb0] sm:$0x3f] %vm1978, %v4482
    %s4488 = scalar_lea.vmem %s4, 1656
    %v4489 = vld [vmem:[%s4488] sm:$0xf]
    %v4490 = vld [vmem:[%s4488 + $0x4] sm:$0xf]
    %v4491 = vld [vmem:[%s4488 + $0x8] sm:$0xf]
    %v4492 = vld [vmem:[%s4488 + $0xc] sm:$0xf]
    %v4493 = vld [vmem:[%s4488 + $0x10] sm:$0xf]
    %v4494 = vld [vmem:[%s4488 + $0x14] sm:$0xf]
    %v4495 = vld [vmem:[%s4488 + $0x18] sm:$0xf]
    %v4496 = vld [vmem:[%s4488 + $0x1c] sm:$0xf]
    %v4497 = vld [vmem:[%s4488 + $0x20] sm:$0xf]
    %v4498 = vld [vmem:[%s4488 + $0x24] sm:$0xf]
    %v4499 = vld [vmem:[%s4488 + $0x28] sm:$0xf]
    %v4500 = vld [vmem:[%s4488 + $0x2c] sm:$0xf]
    %v4501 = vld [vmem:[%s4488 + $0x30] sm:$0xf]
    %v4502 = vld [vmem:[%s4488 + $0x34] sm:$0xf]
    %v4503 = vld [vmem:[%s4488 + $0x38] sm:$0xf]
    %v4504 = vld [vmem:[%s4488 + $0x3c] sm:$0xf]
    %v4505 = vld [vmem:[%s4488 + $0x40] sm:$0xf]
    %v4506 = vld [vmem:[%s4488 + $0x44] sm:$0xf]
    %v4525 = vunpack.c.l.b16 %v4489
    %v4526 = vunpack.c.l.b16 %v4490
    %v4527 = vunpack.c.l.b16 %v4491
    %v4528 = vunpack.c.l.b16 %v4492
    %v4529 = vunpack.c.l.b16 %v4493
    %v4530 = vunpack.c.l.b16 %v4494
    %v4531 = vunpack.c.l.b16 %v4495
    %v4532 = vunpack.c.l.b16 %v4496
    %v4533 = vunpack.c.l.b16 %v4497
    %v4534 = vunpack.c.l.b16 %v4498
    %v4535 = vunpack.c.l.b16 %v4499
    %v4536 = vunpack.c.l.b16 %v4500
    %v4537 = vunpack.c.l.b16 %v4501
    %v4538 = vunpack.c.l.b16 %v4502
    %v4539 = vunpack.c.l.b16 %v4503
    %v4540 = vunpack.c.l.b16 %v4504
    %v4541 = vunpack.c.l.b16 %v4505
    %v4542 = vunpack.c.l.b16 %v4506
    %v4543 = vpack.c.b16 %v4526, %v4525
    %v4544 = vpack.c.b16 %v4528, %v4527
    %v4545 = vpack.c.b16 %v4530, %v4529
    %v4546 = vpack.c.b16 %v4532, %v4531
    %v4547 = vpack.c.b16 %v4534, %v4533
    %v4548 = vpack.c.b16 %v4536, %v4535
    %v4549 = vpack.c.b16 %v4538, %v4537
    %v4550 = vpack.c.b16 %v4540, %v4539
    %v4551 = vpack.c.b16 %v4542, %v4541
    %4561 = vmatprep.subr.bf16.mxu0 0
    %4562 = vmatpush1.bf16.msra.mxu0 %v4543
    %4563 = vmatprep.subr.bf16.mxu0 0
    %4564 = vmatpush1.bf16.msra.mxu0 %v4544
    %4565 = vmatprep.subr.bf16.mxu0 0
    %4566 = vmatpush1.bf16.msra.mxu0 %v4545
    %4567 = vmatprep.subr.bf16.mxu0 0
    %4568 = vmatpush1.bf16.msra.mxu0 %v4546
    %4569 = vmatprep.subr.bf16.mxu0 0
    %4570 = vmatpush1.bf16.msra.mxu0 %v4547
    %4571 = vmatprep.subr.bf16.mxu0 0
    %4572 = vmatpush1.bf16.msra.mxu0 %v4548
    %4573 = vmatprep.subr.bf16.mxu0 0
    %4574 = vmatpush1.bf16.msra.mxu0 %v4549
    %4575 = vmatprep.subr.bf16.mxu0 0
    %4576 = vmatpush1.bf16.msra.mxu0 %v4550
    %4577 = vmatprep.subr.bf16.mxu0 0
    %4578 = vmatpush1.bf16.msra.mxu0 %v4551
    %4579 = vmatprep.subr.bf16.mxu0 0
    %4580 = vmatpush1.bf16.msra.mxu0 0
    %4581 = vmatprep.subr.bf16.mxu0 0
    %4582 = vmatpush1.bf16.msra.mxu0 0
    %4583 = vmatprep.subr.bf16.mxu0 0
    %4584 = vmatpush1.bf16.msra.mxu0 0
    %4585 = vmatprep.subr.bf16.mxu0 0
    %4586 = vmatpush1.bf16.msra.mxu0 0
    %4587 = vmatprep.subr.bf16.mxu0 0
    %4588 = vmatpush1.bf16.msra.mxu0 0
    %4589 = vmatprep.subr.bf16.mxu0 0
    %4590 = vmatpush1.bf16.msra.mxu0 0
    %4591 = vmatprep.subr.bf16.mxu0 0
    %4592 = vmatpush1.bf16.msra.mxu0 0
    %4593 = vmatprep.mubr.bf16.mxu0 %v1936
    %4594 = vmatmul.mubr.bf16.gmra.mrb[0].mxu0 %v1860
    %v4595 = vpop.f32.mrb[0].mxu0
    %v4596 = vadd.f32 0.0, %v4595
    %v4597 = vpop.f32.mrb[0].mxu0
    %v4598 = vpop.f32.mrb[0].mxu0
    %v4599 = vpop.f32.mrb[0].mxu0
    %4600 = vdwg.mxu0
    %4601 = vst.msk [vmem:[#allocation2 + $0xb8] sm:$0x3f] %vm1978, %v4596
    %s4602 = scalar_lea.vmem %s4, 1728
    %v4603 = vld [vmem:[%s4602] sm:$0xf]
    %v4604 = vld [vmem:[%s4602 + $0x4] sm:$0xf]
    %v4605 = vld [vmem:[%s4602 + $0x8] sm:$0xf]
    %v4606 = vld [vmem:[%s4602 + $0xc] sm:$0xf]
    %v4607 = vld [vmem:[%s4602 + $0x10] sm:$0xf]
    %v4608 = vld [vmem:[%s4602 + $0x14] sm:$0xf]
    %v4609 = vld [vmem:[%s4602 + $0x18] sm:$0xf]
    %v4610 = vld [vmem:[%s4602 + $0x1c] sm:$0xf]
    %v4611 = vld [vmem:[%s4602 + $0x20] sm:$0xf]
    %v4612 = vld [vmem:[%s4602 + $0x24] sm:$0xf]
    %v4613 = vld [vmem:[%s4602 + $0x28] sm:$0xf]
    %v4614 = vld [vmem:[%s4602 + $0x2c] sm:$0xf]
    %v4615 = vld [vmem:[%s4602 + $0x30] sm:$0xf]
    %v4616 = vld [vmem:[%s4602 + $0x34] sm:$0xf]
    %v4617 = vld [vmem:[%s4602 + $0x38] sm:$0xf]
    %v4618 = vld [vmem:[%s4602 + $0x3c] sm:$0xf]
    %v4619 = vld [vmem:[%s4602 + $0x40] sm:$0xf]
    %v4620 = vld [vmem:[%s4602 + $0x44] sm:$0xf]
    %v4639 = vunpack.c.l.b16 %v4603
    %v4640 = vunpack.c.l.b16 %v4604
    %v4641 = vunpack.c.l.b16 %v4605
    %v4642 = vunpack.c.l.b16 %v4606
    %v4643 = vunpack.c.l.b16 %v4607
    %v4644 = vunpack.c.l.b16 %v4608
    %v4645 = vunpack.c.l.b16 %v4609
    %v4646 = vunpack.c.l.b16 %v4610
    %v4647 = vunpack.c.l.b16 %v4611
    %v4648 = vunpack.c.l.b16 %v4612
    %v4649 = vunpack.c.l.b16 %v4613
    %v4650 = vunpack.c.l.b16 %v4614
    %v4651 = vunpack.c.l.b16 %v4615
    %v4652 = vunpack.c.l.b16 %v4616
    %v4653 = vunpack.c.l.b16 %v4617
    %v4654 = vunpack.c.l.b16 %v4618
    %v4655 = vunpack.c.l.b16 %v4619
    %v4656 = vunpack.c.l.b16 %v4620
    %v4657 = vpack.c.b16 %v4640, %v4639
    %v4658 = vpack.c.b16 %v4642, %v4641
    %v4659 = vpack.c.b16 %v4644, %v4643
    %v4660 = vpack.c.b16 %v4646, %v4645
    %v4661 = vpack.c.b16 %v4648, %v4647
    %v4662 = vpack.c.b16 %v4650, %v4649
    %v4663 = vpack.c.b16 %v4652, %v4651
    %v4664 = vpack.c.b16 %v4654, %v4653
    %v4665 = vpack.c.b16 %v4656, %v4655
    %4675 = vmatprep.subr.bf16.mxu0 0
    %4676 = vmatpush1.bf16.msra.mxu0 %v4657
    %4677 = vmatprep.subr.bf16.mxu0 0
    %4678 = vmatpush1.bf16.msra.mxu0 %v4658
    %4679 = vmatprep.subr.bf16.mxu0 0
    %4680 = vmatpush1.bf16.msra.mxu0 %v4659
    %4681 = vmatprep.subr.bf16.mxu0 0
    %4682 = vmatpush1.bf16.msra.mxu0 %v4660
    %4683 = vmatprep.subr.bf16.mxu0 0
    %4684 = vmatpush1.bf16.msra.mxu0 %v4661
    %4685 = vmatprep.subr.bf16.mxu0 0
    %4686 = vmatpush1.bf16.msra.mxu0 %v4662
    %4687 = vmatprep.subr.bf16.mxu0 0
    %4688 = vmatpush1.bf16.msra.mxu0 %v4663
    %4689 = vmatprep.subr.bf16.mxu0 0
    %4690 = vmatpush1.bf16.msra.mxu0 %v4664
    %4691 = vmatprep.subr.bf16.mxu0 0
    %4692 = vmatpush1.bf16.msra.mxu0 %v4665
    %4693 = vmatprep.subr.bf16.mxu0 0
    %4694 = vmatpush1.bf16.msra.mxu0 0
    %4695 = vmatprep.subr.bf16.mxu0 0
    %4696 = vmatpush1.bf16.msra.mxu0 0
    %4697 = vmatprep.subr.bf16.mxu0 0
    %4698 = vmatpush1.bf16.msra.mxu0 0
    %4699 = vmatprep.subr.bf16.mxu0 0
    %4700 = vmatpush1.bf16.msra.mxu0 0
    %4701 = vmatprep.subr.bf16.mxu0 0
    %4702 = vmatpush1.bf16.msra.mxu0 0
    %4703 = vmatprep.subr.bf16.mxu0 0
    %4704 = vmatpush1.bf16.msra.mxu0 0
    %4705 = vmatprep.subr.bf16.mxu0 0
    %4706 = vmatpush1.bf16.msra.mxu0 0
    %4707 = vmatprep.mubr.bf16.mxu0 %v1936
    %4708 = vmatmul.mubr.bf16.gmra.mrb[0].mxu0 %v1860
    %v4709 = vpop.f32.mrb[0].mxu0
    %v4710 = vadd.f32 0.0, %v4709
    %v4711 = vpop.f32.mrb[0].mxu0
    %v4712 = vpop.f32.mrb[0].mxu0
    %v4713 = vpop.f32.mrb[0].mxu0
    %4714 = vdwg.mxu0
    %4715 = vst.msk [vmem:[#allocation2 + $0xc0] sm:$0x3f] %vm1978, %v4710
    %v4716 = vld [vmem:[%s5] sm:$0xff]
    %v4717 = vld [vmem:[%s5 + $0x8] sm:$0xff]
    %v4718 = vld [vmem:[#allocation2] sm:$0xff]
    %v4719 = vld [vmem:[#allocation2 + $0x8] sm:$0xff]
    %v4720 = vld [vmem:[#allocation2 + $0x10] sm:$0xff]
    %v4721 = vld [vmem:[#allocation2 + $0x18] sm:$0xff]
    %v4722 = vld [vmem:[#allocation2 + $0x20] sm:$0xff]
    %v4723 = vld [vmem:[#allocation2 + $0x28] sm:$0xff]
    %v4724 = vld [vmem:[#allocation2 + $0x30] sm:$0xff]
    %v4725 = vld [vmem:[#allocation2 + $0x38] sm:$0xff]
    %v4726 = vld [vmem:[#allocation2 + $0x40] sm:$0xff]
    %v4727 = vld [vmem:[#allocation2 + $0x48] sm:$0xff]
    %v4728 = vld [vmem:[#allocation2 + $0x50] sm:$0xff]
    %v4729 = vld [vmem:[#allocation2 + $0x58] sm:$0xff]
    %v4730 = vld [vmem:[#allocation2 + $0x60] sm:$0xff]
    %v4731 = vld [vmem:[#allocation2 + $0x68] sm:$0xff]
    %v4732 = vld [vmem:[#allocation2 + $0x70] sm:$0xff]
    %v4733 = vld [vmem:[#allocation2 + $0x78] sm:$0xff]
    %v4734 = vld [vmem:[#allocation2 + $0x80] sm:$0xff]
    %v4735 = vld [vmem:[#allocation2 + $0x88] sm:$0xff]
    %v4736 = vld [vmem:[#allocation2 + $0x90] sm:$0xff]
    %v4737 = vld [vmem:[#allocation2 + $0x98] sm:$0xff]
    %v4738 = vld [vmem:[#allocation2 + $0xa0] sm:$0xff]
    %v4739 = vld [vmem:[#allocation2 + $0xa8] sm:$0xff]
    %v4740 = vld [vmem:[#allocation2 + $0xb0] sm:$0xff]
    %v4741 = vld [vmem:[#allocation2 + $0xb8] sm:$0xff]
    %v4742 = vld [vmem:[#allocation2 + $0xc0] sm:$0xff]
    %v4743 = vpack.c.bf16 %v4719, %v4718
    %v4744 = vpack.c.bf16 %v4721, %v4720
    %v4745 = vpack.c.bf16 %v4723, %v4722
    %v4746 = vpack.c.bf16 %v4725, %v4724
    %v4747 = vpack.c.bf16 %v4727, %v4726
    %v4748 = vpack.c.bf16 %v4729, %v4728
    %v4749 = vpack.c.bf16 %v4731, %v4730
    %v4750 = vpack.c.bf16 %v4733, %v4732
    %v4751 = vpack.c.bf16 %v4735, %v4734
    %v4752 = vpack.c.bf16 %v4737, %v4736
    %v4753 = vpack.c.bf16 %v4739, %v4738
    %v4754 = vpack.c.bf16 %v4741, %v4740
    %v4755 = vpack.c.bf16 %v4742, %v4742
    %v4756 = vld [vmem:[%s6] sm:$0xff]
    %v4757 = vld [vmem:[%s6 + $0x8] sm:$0xff]
    %4759 = vset.pattern.permute.xlu0 0
    %4760 = vperm.xlu0 %4759, %v4756
    %v4761 = vpop.permute.xlu0 %4760
    %4764 = vset.pattern.permute.xlu0 0
    %4765 = vperm.xlu0 %4764, %v4757
    %v4766 = vpop.permute.xlu0 %4765
    %v4770 = vunpack.c.l.b16 %v4716
    %v4771 = vunpack.c.h.b16 %v4716
    %v4772 = vunpack.c.l.b16 %v4717
    %v4773 = vunpack.c.h.b16 %v4717
    %v4774 = vpack.c.b16 %v4772, %v4770
    %v4775 = vpack.c.b16 %v4773, %v4771
    %vm4777 = vcmask 588800
    %v4779 = vsel %vm4777, %v4775, 0
    %v4782 = vsel %vm153, %v4755, 0
    %4784 = vmatprep.subr.bf16.mxu0 0
    %4785 = vmatpush1.bf16.msra.mxu0 %v4743
    %4786 = vmatprep.subr.bf16.mxu0 0
    %4787 = vmatpush1.bf16.msra.mxu0 %v4744
    %4788 = vmatprep.subr.bf16.mxu0 0
    %4789 = vmatpush1.bf16.msra.mxu0 %v4745
    %4790 = vmatprep.subr.bf16.mxu0 0
    %4791 = vmatpush1.bf16.msra.mxu0 %v4746
    %4792 = vmatprep.subr.bf16.mxu0 0
    %4793 = vmatpush1.bf16.msra.mxu0 %v4747
    %4794 = vmatprep.subr.bf16.mxu0 0
    %4795 = vmatpush1.bf16.msra.mxu0 %v4748
    %4796 = vmatprep.subr.bf16.mxu0 0
    %4797 = vmatpush1.bf16.msra.mxu0 %v4749
    %4798 = vmatprep.subr.bf16.mxu0 0
    %4799 = vmatpush1.bf16.msra.mxu0 %v4750
    %4800 = vmatprep.subr.bf16.mxu0 0
    %4801 = vmatpush1.bf16.msra.mxu0 %v4751
    %4802 = vmatprep.subr.bf16.mxu0 0
    %4803 = vmatpush1.bf16.msra.mxu0 %v4752
    %4804 = vmatprep.subr.bf16.mxu0 0
    %4805 = vmatpush1.bf16.msra.mxu0 %v4753
    %4806 = vmatprep.subr.bf16.mxu0 0
    %4807 = vmatpush1.bf16.msra.mxu0 %v4754
    %4808 = vmatprep.subr.bf16.mxu0 0
    %4809 = vmatpush1.bf16.msra.mxu0 %v4782
    %4810 = vmatprep.subr.bf16.mxu0 0
    %4811 = vmatpush1.bf16.msra.mxu0 0
    %4812 = vmatprep.subr.bf16.mxu0 0
    %4813 = vmatpush1.bf16.msra.mxu0 0
    %4814 = vmatprep.subr.bf16.mxu0 0
    %4815 = vmatpush1.bf16.msra.mxu0 0
    %4816 = vmatprep.mubr.bf16.mxu0 %v4779
    %4817 = vmatmul.mubr.bf16.gmra.mrb[0].mxu0 %v4774
    %v4818 = vpop.f32.mrb[0].mxu0
    %v4819 = vadd.f32 %v4761, %v4818
    %v4820 = vpop.f32.mrb[0].mxu0
    %v4821 = vpop.f32.mrb[0].mxu0
    %v4822 = vadd.f32 %v4766, %v4821
    %v4823 = vpop.f32.mrb[0].mxu0
    %4824 = vdwg.mxu0
    %v4825 = vmax.f32 %v4819, 0.0
    %v4826 = vmax.f32 %v4822, 0.0
    %v4827 = vpack.c.bf16 %v4826, %v4825
    %v4828 = vld [vmem:[%s7] sm:$0xf]
    %v4829 = vld [vmem:[%s7 + $0x4] sm:$0xf]
    %v4830 = vld [vmem:[%s7 + $0x8] sm:$0xf]
    %v4831 = vld [vmem:[%s7 + $0xc] sm:$0xf]
    %v4832 = vld [vmem:[%s7 + $0x10] sm:$0xf]
    %v4833 = vld [vmem:[%s7 + $0x14] sm:$0xf]
    %v4834 = vld [vmem:[%s7 + $0x18] sm:$0xf]
    %v4835 = vld [vmem:[%s7 + $0x1c] sm:$0xf]
    %v4844 = vunpack.c.l.b16 %v4828
    %v4845 = vunpack.c.l.b16 %v4829
    %v4846 = vunpack.c.l.b16 %v4830
    %v4847 = vunpack.c.l.b16 %v4831
    %v4848 = vunpack.c.l.b16 %v4832
    %v4849 = vunpack.c.l.b16 %v4833
    %v4850 = vunpack.c.l.b16 %v4834
    %v4851 = vunpack.c.l.b16 %v4835
    %v4852 = vpack.c.b16 %v4845, %v4844
    %v4853 = vpack.c.b16 %v4847, %v4846
    %v4854 = vpack.c.b16 %v4849, %v4848
    %v4855 = vpack.c.b16 %v4851, %v4850
    %v4861 = vsel %vm48, %v4827, 0
    %4863 = vmatprep.subr.bf16.mxu0 0
    %4864 = vmatpush1.bf16.msra.mxu0 %v4852
    %4865 = vmatprep.subr.bf16.mxu0 0
    %4866 = vmatpush1.bf16.msra.mxu0 %v4853
    %4867 = vmatprep.subr.bf16.mxu0 0
    %4868 = vmatpush1.bf16.msra.mxu0 %v4854
    %4869 = vmatprep.subr.bf16.mxu0 0
    %4870 = vmatpush1.bf16.msra.mxu0 %v4855
    %4871 = vmatprep.subr.bf16.mxu0 0
    %4872 = vmatpush1.bf16.msra.mxu0 0
    %4873 = vmatprep.subr.bf16.mxu0 0
    %4874 = vmatpush1.bf16.msra.mxu0 0
    %4875 = vmatprep.subr.bf16.mxu0 0
    %4876 = vmatpush1.bf16.msra.mxu0 0
    %4877 = vmatprep.subr.bf16.mxu0 0
    %4878 = vmatpush1.bf16.msra.mxu0 0
    %4879 = vmatprep.subr.bf16.mxu0 0
    %4880 = vmatpush1.bf16.msra.mxu0 0
    %4881 = vmatprep.subr.bf16.mxu0 0
    %4882 = vmatpush1.bf16.msra.mxu0 0
    %4883 = vmatprep.subr.bf16.mxu0 0
    %4884 = vmatpush1.bf16.msra.mxu0 0
    %4885 = vmatprep.subr.bf16.mxu0 0
    %4886 = vmatpush1.bf16.msra.mxu0 0
    %4887 = vmatprep.subr.bf16.mxu0 0
    %4888 = vmatpush1.bf16.msra.mxu0 0
    %4889 = vmatprep.subr.bf16.mxu0 0
    %4890 = vmatpush1.bf16.msra.mxu0 0
    %4891 = vmatprep.subr.bf16.mxu0 0
    %4892 = vmatpush1.bf16.msra.mxu0 0
    %4893 = vmatprep.subr.bf16.mxu0 0
    %4894 = vmatpush1.bf16.msra.mxu0 0
    %4895 = vmatprep.mubr.bf16.mxu0 0
    %4896 = vmatmul.mubr.bf16.gmra.mrb[0].mxu0 %v4861
    %v4897 = vpop.f32.mrb[0].mxu0
    %v4898 = vadd.f32 0.0, %v4897
    %v4899 = vpop.f32.mrb[0].mxu0
    %v4900 = vpop.f32.mrb[0].mxu0
    %v4901 = vadd.f32 0.0, %v4900
    %v4902 = vpop.f32.mrb[0].mxu0
    %4903 = vdwg.mxu0
    %4906 = vrot.lane.b32.xlu0 %v4898, 112
    %v4907 = vpop.permute.xlu0 %4906
    %4908 = vrot.lane.b32.xlu0 %v4901, 112
    %v4909 = vpop.permute.xlu0 %4908
    %v4912 = vmax.f32 %v4898, %v4907
    %v4913 = vmax.f32 %v4901, %v4909
    %4916 = vrot.lane.b32.xlu0 %v4912, 96
    %v4917 = vpop.permute.xlu0 %4916
    %4918 = vrot.lane.b32.xlu0 %v4913, 96
    %v4919 = vpop.permute.xlu0 %4918
    %v4922 = vmax.f32 %v4912, %v4917
    %v4923 = vmax.f32 %v4913, %v4919
    %s4924 = smul.u32 %s75, 16
    %s4925 = scalar_lea.vmem [#allocation3], %s4924
    %4926 = vst.msk [vmem:[%s4925] sm:$0xff] %vm1934, %v4922
    %4927 = vst.msk [vmem:[%s4925 + $0x8] sm:$0xff] %vm1934, %v4923
  $region62: #{net_forward.1} parent=0 // loop_footer
    %s79 = sadd.s32 1, %s75
  $region63: #{net_forward.1} parent=0 // loop_footer_branch
    %74 = sbr.rel target = $region59
  $region64: #{net_forward.1} parent=0 // loop_exit
    _
  %v4928 = vld [vmem:[#allocation3] sm:$0xff]
  %v4929 = vld [vmem:[#allocation3 + $0x8] sm:$0xff]
  %v4930 = vld [vmem:[#allocation3 + $0x10] sm:$0xff]
  %v4931 = vld [vmem:[#allocation3 + $0x18] sm:$0xff]
  %v4932 = vld [vmem:[#allocation3 + $0x20] sm:$0xff]
  %v4933 = vld [vmem:[#allocation3 + $0x28] sm:$0xff]
  %v4934 = vld [vmem:[#allocation3 + $0x30] sm:$0xff]
  %v4935 = vld [vmem:[#allocation3 + $0x38] sm:$0xff]
  %v4936 = vld [vmem:[#allocation3 + $0x40] sm:$0xff]
  %v4937 = vld [vmem:[#allocation3 + $0x48] sm:$0xff]
  %v4938 = vld [vmem:[#allocation3 + $0x50] sm:$0xff]
  %v4939 = vld [vmem:[#allocation3 + $0x58] sm:$0xff]
  %v4940 = vld [vmem:[#allocation3 + $0x60] sm:$0xff]
  %v4941 = vld [vmem:[#allocation3 + $0x68] sm:$0xff]
  %v4942 = vld [vmem:[#allocation3 + $0x70] sm:$0xff]
  %v4943 = vld [vmem:[#allocation3 + $0x78] sm:$0xff]
  %v4944 = vcombine.low %v4928, %v4932
  %v4945 = vcombine.high %v4928, %v4932
  %v4947 = vunpack.c.l.s4 1983009808
  %v4948 = vunpack.c.0.s8 %v4947
  %v4949 = vlaneseq
  %v4950 = vshrl.u32 %v4949, 7
  %v4951 = vsub.s32 %v4948, %v4950
  %v4952 = vrot.slane %v4944, %v4951
  %v4954 = vunpack.c.l.s4 1983009808
  %v4955 = vunpack.c.0.s8 %v4954
  %v4956 = vlaneseq
  %v4957 = vshrl.u32 %v4956, 7
  %v4958 = vsub.s32 %v4955, %v4957
  %v4959 = vrot.slane %v4945, %v4958
  %v4960 = vcombine.low %v4930, %v4934
  %v4961 = vcombine.high %v4930, %v4934
  %v4963 = vunpack.c.l.s4 1983009808
  %v4964 = vunpack.c.0.s8 %v4963
  %v4965 = vlaneseq
  %v4966 = vshrl.u32 %v4965, 7
  %v4967 = vsub.s32 %v4964, %v4966
  %v4968 = vrot.slane %v4960, %v4967
  %v4970 = vunpack.c.l.s4 1983009808
  %v4971 = vunpack.c.0.s8 %v4970
  %v4972 = vlaneseq
  %v4973 = vshrl.u32 %v4972, 7
  %v4974 = vsub.s32 %v4971, %v4973
  %v4975 = vrot.slane %v4961, %v4974
  %v4976 = vcombine.low %v4936, %v4940
  %v4977 = vcombine.high %v4936, %v4940
  %v4979 = vunpack.c.l.s4 1983009808
  %v4980 = vunpack.c.0.s8 %v4979
  %v4981 = vlaneseq
  %v4982 = vshrl.u32 %v4981, 7
  %v4983 = vsub.s32 %v4980, %v4982
  %v4984 = vrot.slane %v4976, %v4983
  %v4986 = vunpack.c.l.s4 1983009808
  %v4987 = vunpack.c.0.s8 %v4986
  %v4988 = vlaneseq
  %v4989 = vshrl.u32 %v4988, 7
  %v4990 = vsub.s32 %v4987, %v4989
  %v4991 = vrot.slane %v4977, %v4990
  %v4992 = vcombine.low %v4938, %v4942
  %v4993 = vcombine.high %v4938, %v4942
  %v4995 = vunpack.c.l.s4 1983009808
  %v4996 = vunpack.c.0.s8 %v4995
  %v4997 = vlaneseq
  %v4998 = vshrl.u32 %v4997, 7
  %v4999 = vsub.s32 %v4996, %v4998
  %v5000 = vrot.slane %v4992, %v4999
  %v5002 = vunpack.c.l.s4 1983009808
  %v5003 = vunpack.c.0.s8 %v5002
  %v5004 = vlaneseq
  %v5005 = vshrl.u32 %v5004, 7
  %v5006 = vsub.s32 %v5003, %v5005
  %v5007 = vrot.slane %v4993, %v5006
  %v5008 = vcombine.low %v4952, %v4968
  %v5009 = vcombine.high %v4952, %v4968
  %v5011 = vunpack.c.l.s4 1934713408
  %v5012 = vunpack.c.0.s8 %v5011
  %v5013 = vlaneseq
  %v5014 = vshrl.u32 %v5013, 7
  %v5015 = vsub.s32 %v5012, %v5014
  %v5016 = vrot.slane %v5008, %v5015
  %v5018 = vunpack.c.l.s4 1934713408
  %v5019 = vunpack.c.0.s8 %v5018
  %v5020 = vlaneseq
  %v5021 = vshrl.u32 %v5020, 7
  %v5022 = vsub.s32 %v5019, %v5021
  %v5023 = vrot.slane %v5009, %v5022
  %v5024 = vcombine.low %v4959, %v4975
  %v5025 = vcombine.high %v4959, %v4975
  %v5027 = vunpack.c.l.s4 1934713408
  %v5028 = vunpack.c.0.s8 %v5027
  %v5029 = vlaneseq
  %v5030 = vshrl.u32 %v5029, 7
  %v5031 = vsub.s32 %v5028, %v5030
  %v5032 = vrot.slane %v5024, %v5031
  %v5034 = vunpack.c.l.s4 1934713408
  %v5035 = vunpack.c.0.s8 %v5034
  %v5036 = vlaneseq
  %v5037 = vshrl.u32 %v5036, 7
  %v5038 = vsub.s32 %v5035, %v5037
  %v5039 = vrot.slane %v5025, %v5038
  %v5040 = vcombine.low %v4984, %v5000
  %v5041 = vcombine.high %v4984, %v5000
  %v5043 = vunpack.c.l.s4 1934713408
  %v5044 = vunpack.c.0.s8 %v5043
  %v5045 = vlaneseq
  %v5046 = vshrl.u32 %v5045, 7
  %v5047 = vsub.s32 %v5044, %v5046
  %v5048 = vrot.slane %v5040, %v5047
  %v5050 = vunpack.c.l.s4 1934713408
  %v5051 = vunpack.c.0.s8 %v5050
  %v5052 = vlaneseq
  %v5053 = vshrl.u32 %v5052, 7
  %v5054 = vsub.s32 %v5051, %v5053
  %v5055 = vrot.slane %v5041, %v5054
  %v5056 = vcombine.low %v4991, %v5007
  %v5057 = vcombine.high %v4991, %v5007
  %v5059 = vunpack.c.l.s4 1934713408
  %v5060 = vunpack.c.0.s8 %v5059
  %v5061 = vlaneseq
  %v5062 = vshrl.u32 %v5061, 7
  %v5063 = vsub.s32 %v5060, %v5062
  %v5064 = vrot.slane %v5056, %v5063
  %v5066 = vunpack.c.l.s4 1934713408
  %v5067 = vunpack.c.0.s8 %v5066
  %v5068 = vlaneseq
  %v5069 = vshrl.u32 %v5068, 7
  %v5070 = vsub.s32 %v5067, %v5069
  %v5071 = vrot.slane %v5057, %v5070
  %v5072 = vcombine.low %v5016, %v5048
  %v5073 = vcombine.high %v5016, %v5048
  %v5074 = vcombine.low %v5023, %v5055
  %v5075 = vcombine.high %v5023, %v5055
  %v5076 = vcombine.low %v5032, %v5064
  %v5077 = vcombine.high %v5032, %v5064
  %v5078 = vcombine.low %v5039, %v5071
  %v5079 = vcombine.high %v5039, %v5071
  %v5080 = vcombine.low %v4929, %v4933
  %v5081 = vcombine.high %v4929, %v4933
  %v5083 = vunpack.c.l.s4 1983009808
  %v5084 = vunpack.c.0.s8 %v5083
  %v5085 = vlaneseq
  %v5086 = vshrl.u32 %v5085, 7
  %v5087 = vsub.s32 %v5084, %v5086
  %v5088 = vrot.slane %v5080, %v5087
  %v5090 = vunpack.c.l.s4 1983009808
  %v5091 = vunpack.c.0.s8 %v5090
  %v5092 = vlaneseq
  %v5093 = vshrl.u32 %v5092, 7
  %v5094 = vsub.s32 %v5091, %v5093
  %v5095 = vrot.slane %v5081, %v5094
  %v5096 = vcombine.low %v4931, %v4935
  %v5097 = vcombine.high %v4931, %v4935
  %v5099 = vunpack.c.l.s4 1983009808
  %v5100 = vunpack.c.0.s8 %v5099
  %v5101 = vlaneseq
  %v5102 = vshrl.u32 %v5101, 7
  %v5103 = vsub.s32 %v5100, %v5102
  %v5104 = vrot.slane %v5096, %v5103
  %v5106 = vunpack.c.l.s4 1983009808
  %v5107 = vunpack.c.0.s8 %v5106
  %v5108 = vlaneseq
  %v5109 = vshrl.u32 %v5108, 7
  %v5110 = vsub.s32 %v5107, %v5109
  %v5111 = vrot.slane %v5097, %v5110
  %v5112 = vcombine.low %v4937, %v4941
  %v5113 = vcombine.high %v4937, %v4941
  %v5115 = vunpack.c.l.s4 1983009808
  %v5116 = vunpack.c.0.s8 %v5115
  %v5117 = vlaneseq
  %v5118 = vshrl.u32 %v5117, 7
  %v5119 = vsub.s32 %v5116, %v5118
  %v5120 = vrot.slane %v5112, %v5119
  %v5122 = vunpack.c.l.s4 1983009808
  %v5123 = vunpack.c.0.s8 %v5122
  %v5124 = vlaneseq
  %v5125 = vshrl.u32 %v5124, 7
  %v5126 = vsub.s32 %v5123, %v5125
  %v5127 = vrot.slane %v5113, %v5126
  %v5128 = vcombine.low %v4939, %v4943
  %v5129 = vcombine.high %v4939, %v4943
  %v5131 = vunpack.c.l.s4 1983009808
  %v5132 = vunpack.c.0.s8 %v5131
  %v5133 = vlaneseq
  %v5134 = vshrl.u32 %v5133, 7
  %v5135 = vsub.s32 %v5132, %v5134
  %v5136 = vrot.slane %v5128, %v5135
  %v5138 = vunpack.c.l.s4 1983009808
  %v5139 = vunpack.c.0.s8 %v5138
  %v5140 = vlaneseq
  %v5141 = vshrl.u32 %v5140, 7
  %v5142 = vsub.s32 %v5139, %v5141
  %v5143 = vrot.slane %v5129, %v5142
  %v5144 = vcombine.low %v5088, %v5104
  %v5145 = vcombine.high %v5088, %v5104
  %v5147 = vunpack.c.l.s4 1934713408
  %v5148 = vunpack.c.0.s8 %v5147
  %v5149 = vlaneseq
  %v5150 = vshrl.u32 %v5149, 7
  %v5151 = vsub.s32 %v5148, %v5150
  %v5152 = vrot.slane %v5144, %v5151
  %v5154 = vunpack.c.l.s4 1934713408
  %v5155 = vunpack.c.0.s8 %v5154
  %v5156 = vlaneseq
  %v5157 = vshrl.u32 %v5156, 7
  %v5158 = vsub.s32 %v5155, %v5157
  %v5159 = vrot.slane %v5145, %v5158
  %v5160 = vcombine.low %v5095, %v5111
  %v5161 = vcombine.high %v5095, %v5111
  %v5163 = vunpack.c.l.s4 1934713408
  %v5164 = vunpack.c.0.s8 %v5163
  %v5165 = vlaneseq
  %v5166 = vshrl.u32 %v5165, 7
  %v5167 = vsub.s32 %v5164, %v5166
  %v5168 = vrot.slane %v5160, %v5167
  %v5170 = vunpack.c.l.s4 1934713408
  %v5171 = vunpack.c.0.s8 %v5170
  %v5172 = vlaneseq
  %v5173 = vshrl.u32 %v5172, 7
  %v5174 = vsub.s32 %v5171, %v5173
  %v5175 = vrot.slane %v5161, %v5174
  %v5176 = vcombine.low %v5120, %v5136
  %v5177 = vcombine.high %v5120, %v5136
  %v5179 = vunpack.c.l.s4 1934713408
  %v5180 = vunpack.c.0.s8 %v5179
  %v5181 = vlaneseq
  %v5182 = vshrl.u32 %v5181, 7
  %v5183 = vsub.s32 %v5180, %v5182
  %v5184 = vrot.slane %v5176, %v5183
  %v5186 = vunpack.c.l.s4 1934713408
  %v5187 = vunpack.c.0.s8 %v5186
  %v5188 = vlaneseq
  %v5189 = vshrl.u32 %v5188, 7
  %v5190 = vsub.s32 %v5187, %v5189
  %v5191 = vrot.slane %v5177, %v5190
  %v5192 = vcombine.low %v5127, %v5143
  %v5193 = vcombine.high %v5127, %v5143
  %v5195 = vunpack.c.l.s4 1934713408
  %v5196 = vunpack.c.0.s8 %v5195
  %v5197 = vlaneseq
  %v5198 = vshrl.u32 %v5197, 7
  %v5199 = vsub.s32 %v5196, %v5198
  %v5200 = vrot.slane %v5192, %v5199
  %v5202 = vunpack.c.l.s4 1934713408
  %v5203 = vunpack.c.0.s8 %v5202
  %v5204 = vlaneseq
  %v5205 = vshrl.u32 %v5204, 7
  %v5206 = vsub.s32 %v5203, %v5205
  %v5207 = vrot.slane %v5193, %v5206
  %v5208 = vcombine.low %v5152, %v5184
  %v5209 = vcombine.high %v5152, %v5184
  %v5210 = vcombine.low %v5159, %v5191
  %v5211 = vcombine.high %v5159, %v5191
  %v5212 = vcombine.low %v5168, %v5200
  %v5213 = vcombine.high %v5168, %v5200
  %v5214 = vcombine.low %v5175, %v5207
  %v5215 = vcombine.high %v5175, %v5207
  %5217 = vrot.lane.b32.xlu0 %v5073, 16
  %v5218 = vpop.permute.xlu0 %5217
  %5221 = vrot.lane.b32.xlu0 %v5074, 32
  %v5222 = vpop.permute.xlu0 %5221
  %5225 = vrot.lane.b32.xlu0 %v5075, 48
  %v5226 = vpop.permute.xlu0 %5225
  %5229 = vrot.lane.b32.xlu0 %v5076, 64
  %v5230 = vpop.permute.xlu0 %5229
  %5233 = vrot.lane.b32.xlu0 %v5077, 80
  %v5234 = vpop.permute.xlu0 %5233
  %5237 = vrot.lane.b32.xlu0 %v5078, 96
  %v5238 = vpop.permute.xlu0 %5237
  %5241 = vrot.lane.b32.xlu0 %v5079, 112
  %v5242 = vpop.permute.xlu0 %5241
  %5245 = vrot.lane.b32.xlu0 %v5209, 16
  %v5246 = vpop.permute.xlu0 %5245
  %5249 = vrot.lane.b32.xlu0 %v5210, 32
  %v5250 = vpop.permute.xlu0 %5249
  %5253 = vrot.lane.b32.xlu0 %v5211, 48
  %v5254 = vpop.permute.xlu0 %5253
  %5257 = vrot.lane.b32.xlu0 %v5212, 64
  %v5258 = vpop.permute.xlu0 %5257
  %5261 = vrot.lane.b32.xlu0 %v5213, 80
  %v5262 = vpop.permute.xlu0 %5261
  %5265 = vrot.lane.b32.xlu0 %v5214, 96
  %v5266 = vpop.permute.xlu0 %5265
  %5269 = vrot.lane.b32.xlu0 %v5215, 112
  %v5270 = vpop.permute.xlu0 %5269
  %vm5272 = vcmask 130048
  %v5273 = vsel %vm5272, %v5072, %v5218
  %vm5274 = vcmask 261120
  %v5275 = vsel %vm5274, %v5273, %v5222
  %vm5276 = vcmask 392192
  %v5277 = vsel %vm5276, %v5275, %v5226
  %v5278 = vsel %vm48, %v5277, %v5230
  %vm5279 = vcmask 654336
  %v5280 = vsel %vm5279, %v5278, %v5234
  %vm5281 = vcmask 785408
  %v5282 = vsel %vm5281, %v5280, %v5238
  %vm5283 = vcmask 916480
  %v5284 = vsel %vm5283, %v5282, %v5242
  %v5285 = vsel %vm5272, %v5208, %v5246
  %v5286 = vsel %vm5274, %v5285, %v5250
  %v5287 = vsel %vm5276, %v5286, %v5254
  %v5288 = vsel %vm48, %v5287, %v5258
  %v5289 = vsel %vm5279, %v5288, %v5262
  %v5290 = vsel %vm5281, %v5289, %v5266
  %v5291 = vsel %vm5283, %v5290, %v5270
  %v5292 = vpack.c.bf16 %v5284, %v5284
  %v5293 = vpack.c.bf16 %v5291, %v5291
  %v5294 = vld [vmem:[%s8] sm:$0xf]
  %v5295 = vld [vmem:[%s8 + $0x4] sm:$0xf]
  %v5296 = vld [vmem:[%s8 + $0x8] sm:$0xf]
  %v5297 = vld [vmem:[%s8 + $0xc] sm:$0xf]
  %v5298 = vld [vmem:[%s8 + $0x10] sm:$0xf]
  %v5299 = vld [vmem:[%s8 + $0x14] sm:$0xf]
  %v5300 = vld [vmem:[%s8 + $0x18] sm:$0xf]
  %v5301 = vld [vmem:[%s8 + $0x1c] sm:$0xf]
  %v5302 = vld [vmem:[%s8 + $0x20] sm:$0xf]
  %v5303 = vld [vmem:[%s8 + $0x24] sm:$0xf]
  %v5304 = vld [vmem:[%s8 + $0x28] sm:$0xf]
  %v5305 = vld [vmem:[%s8 + $0x2c] sm:$0xf]
  %v5306 = vld [vmem:[%s8 + $0x30] sm:$0xf]
  %v5307 = vld [vmem:[%s8 + $0x34] sm:$0xf]
  %v5308 = vld [vmem:[%s8 + $0x38] sm:$0xf]
  %v5309 = vld [vmem:[%s8 + $0x3c] sm:$0xf]
  %v5310 = vld [vmem:[%s8 + $0x40] sm:$0xf]
  %v5311 = vld [vmem:[%s8 + $0x44] sm:$0xf]
  %v5312 = vld [vmem:[%s8 + $0x48] sm:$0xf]
  %v5313 = vld [vmem:[%s8 + $0x4c] sm:$0xf]
  %v5314 = vld [vmem:[%s8 + $0x50] sm:$0xf]
  %v5315 = vld [vmem:[%s8 + $0x54] sm:$0xf]
  %v5316 = vld [vmem:[%s8 + $0x58] sm:$0xf]
  %v5317 = vld [vmem:[%s8 + $0x5c] sm:$0xf]
  %v5318 = vld [vmem:[%s8 + $0x60] sm:$0xf]
  %v5319 = vld [vmem:[%s8 + $0x64] sm:$0xf]
  %v5320 = vld [vmem:[%s8 + $0x68] sm:$0xf]
  %v5321 = vld [vmem:[%s8 + $0x6c] sm:$0xf]
  %v5322 = vld [vmem:[%s8 + $0x70] sm:$0xf]
  %v5323 = vld [vmem:[%s8 + $0x74] sm:$0xf]
  %v5324 = vld [vmem:[%s8 + $0x78] sm:$0xf]
  %v5325 = vld [vmem:[%s8 + $0x7c] sm:$0xf]
  %v5326 = vld [vmem:[%s9] sm:$0x1]
  %v5328 = vlaneseq
  %v5329 = vshrl.u32 %v5328, 7
  %v5330 = vsub.s32 0, %v5329
  %v5331 = vrot.slane %v5326, %v5330
  %v5365 = vunpack.c.l.b16 %v5294
  %v5366 = vunpack.c.l.b16 %v5295
  %v5367 = vunpack.c.l.b16 %v5296
  %v5368 = vunpack.c.l.b16 %v5297
  %v5369 = vunpack.c.l.b16 %v5298
  %v5370 = vunpack.c.l.b16 %v5299
  %v5371 = vunpack.c.l.b16 %v5300
  %v5372 = vunpack.c.l.b16 %v5301
  %v5373 = vunpack.c.l.b16 %v5302
  %v5374 = vunpack.c.l.b16 %v5303
  %v5375 = vunpack.c.l.b16 %v5304
  %v5376 = vunpack.c.l.b16 %v5305
  %v5377 = vunpack.c.l.b16 %v5306
  %v5378 = vunpack.c.l.b16 %v5307
  %v5379 = vunpack.c.l.b16 %v5308
  %v5380 = vunpack.c.l.b16 %v5309
  %v5381 = vunpack.c.l.b16 %v5310
  %v5382 = vunpack.c.l.b16 %v5311
  %v5383 = vunpack.c.l.b16 %v5312
  %v5384 = vunpack.c.l.b16 %v5313
  %v5385 = vunpack.c.l.b16 %v5314
  %v5386 = vunpack.c.l.b16 %v5315
  %v5387 = vunpack.c.l.b16 %v5316
  %v5388 = vunpack.c.l.b16 %v5317
  %v5389 = vunpack.c.l.b16 %v5318
  %v5390 = vunpack.c.l.b16 %v5319
  %v5391 = vunpack.c.l.b16 %v5320
  %v5392 = vunpack.c.l.b16 %v5321
  %v5393 = vunpack.c.l.b16 %v5322
  %v5394 = vunpack.c.l.b16 %v5323
  %v5395 = vunpack.c.l.b16 %v5324
  %v5396 = vunpack.c.l.b16 %v5325
  %v5397 = vpack.c.b16 %v5366, %v5365
  %v5398 = vpack.c.b16 %v5368, %v5367
  %v5399 = vpack.c.b16 %v5370, %v5369
  %v5400 = vpack.c.b16 %v5372, %v5371
  %v5401 = vpack.c.b16 %v5374, %v5373
  %v5402 = vpack.c.b16 %v5376, %v5375
  %v5403 = vpack.c.b16 %v5378, %v5377
  %v5404 = vpack.c.b16 %v5380, %v5379
  %v5405 = vpack.c.b16 %v5382, %v5381
  %v5406 = vpack.c.b16 %v5384, %v5383
  %v5407 = vpack.c.b16 %v5386, %v5385
  %v5408 = vpack.c.b16 %v5388, %v5387
  %v5409 = vpack.c.b16 %v5390, %v5389
  %v5410 = vpack.c.b16 %v5392, %v5391
  %v5411 = vpack.c.b16 %v5394, %v5393
  %v5412 = vpack.c.b16 %v5396, %v5395
  %5429 = vmatprep.subr.bf16.mxu0 0
  %5430 = vmatpush1.bf16.msra.mxu0 %v5397
  %5431 = vmatprep.subr.bf16.mxu0 0
  %5432 = vmatpush1.bf16.msra.mxu0 %v5398
  %5433 = vmatprep.subr.bf16.mxu0 0
  %5434 = vmatpush1.bf16.msra.mxu0 %v5399
  %5435 = vmatprep.subr.bf16.mxu0 0
  %5436 = vmatpush1.bf16.msra.mxu0 %v5400
  %5437 = vmatprep.subr.bf16.mxu0 0
  %5438 = vmatpush1.bf16.msra.mxu0 %v5401
  %5439 = vmatprep.subr.bf16.mxu0 0
  %5440 = vmatpush1.bf16.msra.mxu0 %v5402
  %5441 = vmatprep.subr.bf16.mxu0 0
  %5442 = vmatpush1.bf16.msra.mxu0 %v5403
  %5443 = vmatprep.subr.bf16.mxu0 0
  %5444 = vmatpush1.bf16.msra.mxu0 %v5404
  %5445 = vmatprep.subr.bf16.mxu0 0
  %5446 = vmatpush1.bf16.msra.mxu0 %v5405
  %5447 = vmatprep.subr.bf16.mxu0 0
  %5448 = vmatpush1.bf16.msra.mxu0 %v5406
  %5449 = vmatprep.subr.bf16.mxu0 0
  %5450 = vmatpush1.bf16.msra.mxu0 %v5407
  %5451 = vmatprep.subr.bf16.mxu0 0
  %5452 = vmatpush1.bf16.msra.mxu0 %v5408
  %5453 = vmatprep.subr.bf16.mxu0 0
  %5454 = vmatpush1.bf16.msra.mxu0 %v5409
  %5455 = vmatprep.subr.bf16.mxu0 0
  %5456 = vmatpush1.bf16.msra.mxu0 %v5410
  %5457 = vmatprep.subr.bf16.mxu0 0
  %5458 = vmatpush1.bf16.msra.mxu0 %v5411
  %5459 = vmatprep.subr.bf16.mxu0 0
  %5460 = vmatpush1.bf16.msra.mxu0 %v5412
  %5461 = vmatprep.mubr.bf16.mxu0 %v5293
  %5462 = vmatmul.mubr.bf16.gmra.mrb[0].mxu0 %v5292
  %v5463 = vpop.f32.mrb[0].mxu0
  %v5464 = vadd.f32 %v5331, %v5463
  %v5465 = vpop.f32.mrb[0].mxu0
  %v5466 = vpop.f32.mrb[0].mxu0
  %v5467 = vpop.f32.mrb[0].mxu0
  %5468 = vdwg.mxu0
  %v5469 = vmax.f32 %v5464, 0.0
  %v5470 = vpack.c.bf16 %v5469, %v5469
  %v5471 = vld [vmem:[%s10] sm:$0xf]
  %v5472 = vld [vmem:[%s10 + $0x4] sm:$0xf]
  %v5473 = vld [vmem:[%s10 + $0x8] sm:$0xf]
  %v5474 = vld [vmem:[%s10 + $0xc] sm:$0xf]
  %v5475 = vld [vmem:[%s10 + $0x10] sm:$0xf]
  %v5476 = vld [vmem:[%s10 + $0x14] sm:$0xf]
  %v5477 = vld [vmem:[%s10 + $0x18] sm:$0xf]
  %v5478 = vld [vmem:[%s10 + $0x1c] sm:$0xf]
  %v5479 = vld [vmem:[%s10 + $0x20] sm:$0xf]
  %v5480 = vld [vmem:[%s10 + $0x24] sm:$0xf]
  %v5481 = vld [vmem:[%s10 + $0x28] sm:$0xf]
  %v5482 = vld [vmem:[%s10 + $0x2c] sm:$0xf]
  %v5483 = vld [vmem:[%s10 + $0x30] sm:$0xf]
  %v5484 = vld [vmem:[%s10 + $0x34] sm:$0xf]
  %v5485 = vld [vmem:[%s10 + $0x38] sm:$0xf]
  %v5486 = vld [vmem:[%s11] sm:$0x1]
  %v5488 = vlaneseq
  %v5489 = vshrl.u32 %v5488, 7
  %v5490 = vsub.s32 0, %v5489
  %v5491 = vrot.slane %v5486, %v5490
  %v5508 = vunpack.c.l.b16 %v5471
  %v5509 = vunpack.c.l.b16 %v5472
  %v5510 = vunpack.c.l.b16 %v5473
  %v5511 = vunpack.c.l.b16 %v5474
  %v5512 = vunpack.c.l.b16 %v5475
  %v5513 = vunpack.c.l.b16 %v5476
  %v5514 = vunpack.c.l.b16 %v5477
  %v5515 = vunpack.c.l.b16 %v5478
  %v5516 = vunpack.c.l.b16 %v5479
  %v5517 = vunpack.c.l.b16 %v5480
  %v5518 = vunpack.c.l.b16 %v5481
  %v5519 = vunpack.c.l.b16 %v5482
  %v5520 = vunpack.c.l.b16 %v5483
  %v5521 = vunpack.c.l.b16 %v5484
  %v5522 = vunpack.c.l.b16 %v5485
  %v5523 = vpack.c.b16 %v5509, %v5508
  %v5524 = vpack.c.b16 %v5511, %v5510
  %v5525 = vpack.c.b16 %v5513, %v5512
  %v5526 = vpack.c.b16 %v5515, %v5514
  %v5527 = vpack.c.b16 %v5517, %v5516
  %v5528 = vpack.c.b16 %v5519, %v5518
  %v5529 = vpack.c.b16 %v5521, %v5520
  %v5530 = vpack.c.b16 %v5522, %v5522
  %vm5538 = vcmask 982016
  %v5540 = vsel %vm5538, %v5470, 0
  %vm5542 = vcmask 1043456
  %v5544 = vsel %vm5542, %v5530, 0
  %5546 = vmatprep.subr.bf16.mxu0 0
  %5547 = vmatpush1.bf16.msra.mxu0 %v5523
  %5548 = vmatprep.subr.bf16.mxu0 0
  %5549 = vmatpush1.bf16.msra.mxu0 %v5524
  %5550 = vmatprep.subr.bf16.mxu0 0
  %5551 = vmatpush1.bf16.msra.mxu0 %v5525
  %5552 = vmatprep.subr.bf16.mxu0 0
  %5553 = vmatpush1.bf16.msra.mxu0 %v5526
  %5554 = vmatprep.subr.bf16.mxu0 0
  %5555 = vmatpush1.bf16.msra.mxu0 %v5527
  %5556 = vmatprep.subr.bf16.mxu0 0
  %5557 = vmatpush1.bf16.msra.mxu0 %v5528
  %5558 = vmatprep.subr.bf16.mxu0 0
  %5559 = vmatpush1.bf16.msra.mxu0 %v5529
  %5560 = vmatprep.subr.bf16.mxu0 0
  %5561 = vmatpush1.bf16.msra.mxu0 %v5544
  %5562 = vmatprep.subr.bf16.mxu0 0
  %5563 = vmatpush1.bf16.msra.mxu0 0
  %5564 = vmatprep.subr.bf16.mxu0 0
  %5565 = vmatpush1.bf16.msra.mxu0 0
  %5566 = vmatprep.subr.bf16.mxu0 0
  %5567 = vmatpush1.bf16.msra.mxu0 0
  %5568 = vmatprep.subr.bf16.mxu0 0
  %5569 = vmatpush1.bf16.msra.mxu0 0
  %5570 = vmatprep.subr.bf16.mxu0 0
  %5571 = vmatpush1.bf16.msra.mxu0 0
  %5572 = vmatprep.subr.bf16.mxu0 0
  %5573 = vmatpush1.bf16.msra.mxu0 0
  %5574 = vmatprep.subr.bf16.mxu0 0
  %5575 = vmatpush1.bf16.msra.mxu0 0
  %5576 = vmatprep.subr.bf16.mxu0 0
  %5577 = vmatpush1.bf16.msra.mxu0 0
  %5578 = vmatprep.mubr.bf16.mxu0 0
  %5579 = vmatmul.mubr.bf16.gmra.mrb[0].mxu0 %v5540
  %v5580 = vpop.f32.mrb[0].mxu0
  %v5581 = vadd.f32 %v5491, %v5580
  %v5582 = vpop.f32.mrb[0].mxu0
  %v5583 = vpop.f32.mrb[0].mxu0
  %v5584 = vpop.f32.mrb[0].mxu0
  %5585 = vdwg.mxu0
  %v5586 = vmax.f32 %v5581, 0.0
  %v5587 = vpack.c.bf16 %v5586, %v5586
  %v5588 = vld [vmem:[%s12] sm:$0xf]
  %v5589 = vld [vmem:[%s12 + $0x4] sm:$0xf]
  %v5590 = vld [vmem:[%s12 + $0x8] sm:$0xf]
  %v5591 = vld [vmem:[%s12 + $0xc] sm:$0xf]
  %v5592 = vld [vmem:[%s12 + $0x10] sm:$0xf]
  %v5593 = vld [vmem:[%s12 + $0x14] sm:$0xf]
  %v5594 = vld [vmem:[%s12 + $0x18] sm:$0xf]
  %v5595 = vld [vmem:[%s12 + $0x1c] sm:$0xf]
  %v5596 = vld [vmem:[%s12 + $0x20] sm:$0xf]
  %v5597 = vld [vmem:[%s12 + $0x24] sm:$0xf]
  %v5598 = vld [vmem:[%s12 + $0x28] sm:$0x3]
  %v5599 = vld [vmem:[%s13] sm:$0x1]
  %v5601 = vlaneseq
  %v5602 = vshrl.u32 %v5601, 7
  %v5603 = vsub.s32 0, %v5602
  %v5604 = vrot.slane %v5599, %v5603
  %v5617 = vunpack.c.l.b16 %v5588
  %v5618 = vunpack.c.l.b16 %v5589
  %v5619 = vunpack.c.l.b16 %v5590
  %v5620 = vunpack.c.l.b16 %v5591
  %v5621 = vunpack.c.l.b16 %v5592
  %v5622 = vunpack.c.l.b16 %v5593
  %v5623 = vunpack.c.l.b16 %v5594
  %v5624 = vunpack.c.l.b16 %v5595
  %v5625 = vunpack.c.l.b16 %v5596
  %v5626 = vunpack.c.l.b16 %v5597
  %v5627 = vunpack.c.l.b16 %v5598
  %v5628 = vpack.c.b16 %v5618, %v5617
  %v5629 = vpack.c.b16 %v5620, %v5619
  %v5630 = vpack.c.b16 %v5622, %v5621
  %v5631 = vpack.c.b16 %v5624, %v5623
  %v5632 = vpack.c.b16 %v5626, %v5625
  %v5633 = vpack.c.b16 %v5627, %v5627
  %vm5639 = vcmask 687104
  %v5641 = vsel %vm5639, %v5587, 0
  %vm5643 = vcmask 1041408
  %v5645 = vsel %vm5643, %v5633, 0
  %5647 = vmatprep.subr.bf16.mxu0 0
  %5648 = vmatpush1.bf16.msra.mxu0 %v5628
  %5649 = vmatprep.subr.bf16.mxu0 0
  %5650 = vmatpush1.bf16.msra.mxu0 %v5629
  %5651 = vmatprep.subr.bf16.mxu0 0
  %5652 = vmatpush1.bf16.msra.mxu0 %v5630
  %5653 = vmatprep.subr.bf16.mxu0 0
  %5654 = vmatpush1.bf16.msra.mxu0 %v5631
  %5655 = vmatprep.subr.bf16.mxu0 0
  %5656 = vmatpush1.bf16.msra.mxu0 %v5632
  %5657 = vmatprep.subr.bf16.mxu0 0
  %5658 = vmatpush1.bf16.msra.mxu0 %v5645
  %5659 = vmatprep.subr.bf16.mxu0 0
  %5660 = vmatpush1.bf16.msra.mxu0 0
  %5661 = vmatprep.subr.bf16.mxu0 0
  %5662 = vmatpush1.bf16.msra.mxu0 0
  %5663 = vmatprep.subr.bf16.mxu0 0
  %5664 = vmatpush1.bf16.msra.mxu0 0
  %5665 = vmatprep.subr.bf16.mxu0 0
  %5666 = vmatpush1.bf16.msra.mxu0 0
  %5667 = vmatprep.subr.bf16.mxu0 0
  %5668 = vmatpush1.bf16.msra.mxu0 0
  %5669 = vmatprep.subr.bf16.mxu0 0
  %5670 = vmatpush1.bf16.msra.mxu0 0
  %5671 = vmatprep.subr.bf16.mxu0 0
  %5672 = vmatpush1.bf16.msra.mxu0 0
  %5673 = vmatprep.subr.bf16.mxu0 0
  %5674 = vmatpush1.bf16.msra.mxu0 0
  %5675 = vmatprep.subr.bf16.mxu0 0
  %5676 = vmatpush1.bf16.msra.mxu0 0
  %5677 = vmatprep.subr.bf16.mxu0 0
  %5678 = vmatpush1.bf16.msra.mxu0 0
  %5679 = vmatprep.mubr.bf16.mxu0 0
  %5680 = vmatmul.mubr.bf16.gmra.mrb[0].mxu0 %v5641
  %v5681 = vpop.f32.mrb[0].mxu0
  %v5682 = vadd.f32 %v5604, %v5681
  %v5683 = vpop.f32.mrb[0].mxu0
  %v5684 = vpop.f32.mrb[0].mxu0
  %v5685 = vpop.f32.mrb[0].mxu0
  %5686 = vdwg.mxu0
  %v5687 = vmax.f32 %v5682, 0.0
  %vm5688 = vcmask 80896
  %v5689 = vsel %vm5688, %v5687, -inf
  %5690 = vmax.xlane.f32.xlu0 %v5689
  %v5691 = vpop.xlane.xlu0 %5690
  %v5692 = vsub.f32 %v5687, %v5691
  %v5693 = vmul.f32 %v5692, 1.442695
  %v5694 = vpow.pop %v5693
  %v5695 = vsel %vm5688, %v5694, 0.0
  %5696 = vadd.xlane.f32.xlu0 %v5695
  %v5697 = vpop.xlane.xlu0 %5696
  %v5698 = vlog2.pop %v5697
  %v5699 = vmul.f32 %v5698, 0.6931472
  %v5700 = vsub.f32 %v5692, %v5699
  %5701 = vst.msk [vmem:[%s14] sm:$0xff] %vm5688, %v5700
  // Predicated region
  $region65: #{net_forward.1} parent=0 // pred_check
    _
  $region66: #{net_forward.1} parent=0 // pred_check_branch
    %5703 = sbr.rel (0) target = $region68
  $region67: #{net_forward.1} parent=0 // pred_region
    _
  $region68: #{net_forward.1} parent=0 // pred_fallthru
    _
  // Predicated region
  $region69: #{net_forward.1} parent=0 // pred_check
    _
  $region70: #{net_forward.1} parent=0 // pred_check_branch
    %5705 = sbr.rel (0) target = $region72
  $region71: #{net_forward.1} parent=0 // pred_region
    _
  $region72: #{net_forward.1} parent=0 // pred_fallthru
    _

</llo_original>
